<compile_context>
chip_gen: v5e
topology: v5e:2x2
jax: 0.10.0
libtpu: 0.0.40
codegen_flags: <defaults>
</compile_context>

<pallas_src>
import functools
import math

import jax
import jax.numpy as jnp
from jax.experimental import pallas as pl
from jax.experimental.pallas import tpu as pltpu

NEG_SLOPE = 0.2          # PyG GATConv default LeakyReLU negative slope
MASK_VALUE = -1e30       # additive mask for non-edges


def _round_up(x, m):
    return (x + m - 1) // m * m


def _row_tile(n_pad, cap=256):
    # Largest tile <= cap that divides n_pad.  n_pad is a multiple of 128 and
    # cap is a power of two, so the result is 128 or 256: sublane- and
    # lane-friendly, and the working set stays well inside VMEM on
    # v5e/v6e (128 MiB) and v7x (64 MiB).
    return math.gcd(n_pad, cap)


# ----------------------------------------------------------------------------
# Kernel A: fused projection  proj = x @ [W | u_src | u_dst | 0-pad]
# ----------------------------------------------------------------------------
def _proj_kernel(x_ref, w_ref, out_ref):
    out_ref[...] = jnp.dot(
        x_ref[...].astype(jnp.bfloat16),
        w_ref[...].astype(jnp.bfloat16),
        preferred_element_type=jnp.float32)


# ----------------------------------------------------------------------------
# Kernel B: masked softmax attention + neighbor aggregation over a dst tile.
# ----------------------------------------------------------------------------
def _gat_attn_kernel(feat_ref, a_srcT_ref, a_dst_ref, adj_ref, bias_ref,
                     out_ref, *, heads, out_ch, concat, apply_relu):
    # adj tile: [TILE_DST, N] (bf16 0/1 mask), same mask reused for all heads.
    edge_mask = adj_ref[...] > 0                              # hoisted once

    outs = []
    for h in range(heads):                                    # static, small
        feat_h = feat_ref[:, h * out_ch:(h + 1) * out_ch]     # [N, C]  (src side)
        a_src_row = a_srcT_ref[h:h + 1, :]                    # [1, N]
        a_dst_col = a_dst_ref[:, h:h + 1]                     # [TILE, 1]

        e = a_dst_col + a_src_row                             # [TILE, N]
        e = jnp.where(e > 0, e, NEG_SLOPE * e)                # LeakyReLU (VPU)
        e = jnp.where(edge_mask, e, MASK_VALUE)               # mask non-edges
        e = e - jnp.max(e, axis=-1, keepdims=True)            # stable softmax
        p = jnp.where(edge_mask, jnp.exp(e), 0.0)             # EUP exp
        denom = jnp.sum(p, axis=-1, keepdims=True)
        alpha = p * pl.reciprocal(denom, approx=True)         # EUP vrcp

        out_h = jnp.dot(alpha.astype(jnp.bfloat16),
                        feat_h.astype(jnp.bfloat16),
                        preferred_element_type=jnp.float32)   # [TILE, C] MXU
        outs.append(out_h)

    if concat:
        res = jnp.concatenate(outs, axis=-1) if len(outs) > 1 else outs[0]
    else:
        acc = outs[0]
        for o in outs[1:]:
            acc = acc + o
        res = acc * (1.0 / float(heads))

    res = res + bias_ref[...]                                 # bias hoisted: 1 add
    if apply_relu:
        res = jnp.maximum(res, 0.0)
    out_ref[...] = res.astype(out_ref.dtype)                  # single lane-dense store


# ----------------------------------------------------------------------------
# Wrapper for one GATConv layer.
# ----------------------------------------------------------------------------
def gat_conv(x, adj, w, att_src, att_dst, bias, *, heads, out_ch, concat,
             apply_relu=False):
    n_pad, f_in = x.shape
    hc = heads * out_ch
    out_dim = hc if concat else out_ch
    tile = _row_tile(n_pad)
    grid = (n_pad // tile,)

    # Fold attention vectors into the projection matmul (wrapper-side).
    w3 = w.reshape(f_in, heads, out_ch)
    u_src = jnp.einsum('fhc,hc->fh', w3, att_src)             # [F_in, H]
    u_dst = jnp.einsum('fhc,hc->fh', w3, att_dst)             # [F_in, H]
    d_proj = hc + 2 * heads
    d_pad = _round_up(d_proj, 128)                            # lane-dense output
    w_cat = jnp.zeros((f_in, d_pad), w.dtype)
    w_cat = w_cat.at[:, :hc].set(w)
    w_cat = w_cat.at[:, hc:hc + heads].set(u_src)
    w_cat = w_cat.at[:, hc + heads:d_proj].set(u_dst)

    proj = pl.pallas_call(
        _proj_kernel,
        out_shape=jax.ShapeDtypeStruct((n_pad, d_pad), jnp.float32),
        grid=grid,
        in_specs=[pl.BlockSpec((tile, f_in), lambda i: (i, 0)),
                  pl.BlockSpec((f_in, d_pad), lambda i: (0, 0))],
        out_specs=pl.BlockSpec((tile, d_pad), lambda i: (i, 0)),
        compiler_params=pltpu.CompilerParams(
            dimension_semantics=("parallel",)),
    )(x, w_cat)

    feat = proj[:, :hc]                                       # [N, H*C]
    a_src_t = proj[:, hc:hc + heads].T                        # [H, N] (lane-dense)
    a_dst = proj[:, hc + heads:d_proj]                        # [N, H]

    kernel = functools.partial(_gat_attn_kernel, heads=heads, out_ch=out_ch,
                               concat=concat, apply_relu=apply_relu)
    return pl.pallas_call(
        kernel,
        out_shape=jax.ShapeDtypeStruct((n_pad, out_dim), jnp.float32),
        grid=grid,
        in_specs=[pl.BlockSpec((n_pad, hc), lambda i: (0, 0)),      # feat (src), resident
                  pl.BlockSpec((heads, n_pad), lambda i: (0, 0)),   # a_src^T, resident
                  pl.BlockSpec((tile, heads), lambda i: (i, 0)),    # a_dst, dst tile
                  pl.BlockSpec((tile, n_pad), lambda i: (i, 0)),    # adj, dst tile
                  pl.BlockSpec((1, out_dim), lambda i: (0, 0))],    # bias
        out_specs=pl.BlockSpec((tile, out_dim), lambda i: (i, 0)),
        compiler_params=pltpu.CompilerParams(
            dimension_semantics=("parallel",)),
    )(feat, a_src_t, a_dst, adj, bias.reshape(1, -1))


def build_adj(edge_index, n_pad):
    """Dense bf16 adjacency mask adj[dst, src] = 1, plus self loops."""
    adj = jnp.zeros((n_pad, n_pad), jnp.bfloat16)
    adj = adj.at[edge_index[1], edge_index[0]].set(1.0)
    adj = jnp.maximum(adj, jnp.eye(n_pad, dtype=jnp.bfloat16))
    return adj


def glorot(key, shape):
    fan_in, fan_out = shape[0], shape[-1]
    limit = (6.0 / (fan_in + fan_out)) ** 0.5
    return jax.random.uniform(key, shape, jnp.float32, -limit, limit)


class GATPallas:
    """GAT(input_dim, hidden_dim, output_dim): GATConv(heads=8, concat) -> ReLU
    -> dropout -> GATConv(heads=1, mean)."""

    def __init__(self, key, input_dim, hidden_dim, output_dim, heads=8):
        k = jax.random.split(key, 6)
        self.heads = heads
        self.hidden = hidden_dim
        self.out = output_dim
        # conv1 parameters
        self.w1 = glorot(k[0], (input_dim, heads * hidden_dim))
        self.att_src1 = glorot(k[1], (heads, hidden_dim))
        self.att_dst1 = glorot(k[2], (heads, hidden_dim))
        self.b1 = jnp.zeros((heads * hidden_dim,), jnp.float32)
        # conv2 parameters
        self.w2 = glorot(k[3], (heads * hidden_dim, output_dim))
        self.att_src2 = glorot(k[4], (1, output_dim))
        self.att_dst2 = glorot(k[5], (1, output_dim))
        self.b2 = jnp.zeros((output_dim,), jnp.float32)
        # One jitted forward: fuses adjacency build, fold-in einsums,
        # padding, slicing/transposes and both pallas layers.
        self._forward = jax.jit(self._forward_impl)

    def _forward_impl(self, x, edge_index):
        n = x.shape[0]
        n_pad = _round_up(max(n, 128), 128)       # lane-dense src dimension
        x_p = jnp.zeros((n_pad, x.shape[1]), x.dtype).at[:n].set(x)
        adj = build_adj(edge_index, n_pad)
        # conv1 with fused ReLU.
        h = gat_conv(x_p, adj, self.w1, self.att_src1, self.att_dst1, self.b1,
                     heads=self.heads, out_ch=self.hidden, concat=True,
                     apply_relu=True)
        # TODO(synk): F.dropout(p=0.5) is identity in eval mode; no-op here.
        # conv2 (single head, concat=False -> mean over heads).
        out = gat_conv(h, adj, self.w2, self.att_src2, self.att_dst2, self.b2,
                       heads=1, out_ch=self.out, concat=False,
                       apply_relu=False)
        return out[:n]

    def __call__(self, x, edge_index):
        return self._forward(x, edge_index)


if __name__ == "__main__":
    key = jax.random.PRNGKey(0)
    k_param, k_x, k_src, k_dst = jax.random.split(key, 4)

    num_nodes = 16
    input_dim = 8
    hidden_dim = 8
    output_dim = 4
    num_edges = 40

    x = jax.random.normal(k_x, (num_nodes, input_dim), jnp.float32)
    edge_index = jnp.stack([
        jax.random.randint(k_src, (num_edges,), 0, num_nodes, jnp.int32),
        jax.random.randint(k_dst, (num_edges,), 0, num_nodes, jnp.int32),
    ])  # [2, E] (row 0 = source, row 1 = destination)

    model = GATPallas(k_param, input_dim, hidden_dim, output_dim, heads=8)
    out = model(x, edge_index)
    jax.block_until_ready(out)

    assert out.shape == (num_nodes, output_dim)
    assert bool(jnp.all(jnp.isfinite(out)))
    print("KERNEL_OK")
</pallas_src>

<mosaic_0001>
module attributes {stable_mosaic.version = 11 : i64} {
  func.func @_proj_kernel(%arg0: i32, %arg1: memref<128x8xf32, #tpu.memory_space<vmem>>, %arg2: memref<8x128xf32, #tpu.memory_space<vmem>>, %arg3: memref<128x128xf32, #tpu.memory_space<vmem>>) attributes {dimension_semantics = [#tpu.dimension_semantics<parallel>], iteration_bounds = array<i64: 1>, scalar_prefetch = 0 : i64, scratch_operands = 0 : i64, tpu.core_type = #tpu.core_type<tc>, window_params = [{transform_indices = @transform_0, window_bounds = array<i64: 128, 8>}, {pipeline_mode = #tpu.pipeline_mode<synchronous>, transform_indices = @transform_1, window_bounds = array<i64: 8, 128>}, {transform_indices = @transform_2, window_bounds = array<i64: 128, 128>}]} {
    %c0 = arith.constant 0 : index
    %c0_0 = arith.constant 0 : index
    %0 = vector.load %arg1[%c0, %c0_0] : memref<128x8xf32, #tpu.memory_space<vmem>>, vector<128x8xf32>
    %1 = arith.truncf %0 : vector<128x8xf32> to vector<128x8xbf16>
    %c0_1 = arith.constant 0 : index
    %c0_2 = arith.constant 0 : index
    %2 = vector.load %arg2[%c0_1, %c0_2] : memref<8x128xf32, #tpu.memory_space<vmem>>, vector<8x128xf32>
    %3 = arith.truncf %2 : vector<8x128xf32> to vector<8x128xbf16>
    %cst = arith.constant dense<0.000000e+00> : vector<128x128xf32>
    %4 = tpu.matmul %1, %3, %cst {dimension_numbers = #tpu.dot_dimension_numbers<[1], [0], [0], [1], [0, 0, 1, 1], [], []>} : vector<128x8xbf16>, vector<8x128xbf16>, vector<128x128xf32> -> vector<128x128xf32>
    %c0_3 = arith.constant 0 : index
    %c0_4 = arith.constant 0 : index
    %5 = vector.load %arg3[%c0_3, %c0_4] : memref<128x128xf32, #tpu.memory_space<vmem>>, vector<128x128xf32>
    tpu.vector_store %arg3[%c0_3, %c0_4], %4 {strides = array<i32>} : memref<128x128xf32, #tpu.memory_space<vmem>>, vector<128x128xf32>,
    return
  }
  func.func @transform_0(%arg0: i32) -> (i32, i32) {
    %c0_i32 = arith.constant 0 : i32
    %c0_i32_0 = arith.constant 0 : i32
    return %arg0, %c0_i32 : i32, i32
  }
  func.func @transform_1(%arg0: i32) -> (i32, i32) {
    %c0_i32 = arith.constant 0 : i32
    %c0_i32_0 = arith.constant 0 : i32
    %c0_i32_1 = arith.constant 0 : i32
    return %c0_i32, %c0_i32_0 : i32, i32
  }
  func.func @transform_2(%arg0: i32) -> (i32, i32) {
    %c0_i32 = arith.constant 0 : i32
    %c0_i32_0 = arith.constant 0 : i32
    return %arg0, %c0_i32 : i32, i32
  }
}

module attributes {stable_mosaic.version = 11 : i64} {
  func.func @_gat_attn_kernel(%arg0: i32, %arg1: memref<128x64xf32, #tpu.memory_space<vmem>>, %arg2: memref<8x128xf32, #tpu.memory_space<vmem>>, %arg3: memref<128x8xf32, #tpu.memory_space<vmem>>, %arg4: memref<128x128xbf16, #tpu.memory_space<vmem>>, %arg5: memref<1x64xf32, #tpu.memory_space<vmem>>, %arg6: memref<128x64xf32, #tpu.memory_space<vmem>>) attributes {dimension_semantics = [#tpu.dimension_semantics<parallel>], iteration_bounds = array<i64: 1>, scalar_prefetch = 0 : i64, scratch_operands = 0 : i64, tpu.core_type = #tpu.core_type<tc>, window_params = [{pipeline_mode = #tpu.pipeline_mode<synchronous>, transform_indices = @transform_0, window_bounds = array<i64: 128, 64>}, {pipeline_mode = #tpu.pipeline_mode<synchronous>, transform_indices = @transform_1, window_bounds = array<i64: 8, 128>}, {transform_indices = @transform_2, window_bounds = array<i64: 128, 8>}, {transform_indices = @transform_3, window_bounds = array<i64: 128, 128>}, {pipeline_mode = #tpu.pipeline_mode<synchronous>, transform_indices = @transform_4, window_bounds = array<i64: 1, 64>}, {transform_indices = @transform_5, window_bounds = array<i64: 128, 64>}]} {
    %c0 = arith.constant 0 : index
    %c0_0 = arith.constant 0 : index
    %0 = vector.load %arg4[%c0, %c0_0] : memref<128x128xbf16, #tpu.memory_space<vmem>>, vector<128x128xbf16>
    %cst = arith.constant 0.000000e+00 : bf16
    %1 = vector.broadcast %cst : bf16 to vector<128x128xbf16>
    %2 = arith.cmpf ogt, %0, %1 : vector<128x128xbf16>
    %c0_1 = arith.constant 0 : index
    %c0_2 = arith.constant 0 : index
    %3 = vector.load %arg1[%c0_1, %c0_2] : memref<128x64xf32, #tpu.memory_space<vmem>>, vector<128x8xf32>
    %c0_3 = arith.constant 0 : index
    %c0_4 = arith.constant 0 : index
    %4 = vector.load %arg2[%c0_3, %c0_4] : memref<8x128xf32, #tpu.memory_space<vmem>>, vector<1x128xf32>
    %c0_5 = arith.constant 0 : index
    %c0_6 = arith.constant 0 : index
    %5 = vector.load %arg3[%c0_5, %c0_6] : memref<128x8xf32, #tpu.memory_space<vmem>>, vector<128x1xf32>
    %6 = vector.broadcast %5 : vector<128x1xf32> to vector<128x128xf32>
    %7 = vector.broadcast %4 : vector<1x128xf32> to vector<128x128xf32>
    %8 = arith.addf %6, %7 : vector<128x128xf32>
    %cst_7 = arith.constant 0.000000e+00 : f32
    %9 = vector.broadcast %cst_7 : f32 to vector<128x128xf32>
    %10 = arith.cmpf ogt, %8, %9 : vector<128x128xf32>
    %cst_8 = arith.constant 2.000000e-01 : f32
    %11 = vector.broadcast %cst_8 : f32 to vector<128x128xf32>
    %12 = arith.mulf %11, %8 : vector<128x128xf32>
    %13 = arith.select %10, %8, %12 : vector<128x128xi1>, vector<128x128xf32>
    %cst_9 = arith.constant -1.000000e+30 : f32
    %14 = vector.broadcast %cst_9 : f32 to vector<128x128xf32>
    %15 = arith.select %2, %13, %14 : vector<128x128xi1>, vector<128x128xf32>
    %cst_10 = arith.constant dense<0xFF800000> : vector<128xf32>
    %16 = vector.multi_reduction <maximumf>, %15, %cst_10 [1] : vector<128x128xf32> to vector<128xf32>
    %17 = vector.shape_cast %16 : vector<128xf32> to vector<128x1xf32>
    %18 = vector.broadcast %17 : vector<128x1xf32> to vector<128x128xf32>
    %19 = arith.subf %15, %18 : vector<128x128xf32>
    %20 = math.exp %19 : vector<128x128xf32>
    %cst_11 = arith.constant 0.000000e+00 : f32
    %21 = vector.broadcast %cst_11 : f32 to vector<128x128xf32>
    %22 = arith.select %2, %20, %21 : vector<128x128xi1>, vector<128x128xf32>
    %cst_12 = arith.constant dense<0.000000e+00> : vector<128xf32>
    %23 = vector.multi_reduction <add>, %22, %cst_12 [1] : vector<128x128xf32> to vector<128xf32>
    %24 = vector.shape_cast %23 : vector<128xf32> to vector<128x1xf32>
    %25 = tpu.reciprocal %24 {approx = true} : vector<128x1xf32> -> vector<128x1xf32>
    %26 = vector.broadcast %25 : vector<128x1xf32> to vector<128x128xf32>
    %27 = arith.mulf %22, %26 : vector<128x128xf32>
    %28 = arith.truncf %27 : vector<128x128xf32> to vector<128x128xbf16>
    %29 = arith.truncf %3 : vector<128x8xf32> to vector<128x8xbf16>
    %cst_13 = arith.constant dense<0.000000e+00> : vector<128x8xf32>
    %30 = tpu.matmul %28, %29, %cst_13 {dimension_numbers = #tpu.dot_dimension_numbers<[1], [0], [0], [1], [0, 0, 1, 1], [], []>} : vector<128x128xbf16>, vector<128x8xbf16>, vector<128x8xf32> -> vector<128x8xf32>
    %c0_14 = arith.constant 0 : index
    %c8 = arith.constant 8 : index
    %31 = vector.load %arg1[%c0_14, %c8] : memref<128x64xf32, #tpu.memory_space<vmem>>, vector<128x8xf32>
    %c1 = arith.constant 1 : index
    %c0_15 = arith.constant 0 : index
    %32 = vector.load %arg2[%c1, %c0_15] : memref<8x128xf32, #tpu.memory_space<vmem>>, vector<1x128xf32>
    %c0_16 = arith.constant 0 : index
    %c1_17 = arith.constant 1 : index
    %33 = vector.load %arg3[%c0_16, %c1_17] : memref<128x8xf32, #tpu.memory_space<vmem>>, vector<128x1xf32>
    %34 = vector.broadcast %33 : vector<128x1xf32> to vector<128x128xf32>
    %35 = vector.broadcast %32 : vector<1x128xf32> to vector<128x128xf32>
    %36 = arith.addf %34, %35 : vector<128x128xf32>
    %cst_18 = arith.constant 0.000000e+00 : f32
    %37 = vector.broadcast %cst_18 : f32 to vector<128x128xf32>
    %38 = arith.cmpf ogt, %36, %37 : vector<128x128xf32>
    %cst_19 = arith.constant 2.000000e-01 : f32
    %39 = vector.broadcast %cst_19 : f32 to vector<128x128xf32>
    %40 = arith.mulf %39, %36 : vector<128x128xf32>
    %41 = arith.select %38, %36, %40 : vector<128x128xi1>, vector<128x128xf32>
    %cst_20 = arith.constant -1.000000e+30 : f32
    %42 = vector.broadcast %cst_20 : f32 to vector<128x128xf32>
    %43 = arith.select %2, %41, %42 : vector<128x128xi1>, vector<128x128xf32>
    %cst_21 = arith.constant dense<0xFF800000> : vector<128xf32>
    %44 = vector.multi_reduction <maximumf>, %43, %cst_21 [1] : vector<128x128xf32> to vector<128xf32>
    %45 = vector.shape_cast %44 : vector<128xf32> to vector<128x1xf32>
    %46 = vector.broadcast %45 : vector<128x1xf32> to vector<128x128xf32>
    %47 = arith.subf %43, %46 : vector<128x128xf32>
    %48 = math.exp %47 : vector<128x128xf32>
    %cst_22 = arith.constant 0.000000e+00 : f32
    %49 = vector.broadcast %cst_22 : f32 to vector<128x128xf32>
    %50 = arith.select %2, %48, %49 : vector<128x128xi1>, vector<128x128xf32>
    %cst_23 = arith.constant dense<0.000000e+00> : vector<128xf32>
    %51 = vector.multi_reduction <add>, %50, %cst_23 [1] : vector<128x128xf32> to vector<128xf32>
    %52 = vector.shape_cast %51 : vector<128xf32> to vector<128x1xf32>
    %53 = tpu.reciprocal %52 {approx = true} : vector<128x1xf32> -> vector<128x1xf32>
    %54 = vector.broadcast %53 : vector<128x1xf32> to vector<128x128xf32>
    %55 = arith.mulf %50, %54 : vector<128x128xf32>
    %56 = arith.truncf %55 : vector<128x128xf32> to vector<128x128xbf16>
    %57 = arith.truncf %31 : vector<128x8xf32> to vector<128x8xbf16>
    %cst_24 = arith.constant dense<0.000000e+00> : vector<128x8xf32>
    %58 = tpu.matmul %56, %57, %cst_24 {dimension_numbers = #tpu.dot_dimension_numbers<[1], [0], [0], [1], [0, 0, 1, 1], [], []>} : vector<128x128xbf16>, vector<128x8xbf16>, vector<128x8xf32> -> vector<128x8xf32>
    %c0_25 = arith.constant 0 : index
    %c16 = arith.constant 16 : index
    %59 = vector.load %arg1[%c0_25, %c16] : memref<128x64xf32, #tpu.memory_space<vmem>>, vector<128x8xf32>
    %c2 = arith.constant 2 : index
    %c0_26 = arith.constant 0 : index
    %60 = vector.load %arg2[%c2, %c0_26] : memref<8x128xf32, #tpu.memory_space<vmem>>, vector<1x128xf32>
    %c0_27 = arith.constant 0 : index
    %c2_28 = arith.constant 2 : index
    %61 = vector.load %arg3[%c0_27, %c2_28] : memref<128x8xf32, #tpu.memory_space<vmem>>, vector<128x1xf32>
    %62 = vector.broadcast %61 : vector<128x1xf32> to vector<128x128xf32>
    %63 = vector.broadcast %60 : vector<1x128xf32> to vector<128x128xf32>
    %64 = arith.addf %62, %63 : vector<128x128xf32>
    %cst_29 = arith.constant 0.000000e+00 : f32
    %65 = vector.broadcast %cst_29 : f32 to vector<128x128xf32>
    %66 = arith.cmpf ogt, %64, %65 : vector<128x128xf32>
    %cst_30 = arith.constant 2.000000e-01 : f32
    %67 = vector.broadcast %cst_30 : f32 to vector<128x128xf32>
    %68 = arith.mulf %67, %64 : vector<128x128xf32>
    %69 = arith.select %66, %64, %68 : vector<128x128xi1>, vector<128x128xf32>
    %cst_31 = arith.constant -1.000000e+30 : f32
    %70 = vector.broadcast %cst_31 : f32 to vector<128x128xf32>
    %71 = arith.select %2, %69, %70 : vector<128x128xi1>, vector<128x128xf32>
    %cst_32 = arith.constant dense<0xFF800000> : vector<128xf32>
    %72 = vector.multi_reduction <maximumf>, %71, %cst_32 [1] : vector<128x128xf32> to vector<128xf32>
    %73 = vector.shape_cast %72 : vector<128xf32> to vector<128x1xf32>
    %74 = vector.broadcast %73 : vector<128x1xf32> to vector<128x128xf32>
    %75 = arith.subf %71, %74 : vector<128x128xf32>
    %76 = math.exp %75 : vector<128x128xf32>
    %cst_33 = arith.constant 0.000000e+00 : f32
    %77 = vector.broadcast %cst_33 : f32 to vector<128x128xf32>
    %78 = arith.select %2, %76, %77 : vector<128x128xi1>, vector<128x128xf32>
    %cst_34 = arith.constant dense<0.000000e+00> : vector<128xf32>
    %79 = vector.multi_reduction <add>, %78, %cst_34 [1] : vector<128x128xf32> to vector<128xf32>
    %80 = vector.shape_cast %79 : vector<128xf32> to vector<128x1xf32>
    %81 = tpu.reciprocal %80 {approx = true} : vector<128x1xf32> -> vector<128x1xf32>
    %82 = vector.broadcast %81 : vector<128x1xf32> to vector<128x128xf32>
    %83 = arith.mulf %78, %82 : vector<128x128xf32>
    %84 = arith.truncf %83 : vector<128x128xf32> to vector<128x128xbf16>
    %85 = arith.truncf %59 : vector<128x8xf32> to vector<128x8xbf16>
    %cst_35 = arith.constant dense<0.000000e+00> : vector<128x8xf32>
    %86 = tpu.matmul %84, %85, %cst_35 {dimension_numbers = #tpu.dot_dimension_numbers<[1], [0], [0], [1], [0, 0, 1, 1], [], []>} : vector<128x128xbf16>, vector<128x8xbf16>, vector<128x8xf32> -> vector<128x8xf32>
    %c0_36 = arith.constant 0 : index
    %c24 = arith.constant 24 : index
    %87 = vector.load %arg1[%c0_36, %c24] : memref<128x64xf32, #tpu.memory_space<vmem>>, vector<128x8xf32>
    %c3 = arith.constant 3 : index
    %c0_37 = arith.constant 0 : index
    %88 = vector.load %arg2[%c3, %c0_37] : memref<8x128xf32, #tpu.memory_space<vmem>>, vector<1x128xf32>
    %c0_38 = arith.constant 0 : index
    %c3_39 = arith.constant 3 : index
    %89 = vector.load %arg3[%c0_38, %c3_39] : memref<128x8xf32, #tpu.memory_space<vmem>>, vector<128x1xf32>
    %90 = vector.broadcast %89 : vector<128x1xf32> to vector<128x128xf32>
    %91 = vector.broadcast %88 : vector<1x128xf32> to vector<128x128xf32>
    %92 = arith.addf %90, %91 : vector<128x128xf32>
    %cst_40 = arith.constant 0.000000e+00 : f32
    %93 = vector.broadcast %cst_40 : f32 to vector<128x128xf32>
    %94 = arith.cmpf ogt, %92, %93 : vector<128x128xf32>
    %cst_41 = arith.constant 2.000000e-01 : f32
    %95 = vector.broadcast %cst_41 : f32 to vector<128x128xf32>
    %96 = arith.mulf %95, %92 : vector<128x128xf32>
    %97 = arith.select %94, %92, %96 : vector<128x128xi1>, vector<128x128xf32>
    %cst_42 = arith.constant -1.000000e+30 : f32
    %98 = vector.broadcast %cst_42 : f32 to vector<128x128xf32>
    %99 = arith.select %2, %97, %98 : vector<128x128xi1>, vector<128x128xf32>
    %cst_43 = arith.constant dense<0xFF800000> : vector<128xf32>
    %100 = vector.multi_reduction <maximumf>, %99, %cst_43 [1] : vector<128x128xf32> to vector<128xf32>
    %101 = vector.shape_cast %100 : vector<128xf32> to vector<128x1xf32>
    %102 = vector.broadcast %101 : vector<128x1xf32> to vector<128x128xf32>
    %103 = arith.subf %99, %102 : vector<128x128xf32>
    %104 = math.exp %103 : vector<128x128xf32>
    %cst_44 = arith.constant 0.000000e+00 : f32
    %105 = vector.broadcast %cst_44 : f32 to vector<128x128xf32>
    %106 = arith.select %2, %104, %105 : vector<128x128xi1>, vector<128x128xf32>
    %cst_45 = arith.constant dense<0.000000e+00> : vector<128xf32>
    %107 = vector.multi_reduction <add>, %106, %cst_45 [1] : vector<128x128xf32> to vector<128xf32>
    %108 = vector.shape_cast %107 : vector<128xf32> to vector<128x1xf32>
    %109 = tpu.reciprocal %108 {approx = true} : vector<128x1xf32> -> vector<128x1xf32>
    %110 = vector.broadcast %109 : vector<128x1xf32> to vector<128x128xf32>
    %111 = arith.mulf %106, %110 : vector<128x128xf32>
    %112 = arith.truncf %111 : vector<128x128xf32> to vector<128x128xbf16>
    %113 = arith.truncf %87 : vector<128x8xf32> to vector<128x8xbf16>
    %cst_46 = arith.constant dense<0.000000e+00> : vector<128x8xf32>
    %114 = tpu.matmul %112, %113, %cst_46 {dimension_numbers = #tpu.dot_dimension_numbers<[1], [0], [0], [1], [0, 0, 1, 1], [], []>} : vector<128x128xbf16>, vector<128x8xbf16>, vector<128x8xf32> -> vector<128x8xf32>
    %c0_47 = arith.constant 0 : index
    %c32 = arith.constant 32 : index
    %115 = vector.load %arg1[%c0_47, %c32] : memref<128x64xf32, #tpu.memory_space<vmem>>, vector<128x8xf32>
    %c4 = arith.constant 4 : index
    %c0_48 = arith.constant 0 : index
    %116 = vector.load %arg2[%c4, %c0_48] : memref<8x128xf32, #tpu.memory_space<vmem>>, vector<1x128xf32>
    %c0_49 = arith.constant 0 : index
    %c4_50 = arith.constant 4 : index
    %117 = vector.load %arg3[%c0_49, %c4_50] : memref<128x8xf32, #tpu.memory_space<vmem>>, vector<128x1xf32>
    %118 = vector.broadcast %117 : vector<128x1xf32> to vector<128x128xf32>
    %119 = vector.broadcast %116 : vector<1x128xf32> to vector<128x128xf32>
    %120 = arith.addf %118, %119 : vector<128x128xf32>
    %cst_51 = arith.constant 0.000000e+00 : f32
    %121 = vector.broadcast %cst_51 : f32 to vector<128x128xf32>
    %122 = arith.cmpf ogt, %120, %121 : vector<128x128xf32>
    %cst_52 = arith.constant 2.000000e-01 : f32
    %123 = vector.broadcast %cst_52 : f32 to vector<128x128xf32>
    %124 = arith.mulf %123, %120 : vector<128x128xf32>
    %125 = arith.select %122, %120, %124 : vector<128x128xi1>, vector<128x128xf32>
    %cst_53 = arith.constant -1.000000e+30 : f32
    %126 = vector.broadcast %cst_53 : f32 to vector<128x128xf32>
    %127 = arith.select %2, %125, %126 : vector<128x128xi1>, vector<128x128xf32>
    %cst_54 = arith.constant dense<0xFF800000> : vector<128xf32>
    %128 = vector.multi_reduction <maximumf>, %127, %cst_54 [1] : vector<128x128xf32> to vector<128xf32>
    %129 = vector.shape_cast %128 : vector<128xf32> to vector<128x1xf32>
    %130 = vector.broadcast %129 : vector<128x1xf32> to vector<128x128xf32>
    %131 = arith.subf %127, %130 : vector<128x128xf32>
    %132 = math.exp %131 : vector<128x128xf32>
    %cst_55 = arith.constant 0.000000e+00 : f32
    %133 = vector.broadcast %cst_55 : f32 to vector<128x128xf32>
    %134 = arith.select %2, %132, %133 : vector<128x128xi1>, vector<128x128xf32>
    %cst_56 = arith.constant dense<0.000000e+00> : vector<128xf32>
    %135 = vector.multi_reduction <add>, %134, %cst_56 [1] : vector<128x128xf32> to vector<128xf32>
    %136 = vector.shape_cast %135 : vector<128xf32> to vector<128x1xf32>
    %137 = tpu.reciprocal %136 {approx = true} : vector<128x1xf32> -> vector<128x1xf32>
    %138 = vector.broadcast %137 : vector<128x1xf32> to vector<128x128xf32>
    %139 = arith.mulf %134, %138 : vector<128x128xf32>
    %140 = arith.truncf %139 : vector<128x128xf32> to vector<128x128xbf16>
    %141 = arith.truncf %115 : vector<128x8xf32> to vector<128x8xbf16>
    %cst_57 = arith.constant dense<0.000000e+00> : vector<128x8xf32>
    %142 = tpu.matmul %140, %141, %cst_57 {dimension_numbers = #tpu.dot_dimension_numbers<[1], [0], [0], [1], [0, 0, 1, 1], [], []>} : vector<128x128xbf16>, vector<128x8xbf16>, vector<128x8xf32> -> vector<128x8xf32>
    %c0_58 = arith.constant 0 : index
    %c40 = arith.constant 40 : index
    %143 = vector.load %arg1[%c0_58, %c40] : memref<128x64xf32, #tpu.memory_space<vmem>>, vector<128x8xf32>
    %c5 = arith.constant 5 : index
    %c0_59 = arith.constant 0 : index
    %144 = vector.load %arg2[%c5, %c0_59] : memref<8x128xf32, #tpu.memory_space<vmem>>, vector<1x128xf32>
    %c0_60 = arith.constant 0 : index
    %c5_61 = arith.constant 5 : index
    %145 = vector.load %arg3[%c0_60, %c5_61] : memref<128x8xf32, #tpu.memory_space<vmem>>, vector<128x1xf32>
    %146 = vector.broadcast %145 : vector<128x1xf32> to vector<128x128xf32>
    %147 = vector.broadcast %144 : vector<1x128xf32> to vector<128x128xf32>
    %148 = arith.addf %146, %147 : vector<128x128xf32>
    %cst_62 = arith.constant 0.000000e+00 : f32
    %149 = vector.broadcast %cst_62 : f32 to vector<128x128xf32>
    %150 = arith.cmpf ogt, %148, %149 : vector<128x128xf32>
    %cst_63 = arith.constant 2.000000e-01 : f32
    %151 = vector.broadcast %cst_63 : f32 to vector<128x128xf32>
    %152 = arith.mulf %151, %148 : vector<128x128xf32>
    %153 = arith.select %150, %148, %152 : vector<128x128xi1>, vector<128x128xf32>
    %cst_64 = arith.constant -1.000000e+30 : f32
    %154 = vector.broadcast %cst_64 : f32 to vector<128x128xf32>
    %155 = arith.select %2, %153, %154 : vector<128x128xi1>, vector<128x128xf32>
    %cst_65 = arith.constant dense<0xFF800000> : vector<128xf32>
    %156 = vector.multi_reduction <maximumf>, %155, %cst_65 [1] : vector<128x128xf32> to vector<128xf32>
    %157 = vector.shape_cast %156 : vector<128xf32> to vector<128x1xf32>
    %158 = vector.broadcast %157 : vector<128x1xf32> to vector<128x128xf32>
    %159 = arith.subf %155, %158 : vector<128x128xf32>
    %160 = math.exp %159 : vector<128x128xf32>
    %cst_66 = arith.constant 0.000000e+00 : f32
    %161 = vector.broadcast %cst_66 : f32 to vector<128x128xf32>
    %162 = arith.select %2, %160, %161 : vector<128x128xi1>, vector<128x128xf32>
    %cst_67 = arith.constant dense<0.000000e+00> : vector<128xf32>
    %163 = vector.multi_reduction <add>, %162, %cst_67 [1] : vector<128x128xf32> to vector<128xf32>
    %164 = vector.shape_cast %163 : vector<128xf32> to vector<128x1xf32>
    %165 = tpu.reciprocal %164 {approx = true} : vector<128x1xf32> -> vector<128x1xf32>
    %166 = vector.broadcast %165 : vector<128x1xf32> to vector<128x128xf32>
    %167 = arith.mulf %162, %166 : vector<128x128xf32>
    %168 = arith.truncf %167 : vector<128x128xf32> to vector<128x128xbf16>
    %169 = arith.truncf %143 : vector<128x8xf32> to vector<128x8xbf16>
    %cst_68 = arith.constant dense<0.000000e+00> : vector<128x8xf32>
    %170 = tpu.matmul %168, %169, %cst_68 {dimension_numbers = #tpu.dot_dimension_numbers<[1], [0], [0], [1], [0, 0, 1, 1], [], []>} : vector<128x128xbf16>, vector<128x8xbf16>, vector<128x8xf32> -> vector<128x8xf32>
    %c0_69 = arith.constant 0 : index
    %c48 = arith.constant 48 : index
    %171 = vector.load %arg1[%c0_69, %c48] : memref<128x64xf32, #tpu.memory_space<vmem>>, vector<128x8xf32>
    %c6 = arith.constant 6 : index
    %c0_70 = arith.constant 0 : index
    %172 = vector.load %arg2[%c6, %c0_70] : memref<8x128xf32, #tpu.memory_space<vmem>>, vector<1x128xf32>
    %c0_71 = arith.constant 0 : index
    %c6_72 = arith.constant 6 : index
    %173 = vector.load %arg3[%c0_71, %c6_72] : memref<128x8xf32, #tpu.memory_space<vmem>>, vector<128x1xf32>
    %174 = vector.broadcast %173 : vector<128x1xf32> to vector<128x128xf32>
    %175 = vector.broadcast %172 : vector<1x128xf32> to vector<128x128xf32>
    %176 = arith.addf %174, %175 : vector<128x128xf32>
    %cst_73 = arith.constant 0.000000e+00 : f32
    %177 = vector.broadcast %cst_73 : f32 to vector<128x128xf32>
    %178 = arith.cmpf ogt, %176, %177 : vector<128x128xf32>
    %cst_74 = arith.constant 2.000000e-01 : f32
    %179 = vector.broadcast %cst_74 : f32 to vector<128x128xf32>
    %180 = arith.mulf %179, %176 : vector<128x128xf32>
    %181 = arith.select %178, %176, %180 : vector<128x128xi1>, vector<128x128xf32>
    %cst_75 = arith.constant -1.000000e+30 : f32
    %182 = vector.broadcast %cst_75 : f32 to vector<128x128xf32>
    %183 = arith.select %2, %181, %182 : vector<128x128xi1>, vector<128x128xf32>
    %cst_76 = arith.constant dense<0xFF800000> : vector<128xf32>
    %184 = vector.multi_reduction <maximumf>, %183, %cst_76 [1] : vector<128x128xf32> to vector<128xf32>
    %185 = vector.shape_cast %184 : vector<128xf32> to vector<128x1xf32>
    %186 = vector.broadcast %185 : vector<128x1xf32> to vector<128x128xf32>
    %187 = arith.subf %183, %186 : vector<128x128xf32>
    %188 = math.exp %187 : vector<128x128xf32>
    %cst_77 = arith.constant 0.000000e+00 : f32
    %189 = vector.broadcast %cst_77 : f32 to vector<128x128xf32>
    %190 = arith.select %2, %188, %189 : vector<128x128xi1>, vector<128x128xf32>
    %cst_78 = arith.constant dense<0.000000e+00> : vector<128xf32>
    %191 = vector.multi_reduction <add>, %190, %cst_78 [1] : vector<128x128xf32> to vector<128xf32>
    %192 = vector.shape_cast %191 : vector<128xf32> to vector<128x1xf32>
    %193 = tpu.reciprocal %192 {approx = true} : vector<128x1xf32> -> vector<128x1xf32>
    %194 = vector.broadcast %193 : vector<128x1xf32> to vector<128x128xf32>
    %195 = arith.mulf %190, %194 : vector<128x128xf32>
    %196 = arith.truncf %195 : vector<128x128xf32> to vector<128x128xbf16>
    %197 = arith.truncf %171 : vector<128x8xf32> to vector<128x8xbf16>
    %cst_79 = arith.constant dense<0.000000e+00> : vector<128x8xf32>
    %198 = tpu.matmul %196, %197, %cst_79 {dimension_numbers = #tpu.dot_dimension_numbers<[1], [0], [0], [1], [0, 0, 1, 1], [], []>} : vector<128x128xbf16>, vector<128x8xbf16>, vector<128x8xf32> -> vector<128x8xf32>
    %c0_80 = arith.constant 0 : index
    %c56 = arith.constant 56 : index
    %199 = vector.load %arg1[%c0_80, %c56] : memref<128x64xf32, #tpu.memory_space<vmem>>, vector<128x8xf32>
    %c7 = arith.constant 7 : index
    %c0_81 = arith.constant 0 : index
    %200 = vector.load %arg2[%c7, %c0_81] : memref<8x128xf32, #tpu.memory_space<vmem>>, vector<1x128xf32>
    %c0_82 = arith.constant 0 : index
    %c7_83 = arith.constant 7 : index
    %201 = vector.load %arg3[%c0_82, %c7_83] : memref<128x8xf32, #tpu.memory_space<vmem>>, vector<128x1xf32>
    %202 = vector.broadcast %201 : vector<128x1xf32> to vector<128x128xf32>
    %203 = vector.broadcast %200 : vector<1x128xf32> to vector<128x128xf32>
    %204 = arith.addf %202, %203 : vector<128x128xf32>
    %cst_84 = arith.constant 0.000000e+00 : f32
    %205 = vector.broadcast %cst_84 : f32 to vector<128x128xf32>
    %206 = arith.cmpf ogt, %204, %205 : vector<128x128xf32>
    %cst_85 = arith.constant 2.000000e-01 : f32
    %207 = vector.broadcast %cst_85 : f32 to vector<128x128xf32>
    %208 = arith.mulf %207, %204 : vector<128x128xf32>
    %209 = arith.select %206, %204, %208 : vector<128x128xi1>, vector<128x128xf32>
    %cst_86 = arith.constant -1.000000e+30 : f32
    %210 = vector.broadcast %cst_86 : f32 to vector<128x128xf32>
    %211 = arith.select %2, %209, %210 : vector<128x128xi1>, vector<128x128xf32>
    %cst_87 = arith.constant dense<0xFF800000> : vector<128xf32>
    %212 = vector.multi_reduction <maximumf>, %211, %cst_87 [1] : vector<128x128xf32> to vector<128xf32>
    %213 = vector.shape_cast %212 : vector<128xf32> to vector<128x1xf32>
    %214 = vector.broadcast %213 : vector<128x1xf32> to vector<128x128xf32>
    %215 = arith.subf %211, %214 : vector<128x128xf32>
    %216 = math.exp %215 : vector<128x128xf32>
    %cst_88 = arith.constant 0.000000e+00 : f32
    %217 = vector.broadcast %cst_88 : f32 to vector<128x128xf32>
    %218 = arith.select %2, %216, %217 : vector<128x128xi1>, vector<128x128xf32>
    %cst_89 = arith.constant dense<0.000000e+00> : vector<128xf32>
    %219 = vector.multi_reduction <add>, %218, %cst_89 [1] : vector<128x128xf32> to vector<128xf32>
    %220 = vector.shape_cast %219 : vector<128xf32> to vector<128x1xf32>
    %221 = tpu.reciprocal %220 {approx = true} : vector<128x1xf32> -> vector<128x1xf32>
    %222 = vector.broadcast %221 : vector<128x1xf32> to vector<128x128xf32>
    %223 = arith.mulf %218, %222 : vector<128x128xf32>
    %224 = arith.truncf %223 : vector<128x128xf32> to vector<128x128xbf16>
    %225 = arith.truncf %199 : vector<128x8xf32> to vector<128x8xbf16>
    %cst_90 = arith.constant dense<0.000000e+00> : vector<128x8xf32>
    %226 = tpu.matmul %224, %225, %cst_90 {dimension_numbers = #tpu.dot_dimension_numbers<[1], [0], [0], [1], [0, 0, 1, 1], [], []>} : vector<128x128xbf16>, vector<128x8xbf16>, vector<128x8xf32> -> vector<128x8xf32>
    %227 = tpu.concatenate %30, %58, %86, %114, %142, %170, %198, %226 in 1 : vector<128x8xf32>, vector<128x8xf32>, vector<128x8xf32>, vector<128x8xf32>, vector<128x8xf32>, vector<128x8xf32>, vector<128x8xf32>, vector<128x8xf32> -> vector<128x64xf32>
    %c0_91 = arith.constant 0 : index
    %c0_92 = arith.constant 0 : index
    %228 = vector.load %arg5[%c0_91, %c0_92] : memref<1x64xf32, #tpu.memory_space<vmem>>, vector<1x64xf32>
    %229 = vector.broadcast %228 : vector<1x64xf32> to vector<128x64xf32>
    %230 = arith.addf %227, %229 : vector<128x64xf32>
    %cst_93 = arith.constant 0.000000e+00 : f32
    %231 = vector.broadcast %cst_93 : f32 to vector<128x64xf32>
    %232 = arith.maximumf %230, %231 : vector<128x64xf32>
    %c0_94 = arith.constant 0 : index
    %c0_95 = arith.constant 0 : index
    %233 = vector.load %arg6[%c0_94, %c0_95] : memref<128x64xf32, #tpu.memory_space<vmem>>, vector<128x64xf32>
    tpu.vector_store %arg6[%c0_94, %c0_95], %232 {strides = array<i32>} : memref<128x64xf32, #tpu.memory_space<vmem>>, vector<128x64xf32>,
    return
  }
  func.func @transform_0(%arg0: i32) -> (i32, i32) {
    %c0_i32 = arith.constant 0 : i32
    %c0_i32_0 = arith.constant 0 : i32
    %c0_i32_1 = arith.constant 0 : i32
    return %c0_i32, %c0_i32_0 : i32, i32
  }
  func.func @transform_1(%arg0: i32) -> (i32, i32) {
    %c0_i32 = arith.constant 0 : i32
    %c0_i32_0 = arith.constant 0 : i32
    %c0_i32_1 = arith.constant 0 : i32
    return %c0_i32, %c0_i32_0 : i32, i32
  }
  func.func @transform_2(%arg0: i32) -> (i32, i32) {
    %c0_i32 = arith.constant 0 : i32
    %c0_i32_0 = arith.constant 0 : i32
    return %arg0, %c0_i32 : i32, i32
  }
  func.func @transform_3(%arg0: i32) -> (i32, i32) {
    %c0_i32 = arith.constant 0 : i32
    %c0_i32_0 = arith.constant 0 : i32
    return %arg0, %c0_i32 : i32, i32
  }
  func.func @transform_4(%arg0: i32) -> (i32, i32) {
    %c0_i32 = arith.constant 0 : i32
    %c0_i32_0 = arith.constant 0 : i32
    %c0_i32_1 = arith.constant 0 : i32
    return %c0_i32, %c0_i32_0 : i32, i32
  }
  func.func @transform_5(%arg0: i32) -> (i32, i32) {
    %c0_i32 = arith.constant 0 : i32
    %c0_i32_0 = arith.constant 0 : i32
    return %arg0, %c0_i32 : i32, i32
  }
}

module attributes {stable_mosaic.version = 11 : i64} {
  func.func @_proj_kernel(%arg0: i32, %arg1: memref<128x64xf32, #tpu.memory_space<vmem>>, %arg2: memref<64x128xf32, #tpu.memory_space<vmem>>, %arg3: memref<128x128xf32, #tpu.memory_space<vmem>>) attributes {dimension_semantics = [#tpu.dimension_semantics<parallel>], iteration_bounds = array<i64: 1>, scalar_prefetch = 0 : i64, scratch_operands = 0 : i64, tpu.core_type = #tpu.core_type<tc>, window_params = [{transform_indices = @transform_0, window_bounds = array<i64: 128, 64>}, {pipeline_mode = #tpu.pipeline_mode<synchronous>, transform_indices = @transform_1, window_bounds = array<i64: 64, 128>}, {transform_indices = @transform_2, window_bounds = array<i64: 128, 128>}]} {
    %c0 = arith.constant 0 : index
    %c0_0 = arith.constant 0 : index
    %0 = vector.load %arg1[%c0, %c0_0] : memref<128x64xf32, #tpu.memory_space<vmem>>, vector<128x64xf32>
    %1 = arith.truncf %0 : vector<128x64xf32> to vector<128x64xbf16>
    %c0_1 = arith.constant 0 : index
    %c0_2 = arith.constant 0 : index
    %2 = vector.load %arg2[%c0_1, %c0_2] : memref<64x128xf32, #tpu.memory_space<vmem>>, vector<64x128xf32>
    %3 = arith.truncf %2 : vector<64x128xf32> to vector<64x128xbf16>
    %cst = arith.constant dense<0.000000e+00> : vector<128x128xf32>
    %4 = tpu.matmul %1, %3, %cst {dimension_numbers = #tpu.dot_dimension_numbers<[1], [0], [0], [1], [0, 0, 1, 1], [], []>} : vector<128x64xbf16>, vector<64x128xbf16>, vector<128x128xf32> -> vector<128x128xf32>
    %c0_3 = arith.constant 0 : index
    %c0_4 = arith.constant 0 : index
    %5 = vector.load %arg3[%c0_3, %c0_4] : memref<128x128xf32, #tpu.memory_space<vmem>>, vector<128x128xf32>
    tpu.vector_store %arg3[%c0_3, %c0_4], %4 {strides = array<i32>} : memref<128x128xf32, #tpu.memory_space<vmem>>, vector<128x128xf32>,
    return
  }
  func.func @transform_0(%arg0: i32) -> (i32, i32) {
    %c0_i32 = arith.constant 0 : i32
    %c0_i32_0 = arith.constant 0 : i32
    return %arg0, %c0_i32 : i32, i32
  }
  func.func @transform_1(%arg0: i32) -> (i32, i32) {
    %c0_i32 = arith.constant 0 : i32
    %c0_i32_0 = arith.constant 0 : i32
    %c0_i32_1 = arith.constant 0 : i32
    return %c0_i32, %c0_i32_0 : i32, i32
  }
  func.func @transform_2(%arg0: i32) -> (i32, i32) {
    %c0_i32 = arith.constant 0 : i32
    %c0_i32_0 = arith.constant 0 : i32
    return %arg0, %c0_i32 : i32, i32
  }
}

module attributes {stable_mosaic.version = 11 : i64} {
  func.func @_gat_attn_kernel(%arg0: i32, %arg1: memref<128x4xf32, #tpu.memory_space<vmem>>, %arg2: memref<1x128xf32, #tpu.memory_space<vmem>>, %arg3: memref<128x1xf32, #tpu.memory_space<vmem>>, %arg4: memref<128x128xbf16, #tpu.memory_space<vmem>>, %arg5: memref<1x4xf32, #tpu.memory_space<vmem>>, %arg6: memref<128x4xf32, #tpu.memory_space<vmem>>) attributes {dimension_semantics = [#tpu.dimension_semantics<parallel>], iteration_bounds = array<i64: 1>, scalar_prefetch = 0 : i64, scratch_operands = 0 : i64, tpu.core_type = #tpu.core_type<tc>, window_params = [{pipeline_mode = #tpu.pipeline_mode<synchronous>, transform_indices = @transform_0, window_bounds = array<i64: 128, 4>}, {pipeline_mode = #tpu.pipeline_mode<synchronous>, transform_indices = @transform_1, window_bounds = array<i64: 1, 128>}, {transform_indices = @transform_2, window_bounds = array<i64: 128, 1>}, {transform_indices = @transform_3, window_bounds = array<i64: 128, 128>}, {pipeline_mode = #tpu.pipeline_mode<synchronous>, transform_indices = @transform_4, window_bounds = array<i64: 1, 4>}, {transform_indices = @transform_5, window_bounds = array<i64: 128, 4>}]} {
    %c0 = arith.constant 0 : index
    %c0_0 = arith.constant 0 : index
    %0 = vector.load %arg4[%c0, %c0_0] : memref<128x128xbf16, #tpu.memory_space<vmem>>, vector<128x128xbf16>
    %cst = arith.constant 0.000000e+00 : bf16
    %1 = vector.broadcast %cst : bf16 to vector<128x128xbf16>
    %2 = arith.cmpf ogt, %0, %1 : vector<128x128xbf16>
    %c0_1 = arith.constant 0 : index
    %c0_2 = arith.constant 0 : index
    %3 = vector.load %arg1[%c0_1, %c0_2] : memref<128x4xf32, #tpu.memory_space<vmem>>, vector<128x4xf32>
    %c0_3 = arith.constant 0 : index
    %c0_4 = arith.constant 0 : index
    %4 = vector.load %arg2[%c0_3, %c0_4] : memref<1x128xf32, #tpu.memory_space<vmem>>, vector<1x128xf32>
    %c0_5 = arith.constant 0 : index
    %c0_6 = arith.constant 0 : index
    %5 = vector.load %arg3[%c0_5, %c0_6] : memref<128x1xf32, #tpu.memory_space<vmem>>, vector<128x1xf32>
    %6 = vector.broadcast %5 : vector<128x1xf32> to vector<128x128xf32>
    %7 = vector.broadcast %4 : vector<1x128xf32> to vector<128x128xf32>
    %8 = arith.addf %6, %7 : vector<128x128xf32>
    %cst_7 = arith.constant 0.000000e+00 : f32
    %9 = vector.broadcast %cst_7 : f32 to vector<128x128xf32>
    %10 = arith.cmpf ogt, %8, %9 : vector<128x128xf32>
    %cst_8 = arith.constant 2.000000e-01 : f32
    %11 = vector.broadcast %cst_8 : f32 to vector<128x128xf32>
    %12 = arith.mulf %11, %8 : vector<128x128xf32>
    %13 = arith.select %10, %8, %12 : vector<128x128xi1>, vector<128x128xf32>
    %cst_9 = arith.constant -1.000000e+30 : f32
    %14 = vector.broadcast %cst_9 : f32 to vector<128x128xf32>
    %15 = arith.select %2, %13, %14 : vector<128x128xi1>, vector<128x128xf32>
    %cst_10 = arith.constant dense<0xFF800000> : vector<128xf32>
    %16 = vector.multi_reduction <maximumf>, %15, %cst_10 [1] : vector<128x128xf32> to vector<128xf32>
    %17 = vector.shape_cast %16 : vector<128xf32> to vector<128x1xf32>
    %18 = vector.broadcast %17 : vector<128x1xf32> to vector<128x128xf32>
    %19 = arith.subf %15, %18 : vector<128x128xf32>
    %20 = math.exp %19 : vector<128x128xf32>
    %cst_11 = arith.constant 0.000000e+00 : f32
    %21 = vector.broadcast %cst_11 : f32 to vector<128x128xf32>
    %22 = arith.select %2, %20, %21 : vector<128x128xi1>, vector<128x128xf32>
    %cst_12 = arith.constant dense<0.000000e+00> : vector<128xf32>
    %23 = vector.multi_reduction <add>, %22, %cst_12 [1] : vector<128x128xf32> to vector<128xf32>
    %24 = vector.shape_cast %23 : vector<128xf32> to vector<128x1xf32>
    %25 = tpu.reciprocal %24 {approx = true} : vector<128x1xf32> -> vector<128x1xf32>
    %26 = vector.broadcast %25 : vector<128x1xf32> to vector<128x128xf32>
    %27 = arith.mulf %22, %26 : vector<128x128xf32>
    %28 = arith.truncf %27 : vector<128x128xf32> to vector<128x128xbf16>
    %29 = arith.truncf %3 : vector<128x4xf32> to vector<128x4xbf16>
    %cst_13 = arith.constant dense<0.000000e+00> : vector<128x4xf32>
    %30 = tpu.matmul %28, %29, %cst_13 {dimension_numbers = #tpu.dot_dimension_numbers<[1], [0], [0], [1], [0, 0, 1, 1], [], []>} : vector<128x128xbf16>, vector<128x4xbf16>, vector<128x4xf32> -> vector<128x4xf32>
    %cst_14 = arith.constant 1.000000e+00 : f32
    %31 = vector.broadcast %cst_14 : f32 to vector<128x4xf32>
    %32 = arith.mulf %30, %31 : vector<128x4xf32>
    %c0_15 = arith.constant 0 : index
    %c0_16 = arith.constant 0 : index
    %33 = vector.load %arg5[%c0_15, %c0_16] : memref<1x4xf32, #tpu.memory_space<vmem>>, vector<1x4xf32>
    %34 = vector.broadcast %33 : vector<1x4xf32> to vector<128x4xf32>
    %35 = arith.addf %32, %34 : vector<128x4xf32>
    %c0_17 = arith.constant 0 : index
    %c0_18 = arith.constant 0 : index
    %36 = vector.load %arg6[%c0_17, %c0_18] : memref<128x4xf32, #tpu.memory_space<vmem>>, vector<128x4xf32>
    tpu.vector_store %arg6[%c0_17, %c0_18], %35 {strides = array<i32>} : memref<128x4xf32, #tpu.memory_space<vmem>>, vector<128x4xf32>,
    return
  }
  func.func @transform_0(%arg0: i32) -> (i32, i32) {
    %c0_i32 = arith.constant 0 : i32
    %c0_i32_0 = arith.constant 0 : i32
    %c0_i32_1 = arith.constant 0 : i32
    return %c0_i32, %c0_i32_0 : i32, i32
  }
  func.func @transform_1(%arg0: i32) -> (i32, i32) {
    %c0_i32 = arith.constant 0 : i32
    %c0_i32_0 = arith.constant 0 : i32
    %c0_i32_1 = arith.constant 0 : i32
    return %c0_i32, %c0_i32_0 : i32, i32
  }
  func.func @transform_2(%arg0: i32) -> (i32, i32) {
    %c0_i32 = arith.constant 0 : i32
    %c0_i32_0 = arith.constant 0 : i32
    return %arg0, %c0_i32 : i32, i32
  }
  func.func @transform_3(%arg0: i32) -> (i32, i32) {
    %c0_i32 = arith.constant 0 : i32
    %c0_i32_0 = arith.constant 0 : i32
    return %arg0, %c0_i32 : i32, i32
  }
  func.func @transform_4(%arg0: i32) -> (i32, i32) {
    %c0_i32 = arith.constant 0 : i32
    %c0_i32_0 = arith.constant 0 : i32
    %c0_i32_1 = arith.constant 0 : i32
    return %c0_i32, %c0_i32_0 : i32, i32
  }
  func.func @transform_5(%arg0: i32) -> (i32, i32) {
    %c0_i32 = arith.constant 0 : i32
    %c0_i32_0 = arith.constant 0 : i32
    return %arg0, %c0_i32 : i32, i32
  }
}

</mosaic_0001>

<llo_original>
// kernel: _forward_impl.4
$region0: #{_forward_impl.4}
  #allocation0 [shape = 'u32[]', space=smem, size = 0x4, offset = 0x4, fixed_abs, tag = 'smem constant byte address 0x4 - core index']
  #allocation1 [shape = 'u32[72,128]{1,0:T(1,128)}', space=vmem, size = 0x9000, scoped, tag = 'internal scratch']
  %s0 = inlined_call_operand.vmem [shape: f32[128,8], index: 0, kind: input, shape index: {}]
  %s1 = inlined_call_operand.vmem [shape: f32[8,128], index: 1, kind: input, shape index: {}]
  %s2 = inlined_call_operand.vmem [shape: f32[128,128], index: 2, kind: output, shape index: {}]
  %s3 = sld [smem:[#allocation0]]
  $region18: #{_forward_impl.4} parent=0
    _
  %s5 = ssub.s32 1, %s3
  %s6 = scalar_select 0, %s5, %s3
  // Predicated region
  $region2: #{_forward_impl.4} parent=0 // pred_check
    _
  $region3: #{_forward_impl.4} parent=0 // pred_check_branch
    %8 = sbr.rel (0) target = $region5
  $region4: #{_forward_impl.4} parent=0 // pred_region
    _
  $region5: #{_forward_impl.4} parent=0 // pred_fallthru
    _
  // Predicated region
  $region6: #{_forward_impl.4} parent=0 // pred_check
    _
  $region7: #{_forward_impl.4} parent=0 // pred_check_branch
    %10 = sbr.rel (0) target = $region9
  $region8: #{_forward_impl.4} parent=0 // pred_region
    _
  $region9: #{_forward_impl.4} parent=0 // pred_fallthru
    _
  %v12 = vld [vmem:[%s0] sm:$0xff]
  %v13 = vld [vmem:[%s0 + $0x8] sm:$0xff]
  %v14 = vld [vmem:[%s0 + $0x10] sm:$0xff]
  %v15 = vld [vmem:[%s0 + $0x18] sm:$0xff]
  %v16 = vld [vmem:[%s0 + $0x20] sm:$0xff]
  %v17 = vld [vmem:[%s0 + $0x28] sm:$0xff]
  %v18 = vld [vmem:[%s0 + $0x30] sm:$0xff]
  %v19 = vld [vmem:[%s0 + $0x38] sm:$0xff]
  %v20 = vld [vmem:[%s0 + $0x40] sm:$0xff]
  %v21 = vld [vmem:[%s0 + $0x48] sm:$0xff]
  %v22 = vld [vmem:[%s0 + $0x50] sm:$0xff]
  %v23 = vld [vmem:[%s0 + $0x58] sm:$0xff]
  %v24 = vld [vmem:[%s0 + $0x60] sm:$0xff]
  %v25 = vld [vmem:[%s0 + $0x68] sm:$0xff]
  %v26 = vld [vmem:[%s0 + $0x70] sm:$0xff]
  %v27 = vld [vmem:[%s0 + $0x78] sm:$0xff]
  %v28 = vpack.c.bf16 %v13, %v12
  %v29 = vpack.c.bf16 %v15, %v14
  %v30 = vpack.c.bf16 %v17, %v16
  %v31 = vpack.c.bf16 %v19, %v18
  %v32 = vpack.c.bf16 %v21, %v20
  %v33 = vpack.c.bf16 %v23, %v22
  %v34 = vpack.c.bf16 %v25, %v24
  %v35 = vpack.c.bf16 %v27, %v26
  %v36 = vld [vmem:[%s1] sm:$0xff]
  %v37 = vpack.c.bf16 %v36, %v36
  %vm38 = vcmask 64512
  %v40 = vsel %vm38, %v28, 0
  %v43 = vsel %vm38, %v29, 0
  %v46 = vsel %vm38, %v30, 0
  %v49 = vsel %vm38, %v31, 0
  %v52 = vsel %vm38, %v32, 0
  %v55 = vsel %vm38, %v33, 0
  %v58 = vsel %vm38, %v34, 0
  %v61 = vsel %vm38, %v35, 0
  %vm63 = vcmask 1043456
  %v65 = vsel %vm63, %v37, 0
  %67 = vmatpush.bf16.msra.mxu0 0
  %68 = vmatpush.bf16.msra.mxu0 0
  %69 = vmatpush.bf16.msra.mxu0 0
  %70 = vmatpush.bf16.msra.mxu0 0
  %71 = vmatpush.bf16.msra.mxu0 0
  %72 = vmatpush.bf16.msra.mxu0 0
  %73 = vmatpush.bf16.msra.mxu0 0
  %74 = vmatpush.bf16.msra.mxu0 %v65
  %75 = vmatmul.bf16.gmra.mxu0 %v40
  %v76 = vpop.f32.mrf.mxu0
  %v77 = vadd.f32 0.0, %v76
  %v78 = vpop.f32.mrf.mxu0
  %v79 = vadd.f32 0.0, %v78
  %80 = vmatmul.bf16.gmra.mxu0 %v43
  %v81 = vpop.f32.mrf.mxu0
  %v82 = vadd.f32 0.0, %v81
  %v83 = vpop.f32.mrf.mxu0
  %v84 = vadd.f32 0.0, %v83
  %85 = vmatmul.bf16.gmra.mxu0 %v46
  %v86 = vpop.f32.mrf.mxu0
  %v87 = vadd.f32 0.0, %v86
  %v88 = vpop.f32.mrf.mxu0
  %v89 = vadd.f32 0.0, %v88
  %90 = vmatmul.bf16.gmra.mxu0 %v49
  %v91 = vpop.f32.mrf.mxu0
  %v92 = vadd.f32 0.0, %v91
  %v93 = vpop.f32.mrf.mxu0
  %v94 = vadd.f32 0.0, %v93
  %95 = vmatmul.bf16.gmra.mxu0 %v52
  %v96 = vpop.f32.mrf.mxu0
  %v97 = vadd.f32 0.0, %v96
  %v98 = vpop.f32.mrf.mxu0
  %v99 = vadd.f32 0.0, %v98
  %100 = vmatmul.bf16.gmra.mxu0 %v55
  %v101 = vpop.f32.mrf.mxu0
  %v102 = vadd.f32 0.0, %v101
  %v103 = vpop.f32.mrf.mxu0
  %v104 = vadd.f32 0.0, %v103
  %105 = vmatmul.bf16.gmra.mxu0 %v58
  %v106 = vpop.f32.mrf.mxu0
  %v107 = vadd.f32 0.0, %v106
  %v108 = vpop.f32.mrf.mxu0
  %v109 = vadd.f32 0.0, %v108
  %110 = vmatmul.bf16.gmra.mxu0 %v61
  %v111 = vpop.f32.mrf.mxu0
  %v112 = vadd.f32 0.0, %v111
  %v113 = vpop.f32.mrf.mxu0
  %v114 = vadd.f32 0.0, %v113
  %115 = vdwg.mxu0
  %116 = vst [vmem:[%s2] sm:$0xff] %v77
  %117 = vst [vmem:[%s2 + $0x8] sm:$0xff] %v79
  %118 = vst [vmem:[%s2 + $0x10] sm:$0xff] %v82
  %119 = vst [vmem:[%s2 + $0x18] sm:$0xff] %v84
  %120 = vst [vmem:[%s2 + $0x20] sm:$0xff] %v87
  %121 = vst [vmem:[%s2 + $0x28] sm:$0xff] %v89
  %122 = vst [vmem:[%s2 + $0x30] sm:$0xff] %v92
  %123 = vst [vmem:[%s2 + $0x38] sm:$0xff] %v94
  %124 = vst [vmem:[%s2 + $0x40] sm:$0xff] %v97
  %125 = vst [vmem:[%s2 + $0x48] sm:$0xff] %v99
  %126 = vst [vmem:[%s2 + $0x50] sm:$0xff] %v102
  %127 = vst [vmem:[%s2 + $0x58] sm:$0xff] %v104
  %128 = vst [vmem:[%s2 + $0x60] sm:$0xff] %v107
  %129 = vst [vmem:[%s2 + $0x68] sm:$0xff] %v109
  %130 = vst [vmem:[%s2 + $0x70] sm:$0xff] %v112
  %131 = vst [vmem:[%s2 + $0x78] sm:$0xff] %v114
  // Predicated region
  $region10: #{_forward_impl.4} parent=0 // pred_check
    _
  $region11: #{_forward_impl.4} parent=0 // pred_check_branch
    %133 = sbr.rel (0) target = $region13
  $region12: #{_forward_impl.4} parent=0 // pred_region
    _
  $region13: #{_forward_impl.4} parent=0 // pred_fallthru
    _
  // Predicated region
  $region14: #{_forward_impl.4} parent=0 // pred_check
    _
  $region15: #{_forward_impl.4} parent=0 // pred_check_branch
    %135 = sbr.rel (0) target = $region17
  $region16: #{_forward_impl.4} parent=0 // pred_region
    _
  $region17: #{_forward_impl.4} parent=0 // pred_fallthru
    _

// kernel: _forward_impl.6
$region0: #{_forward_impl.6}
  #allocation0 [shape = 'u32[]', space=smem, size = 0x4, offset = 0x4, fixed_abs, tag = 'smem constant byte address 0x4 - core index']
  #allocation1 [shape = 'u32[72,128]{1,0:T(1,128)}', space=vmem, size = 0x9000, scoped, tag = 'internal scratch']
  %s0 = inlined_call_operand.vmem [shape: f32[128,64], index: 0, kind: input, shape index: {}]
  %s1 = inlined_call_operand.vmem [shape: f32[64,128], index: 1, kind: input, shape index: {}]
  %s2 = inlined_call_operand.vmem [shape: f32[128,128], index: 2, kind: output, shape index: {}]
  %s3 = sld [smem:[#allocation0]]
  $region18: #{_forward_impl.6} parent=0
    _
  %s5 = ssub.s32 1, %s3
  %s6 = scalar_select 0, %s5, %s3
  // Predicated region
  $region2: #{_forward_impl.6} parent=0 // pred_check
    _
  $region3: #{_forward_impl.6} parent=0 // pred_check_branch
    %8 = sbr.rel (0) target = $region5
  $region4: #{_forward_impl.6} parent=0 // pred_region
    _
  $region5: #{_forward_impl.6} parent=0 // pred_fallthru
    _
  // Predicated region
  $region6: #{_forward_impl.6} parent=0 // pred_check
    _
  $region7: #{_forward_impl.6} parent=0 // pred_check_branch
    %10 = sbr.rel (0) target = $region9
  $region8: #{_forward_impl.6} parent=0 // pred_region
    _
  $region9: #{_forward_impl.6} parent=0 // pred_fallthru
    _
  %v12 = vld [vmem:[%s0] sm:$0xff]
  %v13 = vld [vmem:[%s0 + $0x8] sm:$0xff]
  %v14 = vld [vmem:[%s0 + $0x10] sm:$0xff]
  %v15 = vld [vmem:[%s0 + $0x18] sm:$0xff]
  %v16 = vld [vmem:[%s0 + $0x20] sm:$0xff]
  %v17 = vld [vmem:[%s0 + $0x28] sm:$0xff]
  %v18 = vld [vmem:[%s0 + $0x30] sm:$0xff]
  %v19 = vld [vmem:[%s0 + $0x38] sm:$0xff]
  %v20 = vld [vmem:[%s0 + $0x40] sm:$0xff]
  %v21 = vld [vmem:[%s0 + $0x48] sm:$0xff]
  %v22 = vld [vmem:[%s0 + $0x50] sm:$0xff]
  %v23 = vld [vmem:[%s0 + $0x58] sm:$0xff]
  %v24 = vld [vmem:[%s0 + $0x60] sm:$0xff]
  %v25 = vld [vmem:[%s0 + $0x68] sm:$0xff]
  %v26 = vld [vmem:[%s0 + $0x70] sm:$0xff]
  %v27 = vld [vmem:[%s0 + $0x78] sm:$0xff]
  %v28 = vpack.c.bf16 %v13, %v12
  %v29 = vpack.c.bf16 %v15, %v14
  %v30 = vpack.c.bf16 %v17, %v16
  %v31 = vpack.c.bf16 %v19, %v18
  %v32 = vpack.c.bf16 %v21, %v20
  %v33 = vpack.c.bf16 %v23, %v22
  %v34 = vpack.c.bf16 %v25, %v24
  %v35 = vpack.c.bf16 %v27, %v26
  %v36 = vld [vmem:[%s1] sm:$0xff]
  %v37 = vld [vmem:[%s1 + $0x8] sm:$0xff]
  %v38 = vld [vmem:[%s1 + $0x10] sm:$0xff]
  %v39 = vld [vmem:[%s1 + $0x18] sm:$0xff]
  %v40 = vld [vmem:[%s1 + $0x20] sm:$0xff]
  %v41 = vld [vmem:[%s1 + $0x28] sm:$0xff]
  %v42 = vld [vmem:[%s1 + $0x30] sm:$0xff]
  %v43 = vld [vmem:[%s1 + $0x38] sm:$0xff]
  %v44 = vpack.c.bf16 %v37, %v36
  %v45 = vpack.c.bf16 %v39, %v38
  %v46 = vpack.c.bf16 %v41, %v40
  %v47 = vpack.c.bf16 %v43, %v42
  %vm48 = vcmask 523264
  %v50 = vsel %vm48, %v28, 0
  %v53 = vsel %vm48, %v29, 0
  %v56 = vsel %vm48, %v30, 0
  %v59 = vsel %vm48, %v31, 0
  %v62 = vsel %vm48, %v32, 0
  %v65 = vsel %vm48, %v33, 0
  %v68 = vsel %vm48, %v34, 0
  %v71 = vsel %vm48, %v35, 0
  %73 = vmatpush.bf16.msra.mxu0 0
  %74 = vmatpush.bf16.msra.mxu0 0
  %75 = vmatpush.bf16.msra.mxu0 0
  %76 = vmatpush.bf16.msra.mxu0 0
  %77 = vmatpush.bf16.msra.mxu0 %v47
  %78 = vmatpush.bf16.msra.mxu0 %v46
  %79 = vmatpush.bf16.msra.mxu0 %v45
  %80 = vmatpush.bf16.msra.mxu0 %v44
  %81 = vmatmul.bf16.gmra.mxu0 %v50
  %v82 = vpop.f32.mrf.mxu0
  %v83 = vadd.f32 0.0, %v82
  %v84 = vpop.f32.mrf.mxu0
  %v85 = vadd.f32 0.0, %v84
  %86 = vmatmul.bf16.gmra.mxu0 %v53
  %v87 = vpop.f32.mrf.mxu0
  %v88 = vadd.f32 0.0, %v87
  %v89 = vpop.f32.mrf.mxu0
  %v90 = vadd.f32 0.0, %v89
  %91 = vmatmul.bf16.gmra.mxu0 %v56
  %v92 = vpop.f32.mrf.mxu0
  %v93 = vadd.f32 0.0, %v92
  %v94 = vpop.f32.mrf.mxu0
  %v95 = vadd.f32 0.0, %v94
  %96 = vmatmul.bf16.gmra.mxu0 %v59
  %v97 = vpop.f32.mrf.mxu0
  %v98 = vadd.f32 0.0, %v97
  %v99 = vpop.f32.mrf.mxu0
  %v100 = vadd.f32 0.0, %v99
  %101 = vmatmul.bf16.gmra.mxu0 %v62
  %v102 = vpop.f32.mrf.mxu0
  %v103 = vadd.f32 0.0, %v102
  %v104 = vpop.f32.mrf.mxu0
  %v105 = vadd.f32 0.0, %v104
  %106 = vmatmul.bf16.gmra.mxu0 %v65
  %v107 = vpop.f32.mrf.mxu0
  %v108 = vadd.f32 0.0, %v107
  %v109 = vpop.f32.mrf.mxu0
  %v110 = vadd.f32 0.0, %v109
  %111 = vmatmul.bf16.gmra.mxu0 %v68
  %v112 = vpop.f32.mrf.mxu0
  %v113 = vadd.f32 0.0, %v112
  %v114 = vpop.f32.mrf.mxu0
  %v115 = vadd.f32 0.0, %v114
  %116 = vmatmul.bf16.gmra.mxu0 %v71
  %v117 = vpop.f32.mrf.mxu0
  %v118 = vadd.f32 0.0, %v117
  %v119 = vpop.f32.mrf.mxu0
  %v120 = vadd.f32 0.0, %v119
  %121 = vdwg.mxu0
  %122 = vst [vmem:[%s2] sm:$0xff] %v83
  %123 = vst [vmem:[%s2 + $0x8] sm:$0xff] %v85
  %124 = vst [vmem:[%s2 + $0x10] sm:$0xff] %v88
  %125 = vst [vmem:[%s2 + $0x18] sm:$0xff] %v90
  %126 = vst [vmem:[%s2 + $0x20] sm:$0xff] %v93
  %127 = vst [vmem:[%s2 + $0x28] sm:$0xff] %v95
  %128 = vst [vmem:[%s2 + $0x30] sm:$0xff] %v98
  %129 = vst [vmem:[%s2 + $0x38] sm:$0xff] %v100
  %130 = vst [vmem:[%s2 + $0x40] sm:$0xff] %v103
  %131 = vst [vmem:[%s2 + $0x48] sm:$0xff] %v105
  %132 = vst [vmem:[%s2 + $0x50] sm:$0xff] %v108
  %133 = vst [vmem:[%s2 + $0x58] sm:$0xff] %v110
  %134 = vst [vmem:[%s2 + $0x60] sm:$0xff] %v113
  %135 = vst [vmem:[%s2 + $0x68] sm:$0xff] %v115
  %136 = vst [vmem:[%s2 + $0x70] sm:$0xff] %v118
  %137 = vst [vmem:[%s2 + $0x78] sm:$0xff] %v120
  // Predicated region
  $region10: #{_forward_impl.6} parent=0 // pred_check
    _
  $region11: #{_forward_impl.6} parent=0 // pred_check_branch
    %139 = sbr.rel (0) target = $region13
  $region12: #{_forward_impl.6} parent=0 // pred_region
    _
  $region13: #{_forward_impl.6} parent=0 // pred_fallthru
    _
  // Predicated region
  $region14: #{_forward_impl.6} parent=0 // pred_check
    _
  $region15: #{_forward_impl.6} parent=0 // pred_check_branch
    %141 = sbr.rel (0) target = $region17
  $region16: #{_forward_impl.6} parent=0 // pred_region
    _
  $region17: #{_forward_impl.6} parent=0 // pred_fallthru
    _

// kernel: _forward_impl.7
$region0: #{_forward_impl.7}
  #allocation0 [shape = 'u32[]', space=smem, size = 0x4, offset = 0x4, fixed_abs, tag = 'smem constant byte address 0x4 - core index']
  #allocation1 [shape = 'u32[72,128]{1,0:T(1,128)}', space=vmem, size = 0x9000, scoped, tag = 'internal scratch']
  %s0 = inlined_call_operand.vmem [shape: f32[128,4], index: 0, kind: input, shape index: {}]
  %s1 = inlined_call_operand.vmem [shape: f32[1,128], index: 1, kind: input, shape index: {}]
  %s2 = inlined_call_operand.vmem [shape: f32[128,1], index: 2, kind: input, shape index: {}]
  %s3 = inlined_call_operand.vmem [shape: bf16[128,128], index: 3, kind: input, shape index: {}]
  %s4 = inlined_call_operand.vmem [shape: f32[1,4], index: 4, kind: input, shape index: {}]
  %s5 = inlined_call_operand.vmem [shape: f32[128,4], index: 5, kind: output, shape index: {}]
  %s6 = sld [smem:[#allocation0]]
  $region30: #{_forward_impl.7} parent=0
    _
  %s8 = ssub.s32 1, %s6
  %s9 = scalar_select 0, %s8, %s6
  // Predicated region
  $region2: #{_forward_impl.7} parent=0 // pred_check
    _
  $region3: #{_forward_impl.7} parent=0 // pred_check_branch
    %11 = sbr.rel (0) target = $region5
  $region4: #{_forward_impl.7} parent=0 // pred_region
    _
  $region5: #{_forward_impl.7} parent=0 // pred_fallthru
    _
  // Predicated region
  $region6: #{_forward_impl.7} parent=0 // pred_check
    _
  $region7: #{_forward_impl.7} parent=0 // pred_check_branch
    %13 = sbr.rel (0) target = $region9
  $region8: #{_forward_impl.7} parent=0 // pred_region
    _
  $region9: #{_forward_impl.7} parent=0 // pred_fallthru
    _
  // Predicated region
  $region10: #{_forward_impl.7} parent=0 // pred_check
    _
  $region11: #{_forward_impl.7} parent=0 // pred_check_branch
    %15 = sbr.rel (0) target = $region13
  $region12: #{_forward_impl.7} parent=0 // pred_region
    _
  $region13: #{_forward_impl.7} parent=0 // pred_fallthru
    _
  // Predicated region
  $region14: #{_forward_impl.7} parent=0 // pred_check
    _
  $region15: #{_forward_impl.7} parent=0 // pred_check_branch
    %17 = sbr.rel (0) target = $region17
  $region16: #{_forward_impl.7} parent=0 // pred_region
    _
  $region17: #{_forward_impl.7} parent=0 // pred_fallthru
    _
  // Predicated region
  $region18: #{_forward_impl.7} parent=0 // pred_check
    _
  $region19: #{_forward_impl.7} parent=0 // pred_check_branch
    %19 = sbr.rel (0) target = $region21
  $region20: #{_forward_impl.7} parent=0 // pred_region
    _
  $region21: #{_forward_impl.7} parent=0 // pred_fallthru
    _
  %v20 = vld [vmem:[%s3] sm:$0xf]
  %v21 = vld [vmem:[%s3 + $0x4] sm:$0xf]
  %v22 = vld [vmem:[%s3 + $0x8] sm:$0xf]
  %v23 = vld [vmem:[%s3 + $0xc] sm:$0xf]
  %v24 = vld [vmem:[%s3 + $0x10] sm:$0xf]
  %v25 = vld [vmem:[%s3 + $0x14] sm:$0xf]
  %v26 = vld [vmem:[%s3 + $0x18] sm:$0xf]
  %v27 = vld [vmem:[%s3 + $0x1c] sm:$0xf]
  %v28 = vld [vmem:[%s3 + $0x20] sm:$0xf]
  %v29 = vld [vmem:[%s3 + $0x24] sm:$0xf]
  %v30 = vld [vmem:[%s3 + $0x28] sm:$0xf]
  %v31 = vld [vmem:[%s3 + $0x2c] sm:$0xf]
  %v32 = vld [vmem:[%s3 + $0x30] sm:$0xf]
  %v33 = vld [vmem:[%s3 + $0x34] sm:$0xf]
  %v34 = vld [vmem:[%s3 + $0x38] sm:$0xf]
  %v35 = vld [vmem:[%s3 + $0x3c] sm:$0xf]
  %v36 = vunpack.c.l.bf16 %v20
  %v37 = vunpack.c.l.bf16 %v21
  %v38 = vunpack.c.l.bf16 %v22
  %v39 = vunpack.c.l.bf16 %v23
  %v40 = vunpack.c.l.bf16 %v24
  %v41 = vunpack.c.l.bf16 %v25
  %v42 = vunpack.c.l.bf16 %v26
  %v43 = vunpack.c.l.bf16 %v27
  %v44 = vunpack.c.l.bf16 %v28
  %v45 = vunpack.c.l.bf16 %v29
  %v46 = vunpack.c.l.bf16 %v30
  %v47 = vunpack.c.l.bf16 %v31
  %v48 = vunpack.c.l.bf16 %v32
  %v49 = vunpack.c.l.bf16 %v33
  %v50 = vunpack.c.l.bf16 %v34
  %v51 = vunpack.c.l.bf16 %v35
  %vm52 = vcmp.gt.f32.partialorder %v36, 0.0
  %vm53 = vcmp.gt.f32.partialorder %v37, 0.0
  %vm54 = vcmp.gt.f32.partialorder %v38, 0.0
  %vm55 = vcmp.gt.f32.partialorder %v39, 0.0
  %vm56 = vcmp.gt.f32.partialorder %v40, 0.0
  %vm57 = vcmp.gt.f32.partialorder %v41, 0.0
  %vm58 = vcmp.gt.f32.partialorder %v42, 0.0
  %vm59 = vcmp.gt.f32.partialorder %v43, 0.0
  %vm60 = vcmp.gt.f32.partialorder %v44, 0.0
  %vm61 = vcmp.gt.f32.partialorder %v45, 0.0
  %vm62 = vcmp.gt.f32.partialorder %v46, 0.0
  %vm63 = vcmp.gt.f32.partialorder %v47, 0.0
  %vm64 = vcmp.gt.f32.partialorder %v48, 0.0
  %vm65 = vcmp.gt.f32.partialorder %v49, 0.0
  %vm66 = vcmp.gt.f32.partialorder %v50, 0.0
  %vm67 = vcmp.gt.f32.partialorder %v51, 0.0
  %v68 = vld [vmem:[%s0] sm:$0xff]
  %v69 = vld [vmem:[%s0 + $0x8] sm:$0xff]
  %v70 = vld [vmem:[%s0 + $0x10] sm:$0xff]
  %v71 = vld [vmem:[%s0 + $0x18] sm:$0xff]
  %v72 = vld [vmem:[%s0 + $0x20] sm:$0xff]
  %v73 = vld [vmem:[%s0 + $0x28] sm:$0xff]
  %v74 = vld [vmem:[%s0 + $0x30] sm:$0xff]
  %v75 = vld [vmem:[%s0 + $0x38] sm:$0xff]
  %v76 = vld [vmem:[%s0 + $0x40] sm:$0xff]
  %v77 = vld [vmem:[%s0 + $0x48] sm:$0xff]
  %v78 = vld [vmem:[%s0 + $0x50] sm:$0xff]
  %v79 = vld [vmem:[%s0 + $0x58] sm:$0xff]
  %v80 = vld [vmem:[%s0 + $0x60] sm:$0xff]
  %v81 = vld [vmem:[%s0 + $0x68] sm:$0xff]
  %v82 = vld [vmem:[%s0 + $0x70] sm:$0xff]
  %v83 = vld [vmem:[%s0 + $0x78] sm:$0xff]
  %v84 = vld [vmem:[%s1] sm:$0x1]
  %v85 = vld [vmem:[%s2] sm:$0xff]
  %v86 = vld [vmem:[%s2 + $0x8] sm:$0xff]
  %v87 = vld [vmem:[%s2 + $0x10] sm:$0xff]
  %v88 = vld [vmem:[%s2 + $0x18] sm:$0xff]
  %v89 = vld [vmem:[%s2 + $0x20] sm:$0xff]
  %v90 = vld [vmem:[%s2 + $0x28] sm:$0xff]
  %v91 = vld [vmem:[%s2 + $0x30] sm:$0xff]
  %v92 = vld [vmem:[%s2 + $0x38] sm:$0xff]
  %v93 = vld [vmem:[%s2 + $0x40] sm:$0xff]
  %v94 = vld [vmem:[%s2 + $0x48] sm:$0xff]
  %v95 = vld [vmem:[%s2 + $0x50] sm:$0xff]
  %v96 = vld [vmem:[%s2 + $0x58] sm:$0xff]
  %v97 = vld [vmem:[%s2 + $0x60] sm:$0xff]
  %v98 = vld [vmem:[%s2 + $0x68] sm:$0xff]
  %v99 = vld [vmem:[%s2 + $0x70] sm:$0xff]
  %v100 = vld [vmem:[%s2 + $0x78] sm:$0xff]
  %102 = vset.pattern.permute.xlu0 0
  %103 = vperm.xlu0 %102, %v85
  %v104 = vpop.permute.xlu0 %103
  %107 = vset.pattern.permute.xlu0 0
  %108 = vperm.xlu0 %107, %v86
  %v109 = vpop.permute.xlu0 %108
  %112 = vset.pattern.permute.xlu0 0
  %113 = vperm.xlu0 %112, %v87
  %v114 = vpop.permute.xlu0 %113
  %117 = vset.pattern.permute.xlu0 0
  %118 = vperm.xlu0 %117, %v88
  %v119 = vpop.permute.xlu0 %118
  %122 = vset.pattern.permute.xlu0 0
  %123 = vperm.xlu0 %122, %v89
  %v124 = vpop.permute.xlu0 %123
  %127 = vset.pattern.permute.xlu0 0
  %128 = vperm.xlu0 %127, %v90
  %v129 = vpop.permute.xlu0 %128
  %132 = vset.pattern.permute.xlu0 0
  %133 = vperm.xlu0 %132, %v91
  %v134 = vpop.permute.xlu0 %133
  %137 = vset.pattern.permute.xlu0 0
  %138 = vperm.xlu0 %137, %v92
  %v139 = vpop.permute.xlu0 %138
  %142 = vset.pattern.permute.xlu0 0
  %143 = vperm.xlu0 %142, %v93
  %v144 = vpop.permute.xlu0 %143
  %147 = vset.pattern.permute.xlu0 0
  %148 = vperm.xlu0 %147, %v94
  %v149 = vpop.permute.xlu0 %148
  %152 = vset.pattern.permute.xlu0 0
  %153 = vperm.xlu0 %152, %v95
  %v154 = vpop.permute.xlu0 %153
  %157 = vset.pattern.permute.xlu0 0
  %158 = vperm.xlu0 %157, %v96
  %v159 = vpop.permute.xlu0 %158
  %162 = vset.pattern.permute.xlu0 0
  %163 = vperm.xlu0 %162, %v97
  %v164 = vpop.permute.xlu0 %163
  %167 = vset.pattern.permute.xlu0 0
  %168 = vperm.xlu0 %167, %v98
  %v169 = vpop.permute.xlu0 %168
  %172 = vset.pattern.permute.xlu0 0
  %173 = vperm.xlu0 %172, %v99
  %v174 = vpop.permute.xlu0 %173
  %177 = vset.pattern.permute.xlu0 0
  %178 = vperm.xlu0 %177, %v100
  %v179 = vpop.permute.xlu0 %178
  %v182 = vperm.slane %v84, 0
  %v184 = vadd.f32 %v104, %v182
  %v185 = vadd.f32 %v109, %v182
  %v186 = vadd.f32 %v114, %v182
  %v187 = vadd.f32 %v119, %v182
  %v188 = vadd.f32 %v124, %v182
  %v189 = vadd.f32 %v129, %v182
  %v190 = vadd.f32 %v134, %v182
  %v191 = vadd.f32 %v139, %v182
  %v192 = vadd.f32 %v144, %v182
  %v193 = vadd.f32 %v149, %v182
  %v194 = vadd.f32 %v154, %v182
  %v195 = vadd.f32 %v159, %v182
  %v196 = vadd.f32 %v164, %v182
  %v197 = vadd.f32 %v169, %v182
  %v198 = vadd.f32 %v174, %v182
  %v199 = vadd.f32 %v179, %v182
  %vm200 = vcmp.gt.f32.partialorder %v184, 0.0
  %vm201 = vcmp.gt.f32.partialorder %v185, 0.0
  %vm202 = vcmp.gt.f32.partialorder %v186, 0.0
  %vm203 = vcmp.gt.f32.partialorder %v187, 0.0
  %vm204 = vcmp.gt.f32.partialorder %v188, 0.0
  %vm205 = vcmp.gt.f32.partialorder %v189, 0.0
  %vm206 = vcmp.gt.f32.partialorder %v190, 0.0
  %vm207 = vcmp.gt.f32.partialorder %v191, 0.0
  %vm208 = vcmp.gt.f32.partialorder %v192, 0.0
  %vm209 = vcmp.gt.f32.partialorder %v193, 0.0
  %vm210 = vcmp.gt.f32.partialorder %v194, 0.0
  %vm211 = vcmp.gt.f32.partialorder %v195, 0.0
  %vm212 = vcmp.gt.f32.partialorder %v196, 0.0
  %vm213 = vcmp.gt.f32.partialorder %v197, 0.0
  %vm214 = vcmp.gt.f32.partialorder %v198, 0.0
  %vm215 = vcmp.gt.f32.partialorder %v199, 0.0
  %v216 = vmul.f32 %v184, 0.2
  %v217 = vmul.f32 %v185, 0.2
  %v218 = vmul.f32 %v186, 0.2
  %v219 = vmul.f32 %v187, 0.2
  %v220 = vmul.f32 %v188, 0.2
  %v221 = vmul.f32 %v189, 0.2
  %v222 = vmul.f32 %v190, 0.2
  %v223 = vmul.f32 %v191, 0.2
  %v224 = vmul.f32 %v192, 0.2
  %v225 = vmul.f32 %v193, 0.2
  %v226 = vmul.f32 %v194, 0.2
  %v227 = vmul.f32 %v195, 0.2
  %v228 = vmul.f32 %v196, 0.2
  %v229 = vmul.f32 %v197, 0.2
  %v230 = vmul.f32 %v198, 0.2
  %v231 = vmul.f32 %v199, 0.2
  %v232 = vsel %vm200, %v184, %v216
  %v233 = vsel %vm201, %v185, %v217
  %v234 = vsel %vm202, %v186, %v218
  %v235 = vsel %vm203, %v187, %v219
  %v236 = vsel %vm204, %v188, %v220
  %v237 = vsel %vm205, %v189, %v221
  %v238 = vsel %vm206, %v190, %v222
  %v239 = vsel %vm207, %v191, %v223
  %v240 = vsel %vm208, %v192, %v224
  %v241 = vsel %vm209, %v193, %v225
  %v242 = vsel %vm210, %v194, %v226
  %v243 = vsel %vm211, %v195, %v227
  %v244 = vsel %vm212, %v196, %v228
  %v245 = vsel %vm213, %v197, %v229
  %v246 = vsel %vm214, %v198, %v230
  %v247 = vsel %vm215, %v199, %v231
  %v248 = vsel %vm52, %v232, -1e+30
  %v249 = vsel %vm53, %v233, -1e+30
  %v250 = vsel %vm54, %v234, -1e+30
  %v251 = vsel %vm55, %v235, -1e+30
  %v252 = vsel %vm56, %v236, -1e+30
  %v253 = vsel %vm57, %v237, -1e+30
  %v254 = vsel %vm58, %v238, -1e+30
  %v255 = vsel %vm59, %v239, -1e+30
  %v256 = vsel %vm60, %v240, -1e+30
  %v257 = vsel %vm61, %v241, -1e+30
  %v258 = vsel %vm62, %v242, -1e+30
  %v259 = vsel %vm63, %v243, -1e+30
  %v260 = vsel %vm64, %v244, -1e+30
  %v261 = vsel %vm65, %v245, -1e+30
  %v262 = vsel %vm66, %v246, -1e+30
  %v263 = vsel %vm67, %v247, -1e+30
  %264 = vmax.xlane.f32.xlu0 %v248
  %v265 = vpop.xlane.xlu0 %264
  %266 = vmax.xlane.f32.xlu0 %v249
  %v267 = vpop.xlane.xlu0 %266
  %268 = vmax.xlane.f32.xlu0 %v250
  %v269 = vpop.xlane.xlu0 %268
  %270 = vmax.xlane.f32.xlu0 %v251
  %v271 = vpop.xlane.xlu0 %270
  %272 = vmax.xlane.f32.xlu0 %v252
  %v273 = vpop.xlane.xlu0 %272
  %274 = vmax.xlane.f32.xlu0 %v253
  %v275 = vpop.xlane.xlu0 %274
  %276 = vmax.xlane.f32.xlu0 %v254
  %v277 = vpop.xlane.xlu0 %276
  %278 = vmax.xlane.f32.xlu0 %v255
  %v279 = vpop.xlane.xlu0 %278
  %280 = vmax.xlane.f32.xlu0 %v256
  %v281 = vpop.xlane.xlu0 %280
  %282 = vmax.xlane.f32.xlu0 %v257
  %v283 = vpop.xlane.xlu0 %282
  %284 = vmax.xlane.f32.xlu0 %v258
  %v285 = vpop.xlane.xlu0 %284
  %286 = vmax.xlane.f32.xlu0 %v259
  %v287 = vpop.xlane.xlu0 %286
  %288 = vmax.xlane.f32.xlu0 %v260
  %v289 = vpop.xlane.xlu0 %288
  %290 = vmax.xlane.f32.xlu0 %v261
  %v291 = vpop.xlane.xlu0 %290
  %292 = vmax.xlane.f32.xlu0 %v262
  %v293 = vpop.xlane.xlu0 %292
  %294 = vmax.xlane.f32.xlu0 %v263
  %v295 = vpop.xlane.xlu0 %294
  %v296 = vsub.f32 %v248, %v265
  %v297 = vsub.f32 %v249, %v267
  %v298 = vsub.f32 %v250, %v269
  %v299 = vsub.f32 %v251, %v271
  %v300 = vsub.f32 %v252, %v273
  %v301 = vsub.f32 %v253, %v275
  %v302 = vsub.f32 %v254, %v277
  %v303 = vsub.f32 %v255, %v279
  %v304 = vsub.f32 %v256, %v281
  %v305 = vsub.f32 %v257, %v283
  %v306 = vsub.f32 %v258, %v285
  %v307 = vsub.f32 %v259, %v287
  %v308 = vsub.f32 %v260, %v289
  %v309 = vsub.f32 %v261, %v291
  %v310 = vsub.f32 %v262, %v293
  %v311 = vsub.f32 %v263, %v295
  %v312 = vmul.f32 %v296, 1.442695
  %v313 = vpow.pop %v312
  %v314 = vmul.f32 %v297, 1.442695
  %v315 = vpow.pop %v314
  %v316 = vmul.f32 %v298, 1.442695
  %v317 = vpow.pop %v316
  %v318 = vmul.f32 %v299, 1.442695
  %v319 = vpow.pop %v318
  %v320 = vmul.f32 %v300, 1.442695
  %v321 = vpow.pop %v320
  %v322 = vmul.f32 %v301, 1.442695
  %v323 = vpow.pop %v322
  %v324 = vmul.f32 %v302, 1.442695
  %v325 = vpow.pop %v324
  %v326 = vmul.f32 %v303, 1.442695
  %v327 = vpow.pop %v326
  %v328 = vmul.f32 %v304, 1.442695
  %v329 = vpow.pop %v328
  %v330 = vmul.f32 %v305, 1.442695
  %v331 = vpow.pop %v330
  %v332 = vmul.f32 %v306, 1.442695
  %v333 = vpow.pop %v332
  %v334 = vmul.f32 %v307, 1.442695
  %v335 = vpow.pop %v334
  %v336 = vmul.f32 %v308, 1.442695
  %v337 = vpow.pop %v336
  %v338 = vmul.f32 %v309, 1.442695
  %v339 = vpow.pop %v338
  %v340 = vmul.f32 %v310, 1.442695
  %v341 = vpow.pop %v340
  %v342 = vmul.f32 %v311, 1.442695
  %v343 = vpow.pop %v342
  %v344 = vsel %vm52, %v313, 0.0
  %v345 = vsel %vm53, %v315, 0.0
  %v346 = vsel %vm54, %v317, 0.0
  %v347 = vsel %vm55, %v319, 0.0
  %v348 = vsel %vm56, %v321, 0.0
  %v349 = vsel %vm57, %v323, 0.0
  %v350 = vsel %vm58, %v325, 0.0
  %v351 = vsel %vm59, %v327, 0.0
  %v352 = vsel %vm60, %v329, 0.0
  %v353 = vsel %vm61, %v331, 0.0
  %v354 = vsel %vm62, %v333, 0.0
  %v355 = vsel %vm63, %v335, 0.0
  %v356 = vsel %vm64, %v337, 0.0
  %v357 = vsel %vm65, %v339, 0.0
  %v358 = vsel %vm66, %v341, 0.0
  %v359 = vsel %vm67, %v343, 0.0
  %360 = vadd.xlane.f32.xlu0 %v344
  %v361 = vpop.xlane.xlu0 %360
  %362 = vadd.xlane.f32.xlu0 %v345
  %v363 = vpop.xlane.xlu0 %362
  %364 = vadd.xlane.f32.xlu0 %v346
  %v365 = vpop.xlane.xlu0 %364
  %366 = vadd.xlane.f32.xlu0 %v347
  %v367 = vpop.xlane.xlu0 %366
  %368 = vadd.xlane.f32.xlu0 %v348
  %v369 = vpop.xlane.xlu0 %368
  %370 = vadd.xlane.f32.xlu0 %v349
  %v371 = vpop.xlane.xlu0 %370
  %372 = vadd.xlane.f32.xlu0 %v350
  %v373 = vpop.xlane.xlu0 %372
  %374 = vadd.xlane.f32.xlu0 %v351
  %v375 = vpop.xlane.xlu0 %374
  %376 = vadd.xlane.f32.xlu0 %v352
  %v377 = vpop.xlane.xlu0 %376
  %378 = vadd.xlane.f32.xlu0 %v353
  %v379 = vpop.xlane.xlu0 %378
  %380 = vadd.xlane.f32.xlu0 %v354
  %v381 = vpop.xlane.xlu0 %380
  %382 = vadd.xlane.f32.xlu0 %v355
  %v383 = vpop.xlane.xlu0 %382
  %384 = vadd.xlane.f32.xlu0 %v356
  %v385 = vpop.xlane.xlu0 %384
  %386 = vadd.xlane.f32.xlu0 %v357
  %v387 = vpop.xlane.xlu0 %386
  %388 = vadd.xlane.f32.xlu0 %v358
  %v389 = vpop.xlane.xlu0 %388
  %390 = vadd.xlane.f32.xlu0 %v359
  %v391 = vpop.xlane.xlu0 %390
  %v392 = vrcp.pop %v361
  %v393 = vrcp.pop %v363
  %v394 = vrcp.pop %v365
  %v395 = vrcp.pop %v367
  %v396 = vrcp.pop %v369
  %v397 = vrcp.pop %v371
  %v398 = vrcp.pop %v373
  %v399 = vrcp.pop %v375
  %v400 = vrcp.pop %v377
  %v401 = vrcp.pop %v379
  %v402 = vrcp.pop %v381
  %v403 = vrcp.pop %v383
  %v404 = vrcp.pop %v385
  %v405 = vrcp.pop %v387
  %v406 = vrcp.pop %v389
  %v407 = vrcp.pop %v391
  %v408 = vmul.f32 %v344, %v392
  %v409 = vmul.f32 %v345, %v393
  %v410 = vmul.f32 %v346, %v394
  %v411 = vmul.f32 %v347, %v395
  %v412 = vmul.f32 %v348, %v396
  %v413 = vmul.f32 %v349, %v397
  %v414 = vmul.f32 %v350, %v398
  %v415 = vmul.f32 %v351, %v399
  %v416 = vmul.f32 %v352, %v400
  %v417 = vmul.f32 %v353, %v401
  %v418 = vmul.f32 %v354, %v402
  %v419 = vmul.f32 %v355, %v403
  %v420 = vmul.f32 %v356, %v404
  %v421 = vmul.f32 %v357, %v405
  %v422 = vmul.f32 %v358, %v406
  %v423 = vmul.f32 %v359, %v407
  %v424 = vpack.c.bf16 %v409, %v408
  %v425 = vpack.c.bf16 %v411, %v410
  %v426 = vpack.c.bf16 %v413, %v412
  %v427 = vpack.c.bf16 %v415, %v414
  %v428 = vpack.c.bf16 %v417, %v416
  %v429 = vpack.c.bf16 %v419, %v418
  %v430 = vpack.c.bf16 %v421, %v420
  %v431 = vpack.c.bf16 %v423, %v422
  %v432 = vpack.c.bf16 %v69, %v68
  %v433 = vpack.c.bf16 %v71, %v70
  %v434 = vpack.c.bf16 %v73, %v72
  %v435 = vpack.c.bf16 %v75, %v74
  %v436 = vpack.c.bf16 %v77, %v76
  %v437 = vpack.c.bf16 %v79, %v78
  %v438 = vpack.c.bf16 %v81, %v80
  %v439 = vpack.c.bf16 %v83, %v82
  %v440 = vld [vmem:[%s4] sm:$0x1]
  %v442 = vperm.slane %v440, 0
  %444 = vmatpush.bf16.msra.mxu0 %v439
  %445 = vmatpush.bf16.msra.mxu0 %v438
  %446 = vmatpush.bf16.msra.mxu0 %v437
  %447 = vmatpush.bf16.msra.mxu0 %v436
  %448 = vmatpush.bf16.msra.mxu0 %v435
  %449 = vmatpush.bf16.msra.mxu0 %v434
  %450 = vmatpush.bf16.msra.mxu0 %v433
  %451 = vmatpush.bf16.msra.mxu0 %v432
  %452 = vmatmul.bf16.gmra.mxu0 %v424
  %v453 = vpop.f32.mrf.mxu0
  %v454 = vadd.f32 %v442, %v453
  %v455 = vpop.f32.mrf.mxu0
  %v456 = vadd.f32 %v442, %v455
  %457 = vmatmul.bf16.gmra.mxu0 %v425
  %v458 = vpop.f32.mrf.mxu0
  %v459 = vadd.f32 %v442, %v458
  %v460 = vpop.f32.mrf.mxu0
  %v461 = vadd.f32 %v442, %v460
  %462 = vmatmul.bf16.gmra.mxu0 %v426
  %v463 = vpop.f32.mrf.mxu0
  %v464 = vadd.f32 %v442, %v463
  %v465 = vpop.f32.mrf.mxu0
  %v466 = vadd.f32 %v442, %v465
  %467 = vmatmul.bf16.gmra.mxu0 %v427
  %v468 = vpop.f32.mrf.mxu0
  %v469 = vadd.f32 %v442, %v468
  %v470 = vpop.f32.mrf.mxu0
  %v471 = vadd.f32 %v442, %v470
  %472 = vmatmul.bf16.gmra.mxu0 %v428
  %v473 = vpop.f32.mrf.mxu0
  %v474 = vadd.f32 %v442, %v473
  %v475 = vpop.f32.mrf.mxu0
  %v476 = vadd.f32 %v442, %v475
  %477 = vmatmul.bf16.gmra.mxu0 %v429
  %v478 = vpop.f32.mrf.mxu0
  %v479 = vadd.f32 %v442, %v478
  %v480 = vpop.f32.mrf.mxu0
  %v481 = vadd.f32 %v442, %v480
  %482 = vmatmul.bf16.gmra.mxu0 %v430
  %v483 = vpop.f32.mrf.mxu0
  %v484 = vadd.f32 %v442, %v483
  %v485 = vpop.f32.mrf.mxu0
  %v486 = vadd.f32 %v442, %v485
  %487 = vmatmul.bf16.gmra.mxu0 %v431
  %v488 = vpop.f32.mrf.mxu0
  %v489 = vadd.f32 %v442, %v488
  %v490 = vpop.f32.mrf.mxu0
  %v491 = vadd.f32 %v442, %v490
  %492 = vdwg.mxu0
  %vm493 = vcmask 31744
  %494 = vst.msk [vmem:[%s5] sm:$0xff] %vm493, %v454
  %495 = vst.msk [vmem:[%s5 + $0x8] sm:$0xff] %vm493, %v456
  %496 = vst.msk [vmem:[%s5 + $0x10] sm:$0xff] %vm493, %v459
  %497 = vst.msk [vmem:[%s5 + $0x18] sm:$0xff] %vm493, %v461
  %498 = vst.msk [vmem:[%s5 + $0x20] sm:$0xff] %vm493, %v464
  %499 = vst.msk [vmem:[%s5 + $0x28] sm:$0xff] %vm493, %v466
  %500 = vst.msk [vmem:[%s5 + $0x30] sm:$0xff] %vm493, %v469
  %501 = vst.msk [vmem:[%s5 + $0x38] sm:$0xff] %vm493, %v471
  %502 = vst.msk [vmem:[%s5 + $0x40] sm:$0xff] %vm493, %v474
  %503 = vst.msk [vmem:[%s5 + $0x48] sm:$0xff] %vm493, %v476
  %504 = vst.msk [vmem:[%s5 + $0x50] sm:$0xff] %vm493, %v479
  %505 = vst.msk [vmem:[%s5 + $0x58] sm:$0xff] %vm493, %v481
  %506 = vst.msk [vmem:[%s5 + $0x60] sm:$0xff] %vm493, %v484
  %507 = vst.msk [vmem:[%s5 + $0x68] sm:$0xff] %vm493, %v486
  %508 = vst.msk [vmem:[%s5 + $0x70] sm:$0xff] %vm493, %v489
  %509 = vst.msk [vmem:[%s5 + $0x78] sm:$0xff] %vm493, %v491
  // Predicated region
  $region22: #{_forward_impl.7} parent=0 // pred_check
    _
  $region23: #{_forward_impl.7} parent=0 // pred_check_branch
    %511 = sbr.rel (0) target = $region25
  $region24: #{_forward_impl.7} parent=0 // pred_region
    _
  $region25: #{_forward_impl.7} parent=0 // pred_fallthru
    _
  // Predicated region
  $region26: #{_forward_impl.7} parent=0 // pred_check
    _
  $region27: #{_forward_impl.7} parent=0 // pred_check_branch
    %513 = sbr.rel (0) target = $region29
  $region28: #{_forward_impl.7} parent=0 // pred_region
    _
  $region29: #{_forward_impl.7} parent=0 // pred_fallthru
    _

// kernel: _forward_impl.5
$region0: #{_forward_impl.5}
  #allocation0 [shape = 'u32[]', space=smem, size = 0x4, offset = 0x4, fixed_abs, tag = 'smem constant byte address 0x4 - core index']
  #allocation1 [shape = 'u32[72,128]{1,0:T(1,128)}', space=vmem, size = 0x9000, scoped, tag = 'internal scratch']
  %s0 = inlined_call_operand.vmem [shape: f32[128,64], index: 0, kind: input, shape index: {}]
  %s1 = inlined_call_operand.vmem [shape: f32[8,128], index: 1, kind: input, shape index: {}]
  %s2 = inlined_call_operand.vmem [shape: f32[128,8], index: 2, kind: input, shape index: {}]
  %s3 = inlined_call_operand.vmem [shape: bf16[128,128], index: 3, kind: input, shape index: {}]
  %s4 = inlined_call_operand.vmem [shape: f32[1,64], index: 4, kind: input, shape index: {}]
  %s5 = inlined_call_operand.vmem [shape: f32[128,64], index: 5, kind: output, shape index: {}]
  %s6 = sld [smem:[#allocation0]]
  $region30: #{_forward_impl.5} parent=0
    _
  %s8 = ssub.s32 1, %s6
  %s9 = scalar_select 0, %s8, %s6
  // Predicated region
  $region2: #{_forward_impl.5} parent=0 // pred_check
    _
  $region3: #{_forward_impl.5} parent=0 // pred_check_branch
    %11 = sbr.rel (0) target = $region5
  $region4: #{_forward_impl.5} parent=0 // pred_region
    _
  $region5: #{_forward_impl.5} parent=0 // pred_fallthru
    _
  // Predicated region
  $region6: #{_forward_impl.5} parent=0 // pred_check
    _
  $region7: #{_forward_impl.5} parent=0 // pred_check_branch
    %13 = sbr.rel (0) target = $region9
  $region8: #{_forward_impl.5} parent=0 // pred_region
    _
  $region9: #{_forward_impl.5} parent=0 // pred_fallthru
    _
  // Predicated region
  $region10: #{_forward_impl.5} parent=0 // pred_check
    _
  $region11: #{_forward_impl.5} parent=0 // pred_check_branch
    %15 = sbr.rel (0) target = $region13
  $region12: #{_forward_impl.5} parent=0 // pred_region
    _
  $region13: #{_forward_impl.5} parent=0 // pred_fallthru
    _
  // Predicated region
  $region14: #{_forward_impl.5} parent=0 // pred_check
    _
  $region15: #{_forward_impl.5} parent=0 // pred_check_branch
    %17 = sbr.rel (0) target = $region17
  $region16: #{_forward_impl.5} parent=0 // pred_region
    _
  $region17: #{_forward_impl.5} parent=0 // pred_fallthru
    _
  // Predicated region
  $region18: #{_forward_impl.5} parent=0 // pred_check
    _
  $region19: #{_forward_impl.5} parent=0 // pred_check_branch
    %19 = sbr.rel (0) target = $region21
  $region20: #{_forward_impl.5} parent=0 // pred_region
    _
  $region21: #{_forward_impl.5} parent=0 // pred_fallthru
    _
  %v20 = vld [vmem:[%s3] sm:$0xf]
  %v21 = vld [vmem:[%s3 + $0x4] sm:$0xf]
  %v22 = vld [vmem:[%s3 + $0x8] sm:$0xf]
  %v23 = vld [vmem:[%s3 + $0xc] sm:$0xf]
  %v24 = vld [vmem:[%s3 + $0x10] sm:$0xf]
  %v25 = vld [vmem:[%s3 + $0x14] sm:$0xf]
  %v26 = vld [vmem:[%s3 + $0x18] sm:$0xf]
  %v27 = vld [vmem:[%s3 + $0x1c] sm:$0xf]
  %v28 = vld [vmem:[%s3 + $0x20] sm:$0xf]
  %v29 = vld [vmem:[%s3 + $0x24] sm:$0xf]
  %v30 = vld [vmem:[%s3 + $0x28] sm:$0xf]
  %v31 = vld [vmem:[%s3 + $0x2c] sm:$0xf]
  %v32 = vld [vmem:[%s3 + $0x30] sm:$0xf]
  %v33 = vld [vmem:[%s3 + $0x34] sm:$0xf]
  %v34 = vld [vmem:[%s3 + $0x38] sm:$0xf]
  %v35 = vld [vmem:[%s3 + $0x3c] sm:$0xf]
  %v36 = vunpack.c.l.bf16 %v20
  %v37 = vunpack.c.l.bf16 %v21
  %v38 = vunpack.c.l.bf16 %v22
  %v39 = vunpack.c.l.bf16 %v23
  %v40 = vunpack.c.l.bf16 %v24
  %v41 = vunpack.c.l.bf16 %v25
  %v42 = vunpack.c.l.bf16 %v26
  %v43 = vunpack.c.l.bf16 %v27
  %v44 = vunpack.c.l.bf16 %v28
  %v45 = vunpack.c.l.bf16 %v29
  %v46 = vunpack.c.l.bf16 %v30
  %v47 = vunpack.c.l.bf16 %v31
  %v48 = vunpack.c.l.bf16 %v32
  %v49 = vunpack.c.l.bf16 %v33
  %v50 = vunpack.c.l.bf16 %v34
  %v51 = vunpack.c.l.bf16 %v35
  %vm52 = vcmp.gt.f32.partialorder %v36, 0.0
  %vm53 = vcmp.gt.f32.partialorder %v37, 0.0
  %vm54 = vcmp.gt.f32.partialorder %v38, 0.0
  %vm55 = vcmp.gt.f32.partialorder %v39, 0.0
  %vm56 = vcmp.gt.f32.partialorder %v40, 0.0
  %vm57 = vcmp.gt.f32.partialorder %v41, 0.0
  %vm58 = vcmp.gt.f32.partialorder %v42, 0.0
  %vm59 = vcmp.gt.f32.partialorder %v43, 0.0
  %vm60 = vcmp.gt.f32.partialorder %v44, 0.0
  %vm61 = vcmp.gt.f32.partialorder %v45, 0.0
  %vm62 = vcmp.gt.f32.partialorder %v46, 0.0
  %vm63 = vcmp.gt.f32.partialorder %v47, 0.0
  %vm64 = vcmp.gt.f32.partialorder %v48, 0.0
  %vm65 = vcmp.gt.f32.partialorder %v49, 0.0
  %vm66 = vcmp.gt.f32.partialorder %v50, 0.0
  %vm67 = vcmp.gt.f32.partialorder %v51, 0.0
  %v68 = vld [vmem:[%s0] sm:$0xff]
  %v69 = vld [vmem:[%s0 + $0x8] sm:$0xff]
  %v70 = vld [vmem:[%s0 + $0x10] sm:$0xff]
  %v71 = vld [vmem:[%s0 + $0x18] sm:$0xff]
  %v72 = vld [vmem:[%s0 + $0x20] sm:$0xff]
  %v73 = vld [vmem:[%s0 + $0x28] sm:$0xff]
  %v74 = vld [vmem:[%s0 + $0x30] sm:$0xff]
  %v75 = vld [vmem:[%s0 + $0x38] sm:$0xff]
  %v76 = vld [vmem:[%s0 + $0x40] sm:$0xff]
  %v77 = vld [vmem:[%s0 + $0x48] sm:$0xff]
  %v78 = vld [vmem:[%s0 + $0x50] sm:$0xff]
  %v79 = vld [vmem:[%s0 + $0x58] sm:$0xff]
  %v80 = vld [vmem:[%s0 + $0x60] sm:$0xff]
  %v81 = vld [vmem:[%s0 + $0x68] sm:$0xff]
  %v82 = vld [vmem:[%s0 + $0x70] sm:$0xff]
  %v83 = vld [vmem:[%s0 + $0x78] sm:$0xff]
  %v84 = vld [vmem:[%s1] sm:$0x1]
  %v85 = vld [vmem:[%s2] sm:$0xff]
  %v86 = vld [vmem:[%s2 + $0x8] sm:$0xff]
  %v87 = vld [vmem:[%s2 + $0x10] sm:$0xff]
  %v88 = vld [vmem:[%s2 + $0x18] sm:$0xff]
  %v89 = vld [vmem:[%s2 + $0x20] sm:$0xff]
  %v90 = vld [vmem:[%s2 + $0x28] sm:$0xff]
  %v91 = vld [vmem:[%s2 + $0x30] sm:$0xff]
  %v92 = vld [vmem:[%s2 + $0x38] sm:$0xff]
  %v93 = vld [vmem:[%s2 + $0x40] sm:$0xff]
  %v94 = vld [vmem:[%s2 + $0x48] sm:$0xff]
  %v95 = vld [vmem:[%s2 + $0x50] sm:$0xff]
  %v96 = vld [vmem:[%s2 + $0x58] sm:$0xff]
  %v97 = vld [vmem:[%s2 + $0x60] sm:$0xff]
  %v98 = vld [vmem:[%s2 + $0x68] sm:$0xff]
  %v99 = vld [vmem:[%s2 + $0x70] sm:$0xff]
  %v100 = vld [vmem:[%s2 + $0x78] sm:$0xff]
  %102 = vset.pattern.permute.xlu0 0
  %103 = vperm.xlu0 %102, %v85
  %v104 = vpop.permute.xlu0 %103
  %107 = vset.pattern.permute.xlu0 0
  %108 = vperm.xlu0 %107, %v86
  %v109 = vpop.permute.xlu0 %108
  %112 = vset.pattern.permute.xlu0 0
  %113 = vperm.xlu0 %112, %v87
  %v114 = vpop.permute.xlu0 %113
  %117 = vset.pattern.permute.xlu0 0
  %118 = vperm.xlu0 %117, %v88
  %v119 = vpop.permute.xlu0 %118
  %122 = vset.pattern.permute.xlu0 0
  %123 = vperm.xlu0 %122, %v89
  %v124 = vpop.permute.xlu0 %123
  %127 = vset.pattern.permute.xlu0 0
  %128 = vperm.xlu0 %127, %v90
  %v129 = vpop.permute.xlu0 %128
  %132 = vset.pattern.permute.xlu0 0
  %133 = vperm.xlu0 %132, %v91
  %v134 = vpop.permute.xlu0 %133
  %137 = vset.pattern.permute.xlu0 0
  %138 = vperm.xlu0 %137, %v92
  %v139 = vpop.permute.xlu0 %138
  %142 = vset.pattern.permute.xlu0 0
  %143 = vperm.xlu0 %142, %v93
  %v144 = vpop.permute.xlu0 %143
  %147 = vset.pattern.permute.xlu0 0
  %148 = vperm.xlu0 %147, %v94
  %v149 = vpop.permute.xlu0 %148
  %152 = vset.pattern.permute.xlu0 0
  %153 = vperm.xlu0 %152, %v95
  %v154 = vpop.permute.xlu0 %153
  %157 = vset.pattern.permute.xlu0 0
  %158 = vperm.xlu0 %157, %v96
  %v159 = vpop.permute.xlu0 %158
  %162 = vset.pattern.permute.xlu0 0
  %163 = vperm.xlu0 %162, %v97
  %v164 = vpop.permute.xlu0 %163
  %167 = vset.pattern.permute.xlu0 0
  %168 = vperm.xlu0 %167, %v98
  %v169 = vpop.permute.xlu0 %168
  %172 = vset.pattern.permute.xlu0 0
  %173 = vperm.xlu0 %172, %v99
  %v174 = vpop.permute.xlu0 %173
  %177 = vset.pattern.permute.xlu0 0
  %178 = vperm.xlu0 %177, %v100
  %v179 = vpop.permute.xlu0 %178
  %v181 = vperm.slane %v84, 0
  %v182 = vadd.f32 %v104, %v181
  %v183 = vadd.f32 %v109, %v181
  %v184 = vadd.f32 %v114, %v181
  %v185 = vadd.f32 %v119, %v181
  %v186 = vadd.f32 %v124, %v181
  %v187 = vadd.f32 %v129, %v181
  %v188 = vadd.f32 %v134, %v181
  %v189 = vadd.f32 %v139, %v181
  %v190 = vadd.f32 %v144, %v181
  %v191 = vadd.f32 %v149, %v181
  %v192 = vadd.f32 %v154, %v181
  %v193 = vadd.f32 %v159, %v181
  %v194 = vadd.f32 %v164, %v181
  %v195 = vadd.f32 %v169, %v181
  %v196 = vadd.f32 %v174, %v181
  %v197 = vadd.f32 %v179, %v181
  %vm198 = vcmp.gt.f32.partialorder %v182, 0.0
  %vm199 = vcmp.gt.f32.partialorder %v183, 0.0
  %vm200 = vcmp.gt.f32.partialorder %v184, 0.0
  %vm201 = vcmp.gt.f32.partialorder %v185, 0.0
  %vm202 = vcmp.gt.f32.partialorder %v186, 0.0
  %vm203 = vcmp.gt.f32.partialorder %v187, 0.0
  %vm204 = vcmp.gt.f32.partialorder %v188, 0.0
  %vm205 = vcmp.gt.f32.partialorder %v189, 0.0
  %vm206 = vcmp.gt.f32.partialorder %v190, 0.0
  %vm207 = vcmp.gt.f32.partialorder %v191, 0.0
  %vm208 = vcmp.gt.f32.partialorder %v192, 0.0
  %vm209 = vcmp.gt.f32.partialorder %v193, 0.0
  %vm210 = vcmp.gt.f32.partialorder %v194, 0.0
  %vm211 = vcmp.gt.f32.partialorder %v195, 0.0
  %vm212 = vcmp.gt.f32.partialorder %v196, 0.0
  %vm213 = vcmp.gt.f32.partialorder %v197, 0.0
  %v214 = vmul.f32 %v182, 0.2
  %v215 = vmul.f32 %v183, 0.2
  %v216 = vmul.f32 %v184, 0.2
  %v217 = vmul.f32 %v185, 0.2
  %v218 = vmul.f32 %v186, 0.2
  %v219 = vmul.f32 %v187, 0.2
  %v220 = vmul.f32 %v188, 0.2
  %v221 = vmul.f32 %v189, 0.2
  %v222 = vmul.f32 %v190, 0.2
  %v223 = vmul.f32 %v191, 0.2
  %v224 = vmul.f32 %v192, 0.2
  %v225 = vmul.f32 %v193, 0.2
  %v226 = vmul.f32 %v194, 0.2
  %v227 = vmul.f32 %v195, 0.2
  %v228 = vmul.f32 %v196, 0.2
  %v229 = vmul.f32 %v197, 0.2
  %v230 = vsel %vm198, %v182, %v214
  %v231 = vsel %vm199, %v183, %v215
  %v232 = vsel %vm200, %v184, %v216
  %v233 = vsel %vm201, %v185, %v217
  %v234 = vsel %vm202, %v186, %v218
  %v235 = vsel %vm203, %v187, %v219
  %v236 = vsel %vm204, %v188, %v220
  %v237 = vsel %vm205, %v189, %v221
  %v238 = vsel %vm206, %v190, %v222
  %v239 = vsel %vm207, %v191, %v223
  %v240 = vsel %vm208, %v192, %v224
  %v241 = vsel %vm209, %v193, %v225
  %v242 = vsel %vm210, %v194, %v226
  %v243 = vsel %vm211, %v195, %v227
  %v244 = vsel %vm212, %v196, %v228
  %v245 = vsel %vm213, %v197, %v229
  %v246 = vsel %vm52, %v230, -1e+30
  %v247 = vsel %vm53, %v231, -1e+30
  %v248 = vsel %vm54, %v232, -1e+30
  %v249 = vsel %vm55, %v233, -1e+30
  %v250 = vsel %vm56, %v234, -1e+30
  %v251 = vsel %vm57, %v235, -1e+30
  %v252 = vsel %vm58, %v236, -1e+30
  %v253 = vsel %vm59, %v237, -1e+30
  %v254 = vsel %vm60, %v238, -1e+30
  %v255 = vsel %vm61, %v239, -1e+30
  %v256 = vsel %vm62, %v240, -1e+30
  %v257 = vsel %vm63, %v241, -1e+30
  %v258 = vsel %vm64, %v242, -1e+30
  %v259 = vsel %vm65, %v243, -1e+30
  %v260 = vsel %vm66, %v244, -1e+30
  %v261 = vsel %vm67, %v245, -1e+30
  %262 = vmax.xlane.f32.xlu0 %v246
  %v263 = vpop.xlane.xlu0 %262
  %264 = vmax.xlane.f32.xlu0 %v247
  %v265 = vpop.xlane.xlu0 %264
  %266 = vmax.xlane.f32.xlu0 %v248
  %v267 = vpop.xlane.xlu0 %266
  %268 = vmax.xlane.f32.xlu0 %v249
  %v269 = vpop.xlane.xlu0 %268
  %270 = vmax.xlane.f32.xlu0 %v250
  %v271 = vpop.xlane.xlu0 %270
  %272 = vmax.xlane.f32.xlu0 %v251
  %v273 = vpop.xlane.xlu0 %272
  %274 = vmax.xlane.f32.xlu0 %v252
  %v275 = vpop.xlane.xlu0 %274
  %276 = vmax.xlane.f32.xlu0 %v253
  %v277 = vpop.xlane.xlu0 %276
  %278 = vmax.xlane.f32.xlu0 %v254
  %v279 = vpop.xlane.xlu0 %278
  %280 = vmax.xlane.f32.xlu0 %v255
  %v281 = vpop.xlane.xlu0 %280
  %282 = vmax.xlane.f32.xlu0 %v256
  %v283 = vpop.xlane.xlu0 %282
  %284 = vmax.xlane.f32.xlu0 %v257
  %v285 = vpop.xlane.xlu0 %284
  %286 = vmax.xlane.f32.xlu0 %v258
  %v287 = vpop.xlane.xlu0 %286
  %288 = vmax.xlane.f32.xlu0 %v259
  %v289 = vpop.xlane.xlu0 %288
  %290 = vmax.xlane.f32.xlu0 %v260
  %v291 = vpop.xlane.xlu0 %290
  %292 = vmax.xlane.f32.xlu0 %v261
  %v293 = vpop.xlane.xlu0 %292
  %v294 = vsub.f32 %v246, %v263
  %v295 = vsub.f32 %v247, %v265
  %v296 = vsub.f32 %v248, %v267
  %v297 = vsub.f32 %v249, %v269
  %v298 = vsub.f32 %v250, %v271
  %v299 = vsub.f32 %v251, %v273
  %v300 = vsub.f32 %v252, %v275
  %v301 = vsub.f32 %v253, %v277
  %v302 = vsub.f32 %v254, %v279
  %v303 = vsub.f32 %v255, %v281
  %v304 = vsub.f32 %v256, %v283
  %v305 = vsub.f32 %v257, %v285
  %v306 = vsub.f32 %v258, %v287
  %v307 = vsub.f32 %v259, %v289
  %v308 = vsub.f32 %v260, %v291
  %v309 = vsub.f32 %v261, %v293
  %v310 = vmul.f32 %v294, 1.442695
  %v311 = vpow.pop %v310
  %v312 = vmul.f32 %v295, 1.442695
  %v313 = vpow.pop %v312
  %v314 = vmul.f32 %v296, 1.442695
  %v315 = vpow.pop %v314
  %v316 = vmul.f32 %v297, 1.442695
  %v317 = vpow.pop %v316
  %v318 = vmul.f32 %v298, 1.442695
  %v319 = vpow.pop %v318
  %v320 = vmul.f32 %v299, 1.442695
  %v321 = vpow.pop %v320
  %v322 = vmul.f32 %v300, 1.442695
  %v323 = vpow.pop %v322
  %v324 = vmul.f32 %v301, 1.442695
  %v325 = vpow.pop %v324
  %v326 = vmul.f32 %v302, 1.442695
  %v327 = vpow.pop %v326
  %v328 = vmul.f32 %v303, 1.442695
  %v329 = vpow.pop %v328
  %v330 = vmul.f32 %v304, 1.442695
  %v331 = vpow.pop %v330
  %v332 = vmul.f32 %v305, 1.442695
  %v333 = vpow.pop %v332
  %v334 = vmul.f32 %v306, 1.442695
  %v335 = vpow.pop %v334
  %v336 = vmul.f32 %v307, 1.442695
  %v337 = vpow.pop %v336
  %v338 = vmul.f32 %v308, 1.442695
  %v339 = vpow.pop %v338
  %v340 = vmul.f32 %v309, 1.442695
  %v341 = vpow.pop %v340
  %v342 = vsel %vm52, %v311, 0.0
  %v343 = vsel %vm53, %v313, 0.0
  %v344 = vsel %vm54, %v315, 0.0
  %v345 = vsel %vm55, %v317, 0.0
  %v346 = vsel %vm56, %v319, 0.0
  %v347 = vsel %vm57, %v321, 0.0
  %v348 = vsel %vm58, %v323, 0.0
  %v349 = vsel %vm59, %v325, 0.0
  %v350 = vsel %vm60, %v327, 0.0
  %v351 = vsel %vm61, %v329, 0.0
  %v352 = vsel %vm62, %v331, 0.0
  %v353 = vsel %vm63, %v333, 0.0
  %v354 = vsel %vm64, %v335, 0.0
  %v355 = vsel %vm65, %v337, 0.0
  %v356 = vsel %vm66, %v339, 0.0
  %v357 = vsel %vm67, %v341, 0.0
  %358 = vadd.xlane.f32.xlu0 %v342
  %v359 = vpop.xlane.xlu0 %358
  %360 = vadd.xlane.f32.xlu0 %v343
  %v361 = vpop.xlane.xlu0 %360
  %362 = vadd.xlane.f32.xlu0 %v344
  %v363 = vpop.xlane.xlu0 %362
  %364 = vadd.xlane.f32.xlu0 %v345
  %v365 = vpop.xlane.xlu0 %364
  %366 = vadd.xlane.f32.xlu0 %v346
  %v367 = vpop.xlane.xlu0 %366
  %368 = vadd.xlane.f32.xlu0 %v347
  %v369 = vpop.xlane.xlu0 %368
  %370 = vadd.xlane.f32.xlu0 %v348
  %v371 = vpop.xlane.xlu0 %370
  %372 = vadd.xlane.f32.xlu0 %v349
  %v373 = vpop.xlane.xlu0 %372
  %374 = vadd.xlane.f32.xlu0 %v350
  %v375 = vpop.xlane.xlu0 %374
  %376 = vadd.xlane.f32.xlu0 %v351
  %v377 = vpop.xlane.xlu0 %376
  %378 = vadd.xlane.f32.xlu0 %v352
  %v379 = vpop.xlane.xlu0 %378
  %380 = vadd.xlane.f32.xlu0 %v353
  %v381 = vpop.xlane.xlu0 %380
  %382 = vadd.xlane.f32.xlu0 %v354
  %v383 = vpop.xlane.xlu0 %382
  %384 = vadd.xlane.f32.xlu0 %v355
  %v385 = vpop.xlane.xlu0 %384
  %386 = vadd.xlane.f32.xlu0 %v356
  %v387 = vpop.xlane.xlu0 %386
  %388 = vadd.xlane.f32.xlu0 %v357
  %v389 = vpop.xlane.xlu0 %388
  %v390 = vrcp.pop %v359
  %v391 = vrcp.pop %v361
  %v392 = vrcp.pop %v363
  %v393 = vrcp.pop %v365
  %v394 = vrcp.pop %v367
  %v395 = vrcp.pop %v369
  %v396 = vrcp.pop %v371
  %v397 = vrcp.pop %v373
  %v398 = vrcp.pop %v375
  %v399 = vrcp.pop %v377
  %v400 = vrcp.pop %v379
  %v401 = vrcp.pop %v381
  %v402 = vrcp.pop %v383
  %v403 = vrcp.pop %v385
  %v404 = vrcp.pop %v387
  %v405 = vrcp.pop %v389
  %v406 = vmul.f32 %v342, %v390
  %v407 = vmul.f32 %v343, %v391
  %v408 = vmul.f32 %v344, %v392
  %v409 = vmul.f32 %v345, %v393
  %v410 = vmul.f32 %v346, %v394
  %v411 = vmul.f32 %v347, %v395
  %v412 = vmul.f32 %v348, %v396
  %v413 = vmul.f32 %v349, %v397
  %v414 = vmul.f32 %v350, %v398
  %v415 = vmul.f32 %v351, %v399
  %v416 = vmul.f32 %v352, %v400
  %v417 = vmul.f32 %v353, %v401
  %v418 = vmul.f32 %v354, %v402
  %v419 = vmul.f32 %v355, %v403
  %v420 = vmul.f32 %v356, %v404
  %v421 = vmul.f32 %v357, %v405
  %v422 = vpack.c.bf16 %v407, %v406
  %v423 = vpack.c.bf16 %v409, %v408
  %v424 = vpack.c.bf16 %v411, %v410
  %v425 = vpack.c.bf16 %v413, %v412
  %v426 = vpack.c.bf16 %v415, %v414
  %v427 = vpack.c.bf16 %v417, %v416
  %v428 = vpack.c.bf16 %v419, %v418
  %v429 = vpack.c.bf16 %v421, %v420
  %v430 = vpack.c.bf16 %v69, %v68
  %v431 = vpack.c.bf16 %v71, %v70
  %v432 = vpack.c.bf16 %v73, %v72
  %v433 = vpack.c.bf16 %v75, %v74
  %v434 = vpack.c.bf16 %v77, %v76
  %v435 = vpack.c.bf16 %v79, %v78
  %v436 = vpack.c.bf16 %v81, %v80
  %v437 = vpack.c.bf16 %v83, %v82
  %438 = vmatpush.bf16.msra.mxu0 %v437
  %439 = vmatpush.bf16.msra.mxu0 %v436
  %440 = vmatpush.bf16.msra.mxu0 %v435
  %441 = vmatpush.bf16.msra.mxu0 %v434
  %442 = vmatpush.bf16.msra.mxu0 %v433
  %443 = vmatpush.bf16.msra.mxu0 %v432
  %444 = vmatpush.bf16.msra.mxu0 %v431
  %445 = vmatpush.bf16.msra.mxu0 %v430
  %446 = vmatmul.bf16.gmra.mxu0 %v422
  %v447 = vpop.f32.mrf.mxu0
  %v448 = vadd.f32 0.0, %v447
  %v449 = vpop.f32.mrf.mxu0
  %v450 = vadd.f32 0.0, %v449
  %451 = vmatmul.bf16.gmra.mxu0 %v423
  %v452 = vpop.f32.mrf.mxu0
  %v453 = vadd.f32 0.0, %v452
  %v454 = vpop.f32.mrf.mxu0
  %v455 = vadd.f32 0.0, %v454
  %456 = vmatmul.bf16.gmra.mxu0 %v424
  %v457 = vpop.f32.mrf.mxu0
  %v458 = vadd.f32 0.0, %v457
  %v459 = vpop.f32.mrf.mxu0
  %v460 = vadd.f32 0.0, %v459
  %461 = vmatmul.bf16.gmra.mxu0 %v425
  %v462 = vpop.f32.mrf.mxu0
  %v463 = vadd.f32 0.0, %v462
  %v464 = vpop.f32.mrf.mxu0
  %v465 = vadd.f32 0.0, %v464
  %466 = vmatmul.bf16.gmra.mxu0 %v426
  %v467 = vpop.f32.mrf.mxu0
  %v468 = vadd.f32 0.0, %v467
  %v469 = vpop.f32.mrf.mxu0
  %v470 = vadd.f32 0.0, %v469
  %471 = vmatmul.bf16.gmra.mxu0 %v427
  %v472 = vpop.f32.mrf.mxu0
  %v473 = vadd.f32 0.0, %v472
  %v474 = vpop.f32.mrf.mxu0
  %v475 = vadd.f32 0.0, %v474
  %476 = vmatmul.bf16.gmra.mxu0 %v428
  %v477 = vpop.f32.mrf.mxu0
  %v478 = vadd.f32 0.0, %v477
  %v479 = vpop.f32.mrf.mxu0
  %v480 = vadd.f32 0.0, %v479
  %481 = vmatmul.bf16.gmra.mxu0 %v429
  %v482 = vpop.f32.mrf.mxu0
  %v483 = vadd.f32 0.0, %v482
  %v484 = vpop.f32.mrf.mxu0
  %v485 = vadd.f32 0.0, %v484
  %486 = vdwg.mxu0
  %v487 = vld [vmem:[%s1 + $0x1] sm:$0x1]
  %488 = vset.pattern.permute.xlu0 1
  %489 = vperm.xlu0 %488, %v85
  %v490 = vpop.permute.xlu0 %489
  %492 = vset.pattern.permute.xlu0 1
  %493 = vperm.xlu0 %492, %v86
  %v494 = vpop.permute.xlu0 %493
  %496 = vset.pattern.permute.xlu0 1
  %497 = vperm.xlu0 %496, %v87
  %v498 = vpop.permute.xlu0 %497
  %500 = vset.pattern.permute.xlu0 1
  %501 = vperm.xlu0 %500, %v88
  %v502 = vpop.permute.xlu0 %501
  %504 = vset.pattern.permute.xlu0 1
  %505 = vperm.xlu0 %504, %v89
  %v506 = vpop.permute.xlu0 %505
  %508 = vset.pattern.permute.xlu0 1
  %509 = vperm.xlu0 %508, %v90
  %v510 = vpop.permute.xlu0 %509
  %512 = vset.pattern.permute.xlu0 1
  %513 = vperm.xlu0 %512, %v91
  %v514 = vpop.permute.xlu0 %513
  %516 = vset.pattern.permute.xlu0 1
  %517 = vperm.xlu0 %516, %v92
  %v518 = vpop.permute.xlu0 %517
  %520 = vset.pattern.permute.xlu0 1
  %521 = vperm.xlu0 %520, %v93
  %v522 = vpop.permute.xlu0 %521
  %524 = vset.pattern.permute.xlu0 1
  %525 = vperm.xlu0 %524, %v94
  %v526 = vpop.permute.xlu0 %525
  %528 = vset.pattern.permute.xlu0 1
  %529 = vperm.xlu0 %528, %v95
  %v530 = vpop.permute.xlu0 %529
  %532 = vset.pattern.permute.xlu0 1
  %533 = vperm.xlu0 %532, %v96
  %v534 = vpop.permute.xlu0 %533
  %536 = vset.pattern.permute.xlu0 1
  %537 = vperm.xlu0 %536, %v97
  %v538 = vpop.permute.xlu0 %537
  %540 = vset.pattern.permute.xlu0 1
  %541 = vperm.xlu0 %540, %v98
  %v542 = vpop.permute.xlu0 %541
  %544 = vset.pattern.permute.xlu0 1
  %545 = vperm.xlu0 %544, %v99
  %v546 = vpop.permute.xlu0 %545
  %548 = vset.pattern.permute.xlu0 1
  %549 = vperm.xlu0 %548, %v100
  %v550 = vpop.permute.xlu0 %549
  %v552 = vperm.slane %v487, 0
  %v553 = vadd.f32 %v490, %v552
  %v554 = vadd.f32 %v494, %v552
  %v555 = vadd.f32 %v498, %v552
  %v556 = vadd.f32 %v502, %v552
  %v557 = vadd.f32 %v506, %v552
  %v558 = vadd.f32 %v510, %v552
  %v559 = vadd.f32 %v514, %v552
  %v560 = vadd.f32 %v518, %v552
  %v561 = vadd.f32 %v522, %v552
  %v562 = vadd.f32 %v526, %v552
  %v563 = vadd.f32 %v530, %v552
  %v564 = vadd.f32 %v534, %v552
  %v565 = vadd.f32 %v538, %v552
  %v566 = vadd.f32 %v542, %v552
  %v567 = vadd.f32 %v546, %v552
  %v568 = vadd.f32 %v550, %v552
  %vm569 = vcmp.gt.f32.partialorder %v553, 0.0
  %vm570 = vcmp.gt.f32.partialorder %v554, 0.0
  %vm571 = vcmp.gt.f32.partialorder %v555, 0.0
  %vm572 = vcmp.gt.f32.partialorder %v556, 0.0
  %vm573 = vcmp.gt.f32.partialorder %v557, 0.0
  %vm574 = vcmp.gt.f32.partialorder %v558, 0.0
  %vm575 = vcmp.gt.f32.partialorder %v559, 0.0
  %vm576 = vcmp.gt.f32.partialorder %v560, 0.0
  %vm577 = vcmp.gt.f32.partialorder %v561, 0.0
  %vm578 = vcmp.gt.f32.partialorder %v562, 0.0
  %vm579 = vcmp.gt.f32.partialorder %v563, 0.0
  %vm580 = vcmp.gt.f32.partialorder %v564, 0.0
  %vm581 = vcmp.gt.f32.partialorder %v565, 0.0
  %vm582 = vcmp.gt.f32.partialorder %v566, 0.0
  %vm583 = vcmp.gt.f32.partialorder %v567, 0.0
  %vm584 = vcmp.gt.f32.partialorder %v568, 0.0
  %v585 = vmul.f32 %v553, 0.2
  %v586 = vmul.f32 %v554, 0.2
  %v587 = vmul.f32 %v555, 0.2
  %v588 = vmul.f32 %v556, 0.2
  %v589 = vmul.f32 %v557, 0.2
  %v590 = vmul.f32 %v558, 0.2
  %v591 = vmul.f32 %v559, 0.2
  %v592 = vmul.f32 %v560, 0.2
  %v593 = vmul.f32 %v561, 0.2
  %v594 = vmul.f32 %v562, 0.2
  %v595 = vmul.f32 %v563, 0.2
  %v596 = vmul.f32 %v564, 0.2
  %v597 = vmul.f32 %v565, 0.2
  %v598 = vmul.f32 %v566, 0.2
  %v599 = vmul.f32 %v567, 0.2
  %v600 = vmul.f32 %v568, 0.2
  %v601 = vsel %vm569, %v553, %v585
  %v602 = vsel %vm570, %v554, %v586
  %v603 = vsel %vm571, %v555, %v587
  %v604 = vsel %vm572, %v556, %v588
  %v605 = vsel %vm573, %v557, %v589
  %v606 = vsel %vm574, %v558, %v590
  %v607 = vsel %vm575, %v559, %v591
  %v608 = vsel %vm576, %v560, %v592
  %v609 = vsel %vm577, %v561, %v593
  %v610 = vsel %vm578, %v562, %v594
  %v611 = vsel %vm579, %v563, %v595
  %v612 = vsel %vm580, %v564, %v596
  %v613 = vsel %vm581, %v565, %v597
  %v614 = vsel %vm582, %v566, %v598
  %v615 = vsel %vm583, %v567, %v599
  %v616 = vsel %vm584, %v568, %v600
  %v617 = vsel %vm52, %v601, -1e+30
  %v618 = vsel %vm53, %v602, -1e+30
  %v619 = vsel %vm54, %v603, -1e+30
  %v620 = vsel %vm55, %v604, -1e+30
  %v621 = vsel %vm56, %v605, -1e+30
  %v622 = vsel %vm57, %v606, -1e+30
  %v623 = vsel %vm58, %v607, -1e+30
  %v624 = vsel %vm59, %v608, -1e+30
  %v625 = vsel %vm60, %v609, -1e+30
  %v626 = vsel %vm61, %v610, -1e+30
  %v627 = vsel %vm62, %v611, -1e+30
  %v628 = vsel %vm63, %v612, -1e+30
  %v629 = vsel %vm64, %v613, -1e+30
  %v630 = vsel %vm65, %v614, -1e+30
  %v631 = vsel %vm66, %v615, -1e+30
  %v632 = vsel %vm67, %v616, -1e+30
  %633 = vmax.xlane.f32.xlu0 %v617
  %v634 = vpop.xlane.xlu0 %633
  %635 = vmax.xlane.f32.xlu0 %v618
  %v636 = vpop.xlane.xlu0 %635
  %637 = vmax.xlane.f32.xlu0 %v619
  %v638 = vpop.xlane.xlu0 %637
  %639 = vmax.xlane.f32.xlu0 %v620
  %v640 = vpop.xlane.xlu0 %639
  %641 = vmax.xlane.f32.xlu0 %v621
  %v642 = vpop.xlane.xlu0 %641
  %643 = vmax.xlane.f32.xlu0 %v622
  %v644 = vpop.xlane.xlu0 %643
  %645 = vmax.xlane.f32.xlu0 %v623
  %v646 = vpop.xlane.xlu0 %645
  %647 = vmax.xlane.f32.xlu0 %v624
  %v648 = vpop.xlane.xlu0 %647
  %649 = vmax.xlane.f32.xlu0 %v625
  %v650 = vpop.xlane.xlu0 %649
  %651 = vmax.xlane.f32.xlu0 %v626
  %v652 = vpop.xlane.xlu0 %651
  %653 = vmax.xlane.f32.xlu0 %v627
  %v654 = vpop.xlane.xlu0 %653
  %655 = vmax.xlane.f32.xlu0 %v628
  %v656 = vpop.xlane.xlu0 %655
  %657 = vmax.xlane.f32.xlu0 %v629
  %v658 = vpop.xlane.xlu0 %657
  %659 = vmax.xlane.f32.xlu0 %v630
  %v660 = vpop.xlane.xlu0 %659
  %661 = vmax.xlane.f32.xlu0 %v631
  %v662 = vpop.xlane.xlu0 %661
  %663 = vmax.xlane.f32.xlu0 %v632
  %v664 = vpop.xlane.xlu0 %663
  %v665 = vsub.f32 %v617, %v634
  %v666 = vsub.f32 %v618, %v636
  %v667 = vsub.f32 %v619, %v638
  %v668 = vsub.f32 %v620, %v640
  %v669 = vsub.f32 %v621, %v642
  %v670 = vsub.f32 %v622, %v644
  %v671 = vsub.f32 %v623, %v646
  %v672 = vsub.f32 %v624, %v648
  %v673 = vsub.f32 %v625, %v650
  %v674 = vsub.f32 %v626, %v652
  %v675 = vsub.f32 %v627, %v654
  %v676 = vsub.f32 %v628, %v656
  %v677 = vsub.f32 %v629, %v658
  %v678 = vsub.f32 %v630, %v660
  %v679 = vsub.f32 %v631, %v662
  %v680 = vsub.f32 %v632, %v664
  %v681 = vmul.f32 %v665, 1.442695
  %v682 = vpow.pop %v681
  %v683 = vmul.f32 %v666, 1.442695
  %v684 = vpow.pop %v683
  %v685 = vmul.f32 %v667, 1.442695
  %v686 = vpow.pop %v685
  %v687 = vmul.f32 %v668, 1.442695
  %v688 = vpow.pop %v687
  %v689 = vmul.f32 %v669, 1.442695
  %v690 = vpow.pop %v689
  %v691 = vmul.f32 %v670, 1.442695
  %v692 = vpow.pop %v691
  %v693 = vmul.f32 %v671, 1.442695
  %v694 = vpow.pop %v693
  %v695 = vmul.f32 %v672, 1.442695
  %v696 = vpow.pop %v695
  %v697 = vmul.f32 %v673, 1.442695
  %v698 = vpow.pop %v697
  %v699 = vmul.f32 %v674, 1.442695
  %v700 = vpow.pop %v699
  %v701 = vmul.f32 %v675, 1.442695
  %v702 = vpow.pop %v701
  %v703 = vmul.f32 %v676, 1.442695
  %v704 = vpow.pop %v703
  %v705 = vmul.f32 %v677, 1.442695
  %v706 = vpow.pop %v705
  %v707 = vmul.f32 %v678, 1.442695
  %v708 = vpow.pop %v707
  %v709 = vmul.f32 %v679, 1.442695
  %v710 = vpow.pop %v709
  %v711 = vmul.f32 %v680, 1.442695
  %v712 = vpow.pop %v711
  %v713 = vsel %vm52, %v682, 0.0
  %v714 = vsel %vm53, %v684, 0.0
  %v715 = vsel %vm54, %v686, 0.0
  %v716 = vsel %vm55, %v688, 0.0
  %v717 = vsel %vm56, %v690, 0.0
  %v718 = vsel %vm57, %v692, 0.0
  %v719 = vsel %vm58, %v694, 0.0
  %v720 = vsel %vm59, %v696, 0.0
  %v721 = vsel %vm60, %v698, 0.0
  %v722 = vsel %vm61, %v700, 0.0
  %v723 = vsel %vm62, %v702, 0.0
  %v724 = vsel %vm63, %v704, 0.0
  %v725 = vsel %vm64, %v706, 0.0
  %v726 = vsel %vm65, %v708, 0.0
  %v727 = vsel %vm66, %v710, 0.0
  %v728 = vsel %vm67, %v712, 0.0
  %729 = vadd.xlane.f32.xlu0 %v713
  %v730 = vpop.xlane.xlu0 %729
  %731 = vadd.xlane.f32.xlu0 %v714
  %v732 = vpop.xlane.xlu0 %731
  %733 = vadd.xlane.f32.xlu0 %v715
  %v734 = vpop.xlane.xlu0 %733
  %735 = vadd.xlane.f32.xlu0 %v716
  %v736 = vpop.xlane.xlu0 %735
  %737 = vadd.xlane.f32.xlu0 %v717
  %v738 = vpop.xlane.xlu0 %737
  %739 = vadd.xlane.f32.xlu0 %v718
  %v740 = vpop.xlane.xlu0 %739
  %741 = vadd.xlane.f32.xlu0 %v719
  %v742 = vpop.xlane.xlu0 %741
  %743 = vadd.xlane.f32.xlu0 %v720
  %v744 = vpop.xlane.xlu0 %743
  %745 = vadd.xlane.f32.xlu0 %v721
  %v746 = vpop.xlane.xlu0 %745
  %747 = vadd.xlane.f32.xlu0 %v722
  %v748 = vpop.xlane.xlu0 %747
  %749 = vadd.xlane.f32.xlu0 %v723
  %v750 = vpop.xlane.xlu0 %749
  %751 = vadd.xlane.f32.xlu0 %v724
  %v752 = vpop.xlane.xlu0 %751
  %753 = vadd.xlane.f32.xlu0 %v725
  %v754 = vpop.xlane.xlu0 %753
  %755 = vadd.xlane.f32.xlu0 %v726
  %v756 = vpop.xlane.xlu0 %755
  %757 = vadd.xlane.f32.xlu0 %v727
  %v758 = vpop.xlane.xlu0 %757
  %759 = vadd.xlane.f32.xlu0 %v728
  %v760 = vpop.xlane.xlu0 %759
  %v761 = vrcp.pop %v730
  %v762 = vrcp.pop %v732
  %v763 = vrcp.pop %v734
  %v764 = vrcp.pop %v736
  %v765 = vrcp.pop %v738
  %v766 = vrcp.pop %v740
  %v767 = vrcp.pop %v742
  %v768 = vrcp.pop %v744
  %v769 = vrcp.pop %v746
  %v770 = vrcp.pop %v748
  %v771 = vrcp.pop %v750
  %v772 = vrcp.pop %v752
  %v773 = vrcp.pop %v754
  %v774 = vrcp.pop %v756
  %v775 = vrcp.pop %v758
  %v776 = vrcp.pop %v760
  %v777 = vmul.f32 %v713, %v761
  %v778 = vmul.f32 %v714, %v762
  %v779 = vmul.f32 %v715, %v763
  %v780 = vmul.f32 %v716, %v764
  %v781 = vmul.f32 %v717, %v765
  %v782 = vmul.f32 %v718, %v766
  %v783 = vmul.f32 %v719, %v767
  %v784 = vmul.f32 %v720, %v768
  %v785 = vmul.f32 %v721, %v769
  %v786 = vmul.f32 %v722, %v770
  %v787 = vmul.f32 %v723, %v771
  %v788 = vmul.f32 %v724, %v772
  %v789 = vmul.f32 %v725, %v773
  %v790 = vmul.f32 %v726, %v774
  %v791 = vmul.f32 %v727, %v775
  %v792 = vmul.f32 %v728, %v776
  %v793 = vpack.c.bf16 %v778, %v777
  %v794 = vpack.c.bf16 %v780, %v779
  %v795 = vpack.c.bf16 %v782, %v781
  %v796 = vpack.c.bf16 %v784, %v783
  %v797 = vpack.c.bf16 %v786, %v785
  %v798 = vpack.c.bf16 %v788, %v787
  %v799 = vpack.c.bf16 %v790, %v789
  %v800 = vpack.c.bf16 %v792, %v791
  %809 = vrot.lane.b32.xlu0 %v430, 120
  %v810 = vpop.permute.xlu0 %809
  %811 = vrot.lane.b32.xlu0 %v431, 120
  %v812 = vpop.permute.xlu0 %811
  %813 = vrot.lane.b32.xlu0 %v432, 120
  %v814 = vpop.permute.xlu0 %813
  %815 = vrot.lane.b32.xlu0 %v433, 120
  %v816 = vpop.permute.xlu0 %815
  %817 = vrot.lane.b32.xlu0 %v434, 120
  %v818 = vpop.permute.xlu0 %817
  %819 = vrot.lane.b32.xlu0 %v435, 120
  %v820 = vpop.permute.xlu0 %819
  %821 = vrot.lane.b32.xlu0 %v436, 120
  %v822 = vpop.permute.xlu0 %821
  %823 = vrot.lane.b32.xlu0 %v437, 120
  %v824 = vpop.permute.xlu0 %823
  %833 = vmatpush.bf16.msra.mxu0 %v824
  %834 = vmatpush.bf16.msra.mxu0 %v822
  %835 = vmatpush.bf16.msra.mxu0 %v820
  %836 = vmatpush.bf16.msra.mxu0 %v818
  %837 = vmatpush.bf16.msra.mxu0 %v816
  %838 = vmatpush.bf16.msra.mxu0 %v814
  %839 = vmatpush.bf16.msra.mxu0 %v812
  %840 = vmatpush.bf16.msra.mxu0 %v810
  %841 = vmatmul.bf16.gmra.mxu0 %v793
  %v842 = vpop.f32.mrf.mxu0
  %v843 = vadd.f32 0.0, %v842
  %v844 = vpop.f32.mrf.mxu0
  %v845 = vadd.f32 0.0, %v844
  %846 = vmatmul.bf16.gmra.mxu0 %v794
  %v847 = vpop.f32.mrf.mxu0
  %v848 = vadd.f32 0.0, %v847
  %v849 = vpop.f32.mrf.mxu0
  %v850 = vadd.f32 0.0, %v849
  %851 = vmatmul.bf16.gmra.mxu0 %v795
  %v852 = vpop.f32.mrf.mxu0
  %v853 = vadd.f32 0.0, %v852
  %v854 = vpop.f32.mrf.mxu0
  %v855 = vadd.f32 0.0, %v854
  %856 = vmatmul.bf16.gmra.mxu0 %v796
  %v857 = vpop.f32.mrf.mxu0
  %v858 = vadd.f32 0.0, %v857
  %v859 = vpop.f32.mrf.mxu0
  %v860 = vadd.f32 0.0, %v859
  %861 = vmatmul.bf16.gmra.mxu0 %v797
  %v862 = vpop.f32.mrf.mxu0
  %v863 = vadd.f32 0.0, %v862
  %v864 = vpop.f32.mrf.mxu0
  %v865 = vadd.f32 0.0, %v864
  %866 = vmatmul.bf16.gmra.mxu0 %v798
  %v867 = vpop.f32.mrf.mxu0
  %v868 = vadd.f32 0.0, %v867
  %v869 = vpop.f32.mrf.mxu0
  %v870 = vadd.f32 0.0, %v869
  %871 = vmatmul.bf16.gmra.mxu0 %v799
  %v872 = vpop.f32.mrf.mxu0
  %v873 = vadd.f32 0.0, %v872
  %v874 = vpop.f32.mrf.mxu0
  %v875 = vadd.f32 0.0, %v874
  %876 = vmatmul.bf16.gmra.mxu0 %v800
  %v877 = vpop.f32.mrf.mxu0
  %v878 = vadd.f32 0.0, %v877
  %v879 = vpop.f32.mrf.mxu0
  %v880 = vadd.f32 0.0, %v879
  %881 = vdwg.mxu0
  %v882 = vld [vmem:[%s1 + $0x2] sm:$0x1]
  %883 = vset.pattern.permute.xlu0 2
  %884 = vperm.xlu0 %883, %v85
  %v885 = vpop.permute.xlu0 %884
  %887 = vset.pattern.permute.xlu0 2
  %888 = vperm.xlu0 %887, %v86
  %v889 = vpop.permute.xlu0 %888
  %891 = vset.pattern.permute.xlu0 2
  %892 = vperm.xlu0 %891, %v87
  %v893 = vpop.permute.xlu0 %892
  %895 = vset.pattern.permute.xlu0 2
  %896 = vperm.xlu0 %895, %v88
  %v897 = vpop.permute.xlu0 %896
  %899 = vset.pattern.permute.xlu0 2
  %900 = vperm.xlu0 %899, %v89
  %v901 = vpop.permute.xlu0 %900
  %903 = vset.pattern.permute.xlu0 2
  %904 = vperm.xlu0 %903, %v90
  %v905 = vpop.permute.xlu0 %904
  %907 = vset.pattern.permute.xlu0 2
  %908 = vperm.xlu0 %907, %v91
  %v909 = vpop.permute.xlu0 %908
  %911 = vset.pattern.permute.xlu0 2
  %912 = vperm.xlu0 %911, %v92
  %v913 = vpop.permute.xlu0 %912
  %915 = vset.pattern.permute.xlu0 2
  %916 = vperm.xlu0 %915, %v93
  %v917 = vpop.permute.xlu0 %916
  %919 = vset.pattern.permute.xlu0 2
  %920 = vperm.xlu0 %919, %v94
  %v921 = vpop.permute.xlu0 %920
  %923 = vset.pattern.permute.xlu0 2
  %924 = vperm.xlu0 %923, %v95
  %v925 = vpop.permute.xlu0 %924
  %927 = vset.pattern.permute.xlu0 2
  %928 = vperm.xlu0 %927, %v96
  %v929 = vpop.permute.xlu0 %928
  %931 = vset.pattern.permute.xlu0 2
  %932 = vperm.xlu0 %931, %v97
  %v933 = vpop.permute.xlu0 %932
  %935 = vset.pattern.permute.xlu0 2
  %936 = vperm.xlu0 %935, %v98
  %v937 = vpop.permute.xlu0 %936
  %939 = vset.pattern.permute.xlu0 2
  %940 = vperm.xlu0 %939, %v99
  %v941 = vpop.permute.xlu0 %940
  %943 = vset.pattern.permute.xlu0 2
  %944 = vperm.xlu0 %943, %v100
  %v945 = vpop.permute.xlu0 %944
  %v947 = vperm.slane %v882, 0
  %v948 = vadd.f32 %v885, %v947
  %v949 = vadd.f32 %v889, %v947
  %v950 = vadd.f32 %v893, %v947
  %v951 = vadd.f32 %v897, %v947
  %v952 = vadd.f32 %v901, %v947
  %v953 = vadd.f32 %v905, %v947
  %v954 = vadd.f32 %v909, %v947
  %v955 = vadd.f32 %v913, %v947
  %v956 = vadd.f32 %v917, %v947
  %v957 = vadd.f32 %v921, %v947
  %v958 = vadd.f32 %v925, %v947
  %v959 = vadd.f32 %v929, %v947
  %v960 = vadd.f32 %v933, %v947
  %v961 = vadd.f32 %v937, %v947
  %v962 = vadd.f32 %v941, %v947
  %v963 = vadd.f32 %v945, %v947
  %vm964 = vcmp.gt.f32.partialorder %v948, 0.0
  %vm965 = vcmp.gt.f32.partialorder %v949, 0.0
  %vm966 = vcmp.gt.f32.partialorder %v950, 0.0
  %vm967 = vcmp.gt.f32.partialorder %v951, 0.0
  %vm968 = vcmp.gt.f32.partialorder %v952, 0.0
  %vm969 = vcmp.gt.f32.partialorder %v953, 0.0
  %vm970 = vcmp.gt.f32.partialorder %v954, 0.0
  %vm971 = vcmp.gt.f32.partialorder %v955, 0.0
  %vm972 = vcmp.gt.f32.partialorder %v956, 0.0
  %vm973 = vcmp.gt.f32.partialorder %v957, 0.0
  %vm974 = vcmp.gt.f32.partialorder %v958, 0.0
  %vm975 = vcmp.gt.f32.partialorder %v959, 0.0
  %vm976 = vcmp.gt.f32.partialorder %v960, 0.0
  %vm977 = vcmp.gt.f32.partialorder %v961, 0.0
  %vm978 = vcmp.gt.f32.partialorder %v962, 0.0
  %vm979 = vcmp.gt.f32.partialorder %v963, 0.0
  %v980 = vmul.f32 %v948, 0.2
  %v981 = vmul.f32 %v949, 0.2
  %v982 = vmul.f32 %v950, 0.2
  %v983 = vmul.f32 %v951, 0.2
  %v984 = vmul.f32 %v952, 0.2
  %v985 = vmul.f32 %v953, 0.2
  %v986 = vmul.f32 %v954, 0.2
  %v987 = vmul.f32 %v955, 0.2
  %v988 = vmul.f32 %v956, 0.2
  %v989 = vmul.f32 %v957, 0.2
  %v990 = vmul.f32 %v958, 0.2
  %v991 = vmul.f32 %v959, 0.2
  %v992 = vmul.f32 %v960, 0.2
  %v993 = vmul.f32 %v961, 0.2
  %v994 = vmul.f32 %v962, 0.2
  %v995 = vmul.f32 %v963, 0.2
  %v996 = vsel %vm964, %v948, %v980
  %v997 = vsel %vm965, %v949, %v981
  %v998 = vsel %vm966, %v950, %v982
  %v999 = vsel %vm967, %v951, %v983
  %v1000 = vsel %vm968, %v952, %v984
  %v1001 = vsel %vm969, %v953, %v985
  %v1002 = vsel %vm970, %v954, %v986
  %v1003 = vsel %vm971, %v955, %v987
  %v1004 = vsel %vm972, %v956, %v988
  %v1005 = vsel %vm973, %v957, %v989
  %v1006 = vsel %vm974, %v958, %v990
  %v1007 = vsel %vm975, %v959, %v991
  %v1008 = vsel %vm976, %v960, %v992
  %v1009 = vsel %vm977, %v961, %v993
  %v1010 = vsel %vm978, %v962, %v994
  %v1011 = vsel %vm979, %v963, %v995
  %v1012 = vsel %vm52, %v996, -1e+30
  %v1013 = vsel %vm53, %v997, -1e+30
  %v1014 = vsel %vm54, %v998, -1e+30
  %v1015 = vsel %vm55, %v999, -1e+30
  %v1016 = vsel %vm56, %v1000, -1e+30
  %v1017 = vsel %vm57, %v1001, -1e+30
  %v1018 = vsel %vm58, %v1002, -1e+30
  %v1019 = vsel %vm59, %v1003, -1e+30
  %v1020 = vsel %vm60, %v1004, -1e+30
  %v1021 = vsel %vm61, %v1005, -1e+30
  %v1022 = vsel %vm62, %v1006, -1e+30
  %v1023 = vsel %vm63, %v1007, -1e+30
  %v1024 = vsel %vm64, %v1008, -1e+30
  %v1025 = vsel %vm65, %v1009, -1e+30
  %v1026 = vsel %vm66, %v1010, -1e+30
  %v1027 = vsel %vm67, %v1011, -1e+30
  %1028 = vmax.xlane.f32.xlu0 %v1012
  %v1029 = vpop.xlane.xlu0 %1028
  %1030 = vmax.xlane.f32.xlu0 %v1013
  %v1031 = vpop.xlane.xlu0 %1030
  %1032 = vmax.xlane.f32.xlu0 %v1014
  %v1033 = vpop.xlane.xlu0 %1032
  %1034 = vmax.xlane.f32.xlu0 %v1015
  %v1035 = vpop.xlane.xlu0 %1034
  %1036 = vmax.xlane.f32.xlu0 %v1016
  %v1037 = vpop.xlane.xlu0 %1036
  %1038 = vmax.xlane.f32.xlu0 %v1017
  %v1039 = vpop.xlane.xlu0 %1038
  %1040 = vmax.xlane.f32.xlu0 %v1018
  %v1041 = vpop.xlane.xlu0 %1040
  %1042 = vmax.xlane.f32.xlu0 %v1019
  %v1043 = vpop.xlane.xlu0 %1042
  %1044 = vmax.xlane.f32.xlu0 %v1020
  %v1045 = vpop.xlane.xlu0 %1044
  %1046 = vmax.xlane.f32.xlu0 %v1021
  %v1047 = vpop.xlane.xlu0 %1046
  %1048 = vmax.xlane.f32.xlu0 %v1022
  %v1049 = vpop.xlane.xlu0 %1048
  %1050 = vmax.xlane.f32.xlu0 %v1023
  %v1051 = vpop.xlane.xlu0 %1050
  %1052 = vmax.xlane.f32.xlu0 %v1024
  %v1053 = vpop.xlane.xlu0 %1052
  %1054 = vmax.xlane.f32.xlu0 %v1025
  %v1055 = vpop.xlane.xlu0 %1054
  %1056 = vmax.xlane.f32.xlu0 %v1026
  %v1057 = vpop.xlane.xlu0 %1056
  %1058 = vmax.xlane.f32.xlu0 %v1027
  %v1059 = vpop.xlane.xlu0 %1058
  %v1060 = vsub.f32 %v1012, %v1029
  %v1061 = vsub.f32 %v1013, %v1031
  %v1062 = vsub.f32 %v1014, %v1033
  %v1063 = vsub.f32 %v1015, %v1035
  %v1064 = vsub.f32 %v1016, %v1037
  %v1065 = vsub.f32 %v1017, %v1039
  %v1066 = vsub.f32 %v1018, %v1041
  %v1067 = vsub.f32 %v1019, %v1043
  %v1068 = vsub.f32 %v1020, %v1045
  %v1069 = vsub.f32 %v1021, %v1047
  %v1070 = vsub.f32 %v1022, %v1049
  %v1071 = vsub.f32 %v1023, %v1051
  %v1072 = vsub.f32 %v1024, %v1053
  %v1073 = vsub.f32 %v1025, %v1055
  %v1074 = vsub.f32 %v1026, %v1057
  %v1075 = vsub.f32 %v1027, %v1059
  %v1076 = vmul.f32 %v1060, 1.442695
  %v1077 = vpow.pop %v1076
  %v1078 = vmul.f32 %v1061, 1.442695
  %v1079 = vpow.pop %v1078
  %v1080 = vmul.f32 %v1062, 1.442695
  %v1081 = vpow.pop %v1080
  %v1082 = vmul.f32 %v1063, 1.442695
  %v1083 = vpow.pop %v1082
  %v1084 = vmul.f32 %v1064, 1.442695
  %v1085 = vpow.pop %v1084
  %v1086 = vmul.f32 %v1065, 1.442695
  %v1087 = vpow.pop %v1086
  %v1088 = vmul.f32 %v1066, 1.442695
  %v1089 = vpow.pop %v1088
  %v1090 = vmul.f32 %v1067, 1.442695
  %v1091 = vpow.pop %v1090
  %v1092 = vmul.f32 %v1068, 1.442695
  %v1093 = vpow.pop %v1092
  %v1094 = vmul.f32 %v1069, 1.442695
  %v1095 = vpow.pop %v1094
  %v1096 = vmul.f32 %v1070, 1.442695
  %v1097 = vpow.pop %v1096
  %v1098 = vmul.f32 %v1071, 1.442695
  %v1099 = vpow.pop %v1098
  %v1100 = vmul.f32 %v1072, 1.442695
  %v1101 = vpow.pop %v1100
  %v1102 = vmul.f32 %v1073, 1.442695
  %v1103 = vpow.pop %v1102
  %v1104 = vmul.f32 %v1074, 1.442695
  %v1105 = vpow.pop %v1104
  %v1106 = vmul.f32 %v1075, 1.442695
  %v1107 = vpow.pop %v1106
  %v1108 = vsel %vm52, %v1077, 0.0
  %v1109 = vsel %vm53, %v1079, 0.0
  %v1110 = vsel %vm54, %v1081, 0.0
  %v1111 = vsel %vm55, %v1083, 0.0
  %v1112 = vsel %vm56, %v1085, 0.0
  %v1113 = vsel %vm57, %v1087, 0.0
  %v1114 = vsel %vm58, %v1089, 0.0
  %v1115 = vsel %vm59, %v1091, 0.0
  %v1116 = vsel %vm60, %v1093, 0.0
  %v1117 = vsel %vm61, %v1095, 0.0
  %v1118 = vsel %vm62, %v1097, 0.0
  %v1119 = vsel %vm63, %v1099, 0.0
  %v1120 = vsel %vm64, %v1101, 0.0
  %v1121 = vsel %vm65, %v1103, 0.0
  %v1122 = vsel %vm66, %v1105, 0.0
  %v1123 = vsel %vm67, %v1107, 0.0
  %1124 = vadd.xlane.f32.xlu0 %v1108
  %v1125 = vpop.xlane.xlu0 %1124
  %1126 = vadd.xlane.f32.xlu0 %v1109
  %v1127 = vpop.xlane.xlu0 %1126
  %1128 = vadd.xlane.f32.xlu0 %v1110
  %v1129 = vpop.xlane.xlu0 %1128
  %1130 = vadd.xlane.f32.xlu0 %v1111
  %v1131 = vpop.xlane.xlu0 %1130
  %1132 = vadd.xlane.f32.xlu0 %v1112
  %v1133 = vpop.xlane.xlu0 %1132
  %1134 = vadd.xlane.f32.xlu0 %v1113
  %v1135 = vpop.xlane.xlu0 %1134
  %1136 = vadd.xlane.f32.xlu0 %v1114
  %v1137 = vpop.xlane.xlu0 %1136
  %1138 = vadd.xlane.f32.xlu0 %v1115
  %v1139 = vpop.xlane.xlu0 %1138
  %1140 = vadd.xlane.f32.xlu0 %v1116
  %v1141 = vpop.xlane.xlu0 %1140
  %1142 = vadd.xlane.f32.xlu0 %v1117
  %v1143 = vpop.xlane.xlu0 %1142
  %1144 = vadd.xlane.f32.xlu0 %v1118
  %v1145 = vpop.xlane.xlu0 %1144
  %1146 = vadd.xlane.f32.xlu0 %v1119
  %v1147 = vpop.xlane.xlu0 %1146
  %1148 = vadd.xlane.f32.xlu0 %v1120
  %v1149 = vpop.xlane.xlu0 %1148
  %1150 = vadd.xlane.f32.xlu0 %v1121
  %v1151 = vpop.xlane.xlu0 %1150
  %1152 = vadd.xlane.f32.xlu0 %v1122
  %v1153 = vpop.xlane.xlu0 %1152
  %1154 = vadd.xlane.f32.xlu0 %v1123
  %v1155 = vpop.xlane.xlu0 %1154
  %v1156 = vrcp.pop %v1125
  %v1157 = vrcp.pop %v1127
  %v1158 = vrcp.pop %v1129
  %v1159 = vrcp.pop %v1131
  %v1160 = vrcp.pop %v1133
  %v1161 = vrcp.pop %v1135
  %v1162 = vrcp.pop %v1137
  %v1163 = vrcp.pop %v1139
  %v1164 = vrcp.pop %v1141
  %v1165 = vrcp.pop %v1143
  %v1166 = vrcp.pop %v1145
  %v1167 = vrcp.pop %v1147
  %v1168 = vrcp.pop %v1149
  %v1169 = vrcp.pop %v1151
  %v1170 = vrcp.pop %v1153
  %v1171 = vrcp.pop %v1155
  %v1172 = vmul.f32 %v1108, %v1156
  %v1173 = vmul.f32 %v1109, %v1157
  %v1174 = vmul.f32 %v1110, %v1158
  %v1175 = vmul.f32 %v1111, %v1159
  %v1176 = vmul.f32 %v1112, %v1160
  %v1177 = vmul.f32 %v1113, %v1161
  %v1178 = vmul.f32 %v1114, %v1162
  %v1179 = vmul.f32 %v1115, %v1163
  %v1180 = vmul.f32 %v1116, %v1164
  %v1181 = vmul.f32 %v1117, %v1165
  %v1182 = vmul.f32 %v1118, %v1166
  %v1183 = vmul.f32 %v1119, %v1167
  %v1184 = vmul.f32 %v1120, %v1168
  %v1185 = vmul.f32 %v1121, %v1169
  %v1186 = vmul.f32 %v1122, %v1170
  %v1187 = vmul.f32 %v1123, %v1171
  %v1188 = vpack.c.bf16 %v1173, %v1172
  %v1189 = vpack.c.bf16 %v1175, %v1174
  %v1190 = vpack.c.bf16 %v1177, %v1176
  %v1191 = vpack.c.bf16 %v1179, %v1178
  %v1192 = vpack.c.bf16 %v1181, %v1180
  %v1193 = vpack.c.bf16 %v1183, %v1182
  %v1194 = vpack.c.bf16 %v1185, %v1184
  %v1195 = vpack.c.bf16 %v1187, %v1186
  %1196 = vrot.lane.b32.xlu0 %v430, 112
  %v1197 = vpop.permute.xlu0 %1196
  %1198 = vrot.lane.b32.xlu0 %v431, 112
  %v1199 = vpop.permute.xlu0 %1198
  %1200 = vrot.lane.b32.xlu0 %v432, 112
  %v1201 = vpop.permute.xlu0 %1200
  %1202 = vrot.lane.b32.xlu0 %v433, 112
  %v1203 = vpop.permute.xlu0 %1202
  %1204 = vrot.lane.b32.xlu0 %v434, 112
  %v1205 = vpop.permute.xlu0 %1204
  %1206 = vrot.lane.b32.xlu0 %v435, 112
  %v1207 = vpop.permute.xlu0 %1206
  %1208 = vrot.lane.b32.xlu0 %v436, 112
  %v1209 = vpop.permute.xlu0 %1208
  %1210 = vrot.lane.b32.xlu0 %v437, 112
  %v1211 = vpop.permute.xlu0 %1210
  %1220 = vmatpush.bf16.msra.mxu0 %v1211
  %1221 = vmatpush.bf16.msra.mxu0 %v1209
  %1222 = vmatpush.bf16.msra.mxu0 %v1207
  %1223 = vmatpush.bf16.msra.mxu0 %v1205
  %1224 = vmatpush.bf16.msra.mxu0 %v1203
  %1225 = vmatpush.bf16.msra.mxu0 %v1201
  %1226 = vmatpush.bf16.msra.mxu0 %v1199
  %1227 = vmatpush.bf16.msra.mxu0 %v1197
  %1228 = vmatmul.bf16.gmra.mxu0 %v1188
  %v1229 = vpop.f32.mrf.mxu0
  %v1230 = vadd.f32 0.0, %v1229
  %v1231 = vpop.f32.mrf.mxu0
  %v1232 = vadd.f32 0.0, %v1231
  %1233 = vmatmul.bf16.gmra.mxu0 %v1189
  %v1234 = vpop.f32.mrf.mxu0
  %v1235 = vadd.f32 0.0, %v1234
  %v1236 = vpop.f32.mrf.mxu0
  %v1237 = vadd.f32 0.0, %v1236
  %1238 = vmatmul.bf16.gmra.mxu0 %v1190
  %v1239 = vpop.f32.mrf.mxu0
  %v1240 = vadd.f32 0.0, %v1239
  %v1241 = vpop.f32.mrf.mxu0
  %v1242 = vadd.f32 0.0, %v1241
  %1243 = vmatmul.bf16.gmra.mxu0 %v1191
  %v1244 = vpop.f32.mrf.mxu0
  %v1245 = vadd.f32 0.0, %v1244
  %v1246 = vpop.f32.mrf.mxu0
  %v1247 = vadd.f32 0.0, %v1246
  %1248 = vmatmul.bf16.gmra.mxu0 %v1192
  %v1249 = vpop.f32.mrf.mxu0
  %v1250 = vadd.f32 0.0, %v1249
  %v1251 = vpop.f32.mrf.mxu0
  %v1252 = vadd.f32 0.0, %v1251
  %1253 = vmatmul.bf16.gmra.mxu0 %v1193
  %v1254 = vpop.f32.mrf.mxu0
  %v1255 = vadd.f32 0.0, %v1254
  %v1256 = vpop.f32.mrf.mxu0
  %v1257 = vadd.f32 0.0, %v1256
  %1258 = vmatmul.bf16.gmra.mxu0 %v1194
  %v1259 = vpop.f32.mrf.mxu0
  %v1260 = vadd.f32 0.0, %v1259
  %v1261 = vpop.f32.mrf.mxu0
  %v1262 = vadd.f32 0.0, %v1261
  %1263 = vmatmul.bf16.gmra.mxu0 %v1195
  %v1264 = vpop.f32.mrf.mxu0
  %v1265 = vadd.f32 0.0, %v1264
  %v1266 = vpop.f32.mrf.mxu0
  %v1267 = vadd.f32 0.0, %v1266
  %1268 = vdwg.mxu0
  %v1269 = vld [vmem:[%s1 + $0x3] sm:$0x1]
  %1270 = vset.pattern.permute.xlu0 3
  %1271 = vperm.xlu0 %1270, %v85
  %v1272 = vpop.permute.xlu0 %1271
  %1274 = vset.pattern.permute.xlu0 3
  %1275 = vperm.xlu0 %1274, %v86
  %v1276 = vpop.permute.xlu0 %1275
  %1278 = vset.pattern.permute.xlu0 3
  %1279 = vperm.xlu0 %1278, %v87
  %v1280 = vpop.permute.xlu0 %1279
  %1282 = vset.pattern.permute.xlu0 3
  %1283 = vperm.xlu0 %1282, %v88
  %v1284 = vpop.permute.xlu0 %1283
  %1286 = vset.pattern.permute.xlu0 3
  %1287 = vperm.xlu0 %1286, %v89
  %v1288 = vpop.permute.xlu0 %1287
  %1290 = vset.pattern.permute.xlu0 3
  %1291 = vperm.xlu0 %1290, %v90
  %v1292 = vpop.permute.xlu0 %1291
  %1294 = vset.pattern.permute.xlu0 3
  %1295 = vperm.xlu0 %1294, %v91
  %v1296 = vpop.permute.xlu0 %1295
  %1298 = vset.pattern.permute.xlu0 3
  %1299 = vperm.xlu0 %1298, %v92
  %v1300 = vpop.permute.xlu0 %1299
  %1302 = vset.pattern.permute.xlu0 3
  %1303 = vperm.xlu0 %1302, %v93
  %v1304 = vpop.permute.xlu0 %1303
  %1306 = vset.pattern.permute.xlu0 3
  %1307 = vperm.xlu0 %1306, %v94
  %v1308 = vpop.permute.xlu0 %1307
  %1310 = vset.pattern.permute.xlu0 3
  %1311 = vperm.xlu0 %1310, %v95
  %v1312 = vpop.permute.xlu0 %1311
  %1314 = vset.pattern.permute.xlu0 3
  %1315 = vperm.xlu0 %1314, %v96
  %v1316 = vpop.permute.xlu0 %1315
  %1318 = vset.pattern.permute.xlu0 3
  %1319 = vperm.xlu0 %1318, %v97
  %v1320 = vpop.permute.xlu0 %1319
  %1322 = vset.pattern.permute.xlu0 3
  %1323 = vperm.xlu0 %1322, %v98
  %v1324 = vpop.permute.xlu0 %1323
  %1326 = vset.pattern.permute.xlu0 3
  %1327 = vperm.xlu0 %1326, %v99
  %v1328 = vpop.permute.xlu0 %1327
  %1330 = vset.pattern.permute.xlu0 3
  %1331 = vperm.xlu0 %1330, %v100
  %v1332 = vpop.permute.xlu0 %1331
  %v1334 = vperm.slane %v1269, 0
  %v1335 = vadd.f32 %v1272, %v1334
  %v1336 = vadd.f32 %v1276, %v1334
  %v1337 = vadd.f32 %v1280, %v1334
  %v1338 = vadd.f32 %v1284, %v1334
  %v1339 = vadd.f32 %v1288, %v1334
  %v1340 = vadd.f32 %v1292, %v1334
  %v1341 = vadd.f32 %v1296, %v1334
  %v1342 = vadd.f32 %v1300, %v1334
  %v1343 = vadd.f32 %v1304, %v1334
  %v1344 = vadd.f32 %v1308, %v1334
  %v1345 = vadd.f32 %v1312, %v1334
  %v1346 = vadd.f32 %v1316, %v1334
  %v1347 = vadd.f32 %v1320, %v1334
  %v1348 = vadd.f32 %v1324, %v1334
  %v1349 = vadd.f32 %v1328, %v1334
  %v1350 = vadd.f32 %v1332, %v1334
  %vm1351 = vcmp.gt.f32.partialorder %v1335, 0.0
  %vm1352 = vcmp.gt.f32.partialorder %v1336, 0.0
  %vm1353 = vcmp.gt.f32.partialorder %v1337, 0.0
  %vm1354 = vcmp.gt.f32.partialorder %v1338, 0.0
  %vm1355 = vcmp.gt.f32.partialorder %v1339, 0.0
  %vm1356 = vcmp.gt.f32.partialorder %v1340, 0.0
  %vm1357 = vcmp.gt.f32.partialorder %v1341, 0.0
  %vm1358 = vcmp.gt.f32.partialorder %v1342, 0.0
  %vm1359 = vcmp.gt.f32.partialorder %v1343, 0.0
  %vm1360 = vcmp.gt.f32.partialorder %v1344, 0.0
  %vm1361 = vcmp.gt.f32.partialorder %v1345, 0.0
  %vm1362 = vcmp.gt.f32.partialorder %v1346, 0.0
  %vm1363 = vcmp.gt.f32.partialorder %v1347, 0.0
  %vm1364 = vcmp.gt.f32.partialorder %v1348, 0.0
  %vm1365 = vcmp.gt.f32.partialorder %v1349, 0.0
  %vm1366 = vcmp.gt.f32.partialorder %v1350, 0.0
  %v1367 = vmul.f32 %v1335, 0.2
  %v1368 = vmul.f32 %v1336, 0.2
  %v1369 = vmul.f32 %v1337, 0.2
  %v1370 = vmul.f32 %v1338, 0.2
  %v1371 = vmul.f32 %v1339, 0.2
  %v1372 = vmul.f32 %v1340, 0.2
  %v1373 = vmul.f32 %v1341, 0.2
  %v1374 = vmul.f32 %v1342, 0.2
  %v1375 = vmul.f32 %v1343, 0.2
  %v1376 = vmul.f32 %v1344, 0.2
  %v1377 = vmul.f32 %v1345, 0.2
  %v1378 = vmul.f32 %v1346, 0.2
  %v1379 = vmul.f32 %v1347, 0.2
  %v1380 = vmul.f32 %v1348, 0.2
  %v1381 = vmul.f32 %v1349, 0.2
  %v1382 = vmul.f32 %v1350, 0.2
  %v1383 = vsel %vm1351, %v1335, %v1367
  %v1384 = vsel %vm1352, %v1336, %v1368
  %v1385 = vsel %vm1353, %v1337, %v1369
  %v1386 = vsel %vm1354, %v1338, %v1370
  %v1387 = vsel %vm1355, %v1339, %v1371
  %v1388 = vsel %vm1356, %v1340, %v1372
  %v1389 = vsel %vm1357, %v1341, %v1373
  %v1390 = vsel %vm1358, %v1342, %v1374
  %v1391 = vsel %vm1359, %v1343, %v1375
  %v1392 = vsel %vm1360, %v1344, %v1376
  %v1393 = vsel %vm1361, %v1345, %v1377
  %v1394 = vsel %vm1362, %v1346, %v1378
  %v1395 = vsel %vm1363, %v1347, %v1379
  %v1396 = vsel %vm1364, %v1348, %v1380
  %v1397 = vsel %vm1365, %v1349, %v1381
  %v1398 = vsel %vm1366, %v1350, %v1382
  %v1399 = vsel %vm52, %v1383, -1e+30
  %v1400 = vsel %vm53, %v1384, -1e+30
  %v1401 = vsel %vm54, %v1385, -1e+30
  %v1402 = vsel %vm55, %v1386, -1e+30
  %v1403 = vsel %vm56, %v1387, -1e+30
  %v1404 = vsel %vm57, %v1388, -1e+30
  %v1405 = vsel %vm58, %v1389, -1e+30
  %v1406 = vsel %vm59, %v1390, -1e+30
  %v1407 = vsel %vm60, %v1391, -1e+30
  %v1408 = vsel %vm61, %v1392, -1e+30
  %v1409 = vsel %vm62, %v1393, -1e+30
  %v1410 = vsel %vm63, %v1394, -1e+30
  %v1411 = vsel %vm64, %v1395, -1e+30
  %v1412 = vsel %vm65, %v1396, -1e+30
  %v1413 = vsel %vm66, %v1397, -1e+30
  %v1414 = vsel %vm67, %v1398, -1e+30
  %1415 = vmax.xlane.f32.xlu0 %v1399
  %v1416 = vpop.xlane.xlu0 %1415
  %1417 = vmax.xlane.f32.xlu0 %v1400
  %v1418 = vpop.xlane.xlu0 %1417
  %1419 = vmax.xlane.f32.xlu0 %v1401
  %v1420 = vpop.xlane.xlu0 %1419
  %1421 = vmax.xlane.f32.xlu0 %v1402
  %v1422 = vpop.xlane.xlu0 %1421
  %1423 = vmax.xlane.f32.xlu0 %v1403
  %v1424 = vpop.xlane.xlu0 %1423
  %1425 = vmax.xlane.f32.xlu0 %v1404
  %v1426 = vpop.xlane.xlu0 %1425
  %1427 = vmax.xlane.f32.xlu0 %v1405
  %v1428 = vpop.xlane.xlu0 %1427
  %1429 = vmax.xlane.f32.xlu0 %v1406
  %v1430 = vpop.xlane.xlu0 %1429
  %1431 = vmax.xlane.f32.xlu0 %v1407
  %v1432 = vpop.xlane.xlu0 %1431
  %1433 = vmax.xlane.f32.xlu0 %v1408
  %v1434 = vpop.xlane.xlu0 %1433
  %1435 = vmax.xlane.f32.xlu0 %v1409
  %v1436 = vpop.xlane.xlu0 %1435
  %1437 = vmax.xlane.f32.xlu0 %v1410
  %v1438 = vpop.xlane.xlu0 %1437
  %1439 = vmax.xlane.f32.xlu0 %v1411
  %v1440 = vpop.xlane.xlu0 %1439
  %1441 = vmax.xlane.f32.xlu0 %v1412
  %v1442 = vpop.xlane.xlu0 %1441
  %1443 = vmax.xlane.f32.xlu0 %v1413
  %v1444 = vpop.xlane.xlu0 %1443
  %1445 = vmax.xlane.f32.xlu0 %v1414
  %v1446 = vpop.xlane.xlu0 %1445
  %v1447 = vsub.f32 %v1399, %v1416
  %v1448 = vsub.f32 %v1400, %v1418
  %v1449 = vsub.f32 %v1401, %v1420
  %v1450 = vsub.f32 %v1402, %v1422
  %v1451 = vsub.f32 %v1403, %v1424
  %v1452 = vsub.f32 %v1404, %v1426
  %v1453 = vsub.f32 %v1405, %v1428
  %v1454 = vsub.f32 %v1406, %v1430
  %v1455 = vsub.f32 %v1407, %v1432
  %v1456 = vsub.f32 %v1408, %v1434
  %v1457 = vsub.f32 %v1409, %v1436
  %v1458 = vsub.f32 %v1410, %v1438
  %v1459 = vsub.f32 %v1411, %v1440
  %v1460 = vsub.f32 %v1412, %v1442
  %v1461 = vsub.f32 %v1413, %v1444
  %v1462 = vsub.f32 %v1414, %v1446
  %v1463 = vmul.f32 %v1447, 1.442695
  %v1464 = vpow.pop %v1463
  %v1465 = vmul.f32 %v1448, 1.442695
  %v1466 = vpow.pop %v1465
  %v1467 = vmul.f32 %v1449, 1.442695
  %v1468 = vpow.pop %v1467
  %v1469 = vmul.f32 %v1450, 1.442695
  %v1470 = vpow.pop %v1469
  %v1471 = vmul.f32 %v1451, 1.442695
  %v1472 = vpow.pop %v1471
  %v1473 = vmul.f32 %v1452, 1.442695
  %v1474 = vpow.pop %v1473
  %v1475 = vmul.f32 %v1453, 1.442695
  %v1476 = vpow.pop %v1475
  %v1477 = vmul.f32 %v1454, 1.442695
  %v1478 = vpow.pop %v1477
  %v1479 = vmul.f32 %v1455, 1.442695
  %v1480 = vpow.pop %v1479
  %v1481 = vmul.f32 %v1456, 1.442695
  %v1482 = vpow.pop %v1481
  %v1483 = vmul.f32 %v1457, 1.442695
  %v1484 = vpow.pop %v1483
  %v1485 = vmul.f32 %v1458, 1.442695
  %v1486 = vpow.pop %v1485
  %v1487 = vmul.f32 %v1459, 1.442695
  %v1488 = vpow.pop %v1487
  %v1489 = vmul.f32 %v1460, 1.442695
  %v1490 = vpow.pop %v1489
  %v1491 = vmul.f32 %v1461, 1.442695
  %v1492 = vpow.pop %v1491
  %v1493 = vmul.f32 %v1462, 1.442695
  %v1494 = vpow.pop %v1493
  %v1495 = vsel %vm52, %v1464, 0.0
  %v1496 = vsel %vm53, %v1466, 0.0
  %v1497 = vsel %vm54, %v1468, 0.0
  %v1498 = vsel %vm55, %v1470, 0.0
  %v1499 = vsel %vm56, %v1472, 0.0
  %v1500 = vsel %vm57, %v1474, 0.0
  %v1501 = vsel %vm58, %v1476, 0.0
  %v1502 = vsel %vm59, %v1478, 0.0
  %v1503 = vsel %vm60, %v1480, 0.0
  %v1504 = vsel %vm61, %v1482, 0.0
  %v1505 = vsel %vm62, %v1484, 0.0
  %v1506 = vsel %vm63, %v1486, 0.0
  %v1507 = vsel %vm64, %v1488, 0.0
  %v1508 = vsel %vm65, %v1490, 0.0
  %v1509 = vsel %vm66, %v1492, 0.0
  %v1510 = vsel %vm67, %v1494, 0.0
  %1511 = vadd.xlane.f32.xlu0 %v1495
  %v1512 = vpop.xlane.xlu0 %1511
  %1513 = vadd.xlane.f32.xlu0 %v1496
  %v1514 = vpop.xlane.xlu0 %1513
  %1515 = vadd.xlane.f32.xlu0 %v1497
  %v1516 = vpop.xlane.xlu0 %1515
  %1517 = vadd.xlane.f32.xlu0 %v1498
  %v1518 = vpop.xlane.xlu0 %1517
  %1519 = vadd.xlane.f32.xlu0 %v1499
  %v1520 = vpop.xlane.xlu0 %1519
  %1521 = vadd.xlane.f32.xlu0 %v1500
  %v1522 = vpop.xlane.xlu0 %1521
  %1523 = vadd.xlane.f32.xlu0 %v1501
  %v1524 = vpop.xlane.xlu0 %1523
  %1525 = vadd.xlane.f32.xlu0 %v1502
  %v1526 = vpop.xlane.xlu0 %1525
  %1527 = vadd.xlane.f32.xlu0 %v1503
  %v1528 = vpop.xlane.xlu0 %1527
  %1529 = vadd.xlane.f32.xlu0 %v1504
  %v1530 = vpop.xlane.xlu0 %1529
  %1531 = vadd.xlane.f32.xlu0 %v1505
  %v1532 = vpop.xlane.xlu0 %1531
  %1533 = vadd.xlane.f32.xlu0 %v1506
  %v1534 = vpop.xlane.xlu0 %1533
  %1535 = vadd.xlane.f32.xlu0 %v1507
  %v1536 = vpop.xlane.xlu0 %1535
  %1537 = vadd.xlane.f32.xlu0 %v1508
  %v1538 = vpop.xlane.xlu0 %1537
  %1539 = vadd.xlane.f32.xlu0 %v1509
  %v1540 = vpop.xlane.xlu0 %1539
  %1541 = vadd.xlane.f32.xlu0 %v1510
  %v1542 = vpop.xlane.xlu0 %1541
  %v1543 = vrcp.pop %v1512
  %v1544 = vrcp.pop %v1514
  %v1545 = vrcp.pop %v1516
  %v1546 = vrcp.pop %v1518
  %v1547 = vrcp.pop %v1520
  %v1548 = vrcp.pop %v1522
  %v1549 = vrcp.pop %v1524
  %v1550 = vrcp.pop %v1526
  %v1551 = vrcp.pop %v1528
  %v1552 = vrcp.pop %v1530
  %v1553 = vrcp.pop %v1532
  %v1554 = vrcp.pop %v1534
  %v1555 = vrcp.pop %v1536
  %v1556 = vrcp.pop %v1538
  %v1557 = vrcp.pop %v1540
  %v1558 = vrcp.pop %v1542
  %v1559 = vmul.f32 %v1495, %v1543
  %v1560 = vmul.f32 %v1496, %v1544
  %v1561 = vmul.f32 %v1497, %v1545
  %v1562 = vmul.f32 %v1498, %v1546
  %v1563 = vmul.f32 %v1499, %v1547
  %v1564 = vmul.f32 %v1500, %v1548
  %v1565 = vmul.f32 %v1501, %v1549
  %v1566 = vmul.f32 %v1502, %v1550
  %v1567 = vmul.f32 %v1503, %v1551
  %v1568 = vmul.f32 %v1504, %v1552
  %v1569 = vmul.f32 %v1505, %v1553
  %v1570 = vmul.f32 %v1506, %v1554
  %v1571 = vmul.f32 %v1507, %v1555
  %v1572 = vmul.f32 %v1508, %v1556
  %v1573 = vmul.f32 %v1509, %v1557
  %v1574 = vmul.f32 %v1510, %v1558
  %v1575 = vpack.c.bf16 %v1560, %v1559
  %v1576 = vpack.c.bf16 %v1562, %v1561
  %v1577 = vpack.c.bf16 %v1564, %v1563
  %v1578 = vpack.c.bf16 %v1566, %v1565
  %v1579 = vpack.c.bf16 %v1568, %v1567
  %v1580 = vpack.c.bf16 %v1570, %v1569
  %v1581 = vpack.c.bf16 %v1572, %v1571
  %v1582 = vpack.c.bf16 %v1574, %v1573
  %1583 = vrot.lane.b32.xlu0 %v430, 104
  %v1584 = vpop.permute.xlu0 %1583
  %1585 = vrot.lane.b32.xlu0 %v431, 104
  %v1586 = vpop.permute.xlu0 %1585
  %1587 = vrot.lane.b32.xlu0 %v432, 104
  %v1588 = vpop.permute.xlu0 %1587
  %1589 = vrot.lane.b32.xlu0 %v433, 104
  %v1590 = vpop.permute.xlu0 %1589
  %1591 = vrot.lane.b32.xlu0 %v434, 104
  %v1592 = vpop.permute.xlu0 %1591
  %1593 = vrot.lane.b32.xlu0 %v435, 104
  %v1594 = vpop.permute.xlu0 %1593
  %1595 = vrot.lane.b32.xlu0 %v436, 104
  %v1596 = vpop.permute.xlu0 %1595
  %1597 = vrot.lane.b32.xlu0 %v437, 104
  %v1598 = vpop.permute.xlu0 %1597
  %1607 = vmatpush.bf16.msra.mxu0 %v1598
  %1608 = vmatpush.bf16.msra.mxu0 %v1596
  %1609 = vmatpush.bf16.msra.mxu0 %v1594
  %1610 = vmatpush.bf16.msra.mxu0 %v1592
  %1611 = vmatpush.bf16.msra.mxu0 %v1590
  %1612 = vmatpush.bf16.msra.mxu0 %v1588
  %1613 = vmatpush.bf16.msra.mxu0 %v1586
  %1614 = vmatpush.bf16.msra.mxu0 %v1584
  %1615 = vmatmul.bf16.gmra.mxu0 %v1575
  %v1616 = vpop.f32.mrf.mxu0
  %v1617 = vadd.f32 0.0, %v1616
  %v1618 = vpop.f32.mrf.mxu0
  %v1619 = vadd.f32 0.0, %v1618
  %1620 = vmatmul.bf16.gmra.mxu0 %v1576
  %v1621 = vpop.f32.mrf.mxu0
  %v1622 = vadd.f32 0.0, %v1621
  %v1623 = vpop.f32.mrf.mxu0
  %v1624 = vadd.f32 0.0, %v1623
  %1625 = vmatmul.bf16.gmra.mxu0 %v1577
  %v1626 = vpop.f32.mrf.mxu0
  %v1627 = vadd.f32 0.0, %v1626
  %v1628 = vpop.f32.mrf.mxu0
  %v1629 = vadd.f32 0.0, %v1628
  %1630 = vmatmul.bf16.gmra.mxu0 %v1578
  %v1631 = vpop.f32.mrf.mxu0
  %v1632 = vadd.f32 0.0, %v1631
  %v1633 = vpop.f32.mrf.mxu0
  %v1634 = vadd.f32 0.0, %v1633
  %1635 = vmatmul.bf16.gmra.mxu0 %v1579
  %v1636 = vpop.f32.mrf.mxu0
  %v1637 = vadd.f32 0.0, %v1636
  %v1638 = vpop.f32.mrf.mxu0
  %v1639 = vadd.f32 0.0, %v1638
  %1640 = vmatmul.bf16.gmra.mxu0 %v1580
  %v1641 = vpop.f32.mrf.mxu0
  %v1642 = vadd.f32 0.0, %v1641
  %v1643 = vpop.f32.mrf.mxu0
  %v1644 = vadd.f32 0.0, %v1643
  %1645 = vmatmul.bf16.gmra.mxu0 %v1581
  %v1646 = vpop.f32.mrf.mxu0
  %v1647 = vadd.f32 0.0, %v1646
  %v1648 = vpop.f32.mrf.mxu0
  %v1649 = vadd.f32 0.0, %v1648
  %1650 = vmatmul.bf16.gmra.mxu0 %v1582
  %v1651 = vpop.f32.mrf.mxu0
  %v1652 = vadd.f32 0.0, %v1651
  %v1653 = vpop.f32.mrf.mxu0
  %v1654 = vadd.f32 0.0, %v1653
  %1655 = vdwg.mxu0
  %v1656 = vld [vmem:[%s1 + $0x4] sm:$0x1]
  %1657 = vset.pattern.permute.xlu0 4
  %1658 = vperm.xlu0 %1657, %v85
  %v1659 = vpop.permute.xlu0 %1658
  %1661 = vset.pattern.permute.xlu0 4
  %1662 = vperm.xlu0 %1661, %v86
  %v1663 = vpop.permute.xlu0 %1662
  %1665 = vset.pattern.permute.xlu0 4
  %1666 = vperm.xlu0 %1665, %v87
  %v1667 = vpop.permute.xlu0 %1666
  %1669 = vset.pattern.permute.xlu0 4
  %1670 = vperm.xlu0 %1669, %v88
  %v1671 = vpop.permute.xlu0 %1670
  %1673 = vset.pattern.permute.xlu0 4
  %1674 = vperm.xlu0 %1673, %v89
  %v1675 = vpop.permute.xlu0 %1674
  %1677 = vset.pattern.permute.xlu0 4
  %1678 = vperm.xlu0 %1677, %v90
  %v1679 = vpop.permute.xlu0 %1678
  %1681 = vset.pattern.permute.xlu0 4
  %1682 = vperm.xlu0 %1681, %v91
  %v1683 = vpop.permute.xlu0 %1682
  %1685 = vset.pattern.permute.xlu0 4
  %1686 = vperm.xlu0 %1685, %v92
  %v1687 = vpop.permute.xlu0 %1686
  %1689 = vset.pattern.permute.xlu0 4
  %1690 = vperm.xlu0 %1689, %v93
  %v1691 = vpop.permute.xlu0 %1690
  %1693 = vset.pattern.permute.xlu0 4
  %1694 = vperm.xlu0 %1693, %v94
  %v1695 = vpop.permute.xlu0 %1694
  %1697 = vset.pattern.permute.xlu0 4
  %1698 = vperm.xlu0 %1697, %v95
  %v1699 = vpop.permute.xlu0 %1698
  %1701 = vset.pattern.permute.xlu0 4
  %1702 = vperm.xlu0 %1701, %v96
  %v1703 = vpop.permute.xlu0 %1702
  %1705 = vset.pattern.permute.xlu0 4
  %1706 = vperm.xlu0 %1705, %v97
  %v1707 = vpop.permute.xlu0 %1706
  %1709 = vset.pattern.permute.xlu0 4
  %1710 = vperm.xlu0 %1709, %v98
  %v1711 = vpop.permute.xlu0 %1710
  %1713 = vset.pattern.permute.xlu0 4
  %1714 = vperm.xlu0 %1713, %v99
  %v1715 = vpop.permute.xlu0 %1714
  %1717 = vset.pattern.permute.xlu0 4
  %1718 = vperm.xlu0 %1717, %v100
  %v1719 = vpop.permute.xlu0 %1718
  %v1721 = vperm.slane %v1656, 0
  %v1722 = vadd.f32 %v1659, %v1721
  %v1723 = vadd.f32 %v1663, %v1721
  %v1724 = vadd.f32 %v1667, %v1721
  %v1725 = vadd.f32 %v1671, %v1721
  %v1726 = vadd.f32 %v1675, %v1721
  %v1727 = vadd.f32 %v1679, %v1721
  %v1728 = vadd.f32 %v1683, %v1721
  %v1729 = vadd.f32 %v1687, %v1721
  %v1730 = vadd.f32 %v1691, %v1721
  %v1731 = vadd.f32 %v1695, %v1721
  %v1732 = vadd.f32 %v1699, %v1721
  %v1733 = vadd.f32 %v1703, %v1721
  %v1734 = vadd.f32 %v1707, %v1721
  %v1735 = vadd.f32 %v1711, %v1721
  %v1736 = vadd.f32 %v1715, %v1721
  %v1737 = vadd.f32 %v1719, %v1721
  %vm1738 = vcmp.gt.f32.partialorder %v1722, 0.0
  %vm1739 = vcmp.gt.f32.partialorder %v1723, 0.0
  %vm1740 = vcmp.gt.f32.partialorder %v1724, 0.0
  %vm1741 = vcmp.gt.f32.partialorder %v1725, 0.0
  %vm1742 = vcmp.gt.f32.partialorder %v1726, 0.0
  %vm1743 = vcmp.gt.f32.partialorder %v1727, 0.0
  %vm1744 = vcmp.gt.f32.partialorder %v1728, 0.0
  %vm1745 = vcmp.gt.f32.partialorder %v1729, 0.0
  %vm1746 = vcmp.gt.f32.partialorder %v1730, 0.0
  %vm1747 = vcmp.gt.f32.partialorder %v1731, 0.0
  %vm1748 = vcmp.gt.f32.partialorder %v1732, 0.0
  %vm1749 = vcmp.gt.f32.partialorder %v1733, 0.0
  %vm1750 = vcmp.gt.f32.partialorder %v1734, 0.0
  %vm1751 = vcmp.gt.f32.partialorder %v1735, 0.0
  %vm1752 = vcmp.gt.f32.partialorder %v1736, 0.0
  %vm1753 = vcmp.gt.f32.partialorder %v1737, 0.0
  %v1754 = vmul.f32 %v1722, 0.2
  %v1755 = vmul.f32 %v1723, 0.2
  %v1756 = vmul.f32 %v1724, 0.2
  %v1757 = vmul.f32 %v1725, 0.2
  %v1758 = vmul.f32 %v1726, 0.2
  %v1759 = vmul.f32 %v1727, 0.2
  %v1760 = vmul.f32 %v1728, 0.2
  %v1761 = vmul.f32 %v1729, 0.2
  %v1762 = vmul.f32 %v1730, 0.2
  %v1763 = vmul.f32 %v1731, 0.2
  %v1764 = vmul.f32 %v1732, 0.2
  %v1765 = vmul.f32 %v1733, 0.2
  %v1766 = vmul.f32 %v1734, 0.2
  %v1767 = vmul.f32 %v1735, 0.2
  %v1768 = vmul.f32 %v1736, 0.2
  %v1769 = vmul.f32 %v1737, 0.2
  %v1770 = vsel %vm1738, %v1722, %v1754
  %v1771 = vsel %vm1739, %v1723, %v1755
  %v1772 = vsel %vm1740, %v1724, %v1756
  %v1773 = vsel %vm1741, %v1725, %v1757
  %v1774 = vsel %vm1742, %v1726, %v1758
  %v1775 = vsel %vm1743, %v1727, %v1759
  %v1776 = vsel %vm1744, %v1728, %v1760
  %v1777 = vsel %vm1745, %v1729, %v1761
  %v1778 = vsel %vm1746, %v1730, %v1762
  %v1779 = vsel %vm1747, %v1731, %v1763
  %v1780 = vsel %vm1748, %v1732, %v1764
  %v1781 = vsel %vm1749, %v1733, %v1765
  %v1782 = vsel %vm1750, %v1734, %v1766
  %v1783 = vsel %vm1751, %v1735, %v1767
  %v1784 = vsel %vm1752, %v1736, %v1768
  %v1785 = vsel %vm1753, %v1737, %v1769
  %v1786 = vsel %vm52, %v1770, -1e+30
  %v1787 = vsel %vm53, %v1771, -1e+30
  %v1788 = vsel %vm54, %v1772, -1e+30
  %v1789 = vsel %vm55, %v1773, -1e+30
  %v1790 = vsel %vm56, %v1774, -1e+30
  %v1791 = vsel %vm57, %v1775, -1e+30
  %v1792 = vsel %vm58, %v1776, -1e+30
  %v1793 = vsel %vm59, %v1777, -1e+30
  %v1794 = vsel %vm60, %v1778, -1e+30
  %v1795 = vsel %vm61, %v1779, -1e+30
  %v1796 = vsel %vm62, %v1780, -1e+30
  %v1797 = vsel %vm63, %v1781, -1e+30
  %v1798 = vsel %vm64, %v1782, -1e+30
  %v1799 = vsel %vm65, %v1783, -1e+30
  %v1800 = vsel %vm66, %v1784, -1e+30
  %v1801 = vsel %vm67, %v1785, -1e+30
  %1802 = vmax.xlane.f32.xlu0 %v1786
  %v1803 = vpop.xlane.xlu0 %1802
  %1804 = vmax.xlane.f32.xlu0 %v1787
  %v1805 = vpop.xlane.xlu0 %1804
  %1806 = vmax.xlane.f32.xlu0 %v1788
  %v1807 = vpop.xlane.xlu0 %1806
  %1808 = vmax.xlane.f32.xlu0 %v1789
  %v1809 = vpop.xlane.xlu0 %1808
  %1810 = vmax.xlane.f32.xlu0 %v1790
  %v1811 = vpop.xlane.xlu0 %1810
  %1812 = vmax.xlane.f32.xlu0 %v1791
  %v1813 = vpop.xlane.xlu0 %1812
  %1814 = vmax.xlane.f32.xlu0 %v1792
  %v1815 = vpop.xlane.xlu0 %1814
  %1816 = vmax.xlane.f32.xlu0 %v1793
  %v1817 = vpop.xlane.xlu0 %1816
  %1818 = vmax.xlane.f32.xlu0 %v1794
  %v1819 = vpop.xlane.xlu0 %1818
  %1820 = vmax.xlane.f32.xlu0 %v1795
  %v1821 = vpop.xlane.xlu0 %1820
  %1822 = vmax.xlane.f32.xlu0 %v1796
  %v1823 = vpop.xlane.xlu0 %1822
  %1824 = vmax.xlane.f32.xlu0 %v1797
  %v1825 = vpop.xlane.xlu0 %1824
  %1826 = vmax.xlane.f32.xlu0 %v1798
  %v1827 = vpop.xlane.xlu0 %1826
  %1828 = vmax.xlane.f32.xlu0 %v1799
  %v1829 = vpop.xlane.xlu0 %1828
  %1830 = vmax.xlane.f32.xlu0 %v1800
  %v1831 = vpop.xlane.xlu0 %1830
  %1832 = vmax.xlane.f32.xlu0 %v1801
  %v1833 = vpop.xlane.xlu0 %1832
  %v1834 = vsub.f32 %v1786, %v1803
  %v1835 = vsub.f32 %v1787, %v1805
  %v1836 = vsub.f32 %v1788, %v1807
  %v1837 = vsub.f32 %v1789, %v1809
  %v1838 = vsub.f32 %v1790, %v1811
  %v1839 = vsub.f32 %v1791, %v1813
  %v1840 = vsub.f32 %v1792, %v1815
  %v1841 = vsub.f32 %v1793, %v1817
  %v1842 = vsub.f32 %v1794, %v1819
  %v1843 = vsub.f32 %v1795, %v1821
  %v1844 = vsub.f32 %v1796, %v1823
  %v1845 = vsub.f32 %v1797, %v1825
  %v1846 = vsub.f32 %v1798, %v1827
  %v1847 = vsub.f32 %v1799, %v1829
  %v1848 = vsub.f32 %v1800, %v1831
  %v1849 = vsub.f32 %v1801, %v1833
  %v1850 = vmul.f32 %v1834, 1.442695
  %v1851 = vpow.pop %v1850
  %v1852 = vmul.f32 %v1835, 1.442695
  %v1853 = vpow.pop %v1852
  %v1854 = vmul.f32 %v1836, 1.442695
  %v1855 = vpow.pop %v1854
  %v1856 = vmul.f32 %v1837, 1.442695
  %v1857 = vpow.pop %v1856
  %v1858 = vmul.f32 %v1838, 1.442695
  %v1859 = vpow.pop %v1858
  %v1860 = vmul.f32 %v1839, 1.442695
  %v1861 = vpow.pop %v1860
  %v1862 = vmul.f32 %v1840, 1.442695
  %v1863 = vpow.pop %v1862
  %v1864 = vmul.f32 %v1841, 1.442695
  %v1865 = vpow.pop %v1864
  %v1866 = vmul.f32 %v1842, 1.442695
  %v1867 = vpow.pop %v1866
  %v1868 = vmul.f32 %v1843, 1.442695
  %v1869 = vpow.pop %v1868
  %v1870 = vmul.f32 %v1844, 1.442695
  %v1871 = vpow.pop %v1870
  %v1872 = vmul.f32 %v1845, 1.442695
  %v1873 = vpow.pop %v1872
  %v1874 = vmul.f32 %v1846, 1.442695
  %v1875 = vpow.pop %v1874
  %v1876 = vmul.f32 %v1847, 1.442695
  %v1877 = vpow.pop %v1876
  %v1878 = vmul.f32 %v1848, 1.442695
  %v1879 = vpow.pop %v1878
  %v1880 = vmul.f32 %v1849, 1.442695
  %v1881 = vpow.pop %v1880
  %v1882 = vsel %vm52, %v1851, 0.0
  %v1883 = vsel %vm53, %v1853, 0.0
  %v1884 = vsel %vm54, %v1855, 0.0
  %v1885 = vsel %vm55, %v1857, 0.0
  %v1886 = vsel %vm56, %v1859, 0.0
  %v1887 = vsel %vm57, %v1861, 0.0
  %v1888 = vsel %vm58, %v1863, 0.0
  %v1889 = vsel %vm59, %v1865, 0.0
  %v1890 = vsel %vm60, %v1867, 0.0
  %v1891 = vsel %vm61, %v1869, 0.0
  %v1892 = vsel %vm62, %v1871, 0.0
  %v1893 = vsel %vm63, %v1873, 0.0
  %v1894 = vsel %vm64, %v1875, 0.0
  %v1895 = vsel %vm65, %v1877, 0.0
  %v1896 = vsel %vm66, %v1879, 0.0
  %v1897 = vsel %vm67, %v1881, 0.0
  %1898 = vadd.xlane.f32.xlu0 %v1882
  %v1899 = vpop.xlane.xlu0 %1898
  %1900 = vadd.xlane.f32.xlu0 %v1883
  %v1901 = vpop.xlane.xlu0 %1900
  %1902 = vadd.xlane.f32.xlu0 %v1884
  %v1903 = vpop.xlane.xlu0 %1902
  %1904 = vadd.xlane.f32.xlu0 %v1885
  %v1905 = vpop.xlane.xlu0 %1904
  %1906 = vadd.xlane.f32.xlu0 %v1886
  %v1907 = vpop.xlane.xlu0 %1906
  %1908 = vadd.xlane.f32.xlu0 %v1887
  %v1909 = vpop.xlane.xlu0 %1908
  %1910 = vadd.xlane.f32.xlu0 %v1888
  %v1911 = vpop.xlane.xlu0 %1910
  %1912 = vadd.xlane.f32.xlu0 %v1889
  %v1913 = vpop.xlane.xlu0 %1912
  %1914 = vadd.xlane.f32.xlu0 %v1890
  %v1915 = vpop.xlane.xlu0 %1914
  %1916 = vadd.xlane.f32.xlu0 %v1891
  %v1917 = vpop.xlane.xlu0 %1916
  %1918 = vadd.xlane.f32.xlu0 %v1892
  %v1919 = vpop.xlane.xlu0 %1918
  %1920 = vadd.xlane.f32.xlu0 %v1893
  %v1921 = vpop.xlane.xlu0 %1920
  %1922 = vadd.xlane.f32.xlu0 %v1894
  %v1923 = vpop.xlane.xlu0 %1922
  %1924 = vadd.xlane.f32.xlu0 %v1895
  %v1925 = vpop.xlane.xlu0 %1924
  %1926 = vadd.xlane.f32.xlu0 %v1896
  %v1927 = vpop.xlane.xlu0 %1926
  %1928 = vadd.xlane.f32.xlu0 %v1897
  %v1929 = vpop.xlane.xlu0 %1928
  %v1930 = vrcp.pop %v1899
  %v1931 = vrcp.pop %v1901
  %v1932 = vrcp.pop %v1903
  %v1933 = vrcp.pop %v1905
  %v1934 = vrcp.pop %v1907
  %v1935 = vrcp.pop %v1909
  %v1936 = vrcp.pop %v1911
  %v1937 = vrcp.pop %v1913
  %v1938 = vrcp.pop %v1915
  %v1939 = vrcp.pop %v1917
  %v1940 = vrcp.pop %v1919
  %v1941 = vrcp.pop %v1921
  %v1942 = vrcp.pop %v1923
  %v1943 = vrcp.pop %v1925
  %v1944 = vrcp.pop %v1927
  %v1945 = vrcp.pop %v1929
  %v1946 = vmul.f32 %v1882, %v1930
  %v1947 = vmul.f32 %v1883, %v1931
  %v1948 = vmul.f32 %v1884, %v1932
  %v1949 = vmul.f32 %v1885, %v1933
  %v1950 = vmul.f32 %v1886, %v1934
  %v1951 = vmul.f32 %v1887, %v1935
  %v1952 = vmul.f32 %v1888, %v1936
  %v1953 = vmul.f32 %v1889, %v1937
  %v1954 = vmul.f32 %v1890, %v1938
  %v1955 = vmul.f32 %v1891, %v1939
  %v1956 = vmul.f32 %v1892, %v1940
  %v1957 = vmul.f32 %v1893, %v1941
  %v1958 = vmul.f32 %v1894, %v1942
  %v1959 = vmul.f32 %v1895, %v1943
  %v1960 = vmul.f32 %v1896, %v1944
  %v1961 = vmul.f32 %v1897, %v1945
  %v1962 = vpack.c.bf16 %v1947, %v1946
  %v1963 = vpack.c.bf16 %v1949, %v1948
  %v1964 = vpack.c.bf16 %v1951, %v1950
  %v1965 = vpack.c.bf16 %v1953, %v1952
  %v1966 = vpack.c.bf16 %v1955, %v1954
  %v1967 = vpack.c.bf16 %v1957, %v1956
  %v1968 = vpack.c.bf16 %v1959, %v1958
  %v1969 = vpack.c.bf16 %v1961, %v1960
  %1970 = vrot.lane.b32.xlu0 %v430, 96
  %v1971 = vpop.permute.xlu0 %1970
  %1972 = vrot.lane.b32.xlu0 %v431, 96
  %v1973 = vpop.permute.xlu0 %1972
  %1974 = vrot.lane.b32.xlu0 %v432, 96
  %v1975 = vpop.permute.xlu0 %1974
  %1976 = vrot.lane.b32.xlu0 %v433, 96
  %v1977 = vpop.permute.xlu0 %1976
  %1978 = vrot.lane.b32.xlu0 %v434, 96
  %v1979 = vpop.permute.xlu0 %1978
  %1980 = vrot.lane.b32.xlu0 %v435, 96
  %v1981 = vpop.permute.xlu0 %1980
  %1982 = vrot.lane.b32.xlu0 %v436, 96
  %v1983 = vpop.permute.xlu0 %1982
  %1984 = vrot.lane.b32.xlu0 %v437, 96
  %v1985 = vpop.permute.xlu0 %1984
  %1994 = vmatpush.bf16.msra.mxu0 %v1985
  %1995 = vmatpush.bf16.msra.mxu0 %v1983
  %1996 = vmatpush.bf16.msra.mxu0 %v1981
  %1997 = vmatpush.bf16.msra.mxu0 %v1979
  %1998 = vmatpush.bf16.msra.mxu0 %v1977
  %1999 = vmatpush.bf16.msra.mxu0 %v1975
  %2000 = vmatpush.bf16.msra.mxu0 %v1973
  %2001 = vmatpush.bf16.msra.mxu0 %v1971
  %2002 = vmatmul.bf16.gmra.mxu0 %v1962
  %v2003 = vpop.f32.mrf.mxu0
  %v2004 = vadd.f32 0.0, %v2003
  %v2005 = vpop.f32.mrf.mxu0
  %v2006 = vadd.f32 0.0, %v2005
  %2007 = vmatmul.bf16.gmra.mxu0 %v1963
  %v2008 = vpop.f32.mrf.mxu0
  %v2009 = vadd.f32 0.0, %v2008
  %v2010 = vpop.f32.mrf.mxu0
  %v2011 = vadd.f32 0.0, %v2010
  %2012 = vmatmul.bf16.gmra.mxu0 %v1964
  %v2013 = vpop.f32.mrf.mxu0
  %v2014 = vadd.f32 0.0, %v2013
  %v2015 = vpop.f32.mrf.mxu0
  %v2016 = vadd.f32 0.0, %v2015
  %2017 = vmatmul.bf16.gmra.mxu0 %v1965
  %v2018 = vpop.f32.mrf.mxu0
  %v2019 = vadd.f32 0.0, %v2018
  %v2020 = vpop.f32.mrf.mxu0
  %v2021 = vadd.f32 0.0, %v2020
  %2022 = vmatmul.bf16.gmra.mxu0 %v1966
  %v2023 = vpop.f32.mrf.mxu0
  %v2024 = vadd.f32 0.0, %v2023
  %v2025 = vpop.f32.mrf.mxu0
  %v2026 = vadd.f32 0.0, %v2025
  %2027 = vmatmul.bf16.gmra.mxu0 %v1967
  %v2028 = vpop.f32.mrf.mxu0
  %v2029 = vadd.f32 0.0, %v2028
  %v2030 = vpop.f32.mrf.mxu0
  %v2031 = vadd.f32 0.0, %v2030
  %2032 = vmatmul.bf16.gmra.mxu0 %v1968
  %v2033 = vpop.f32.mrf.mxu0
  %v2034 = vadd.f32 0.0, %v2033
  %v2035 = vpop.f32.mrf.mxu0
  %v2036 = vadd.f32 0.0, %v2035
  %2037 = vmatmul.bf16.gmra.mxu0 %v1969
  %v2038 = vpop.f32.mrf.mxu0
  %v2039 = vadd.f32 0.0, %v2038
  %v2040 = vpop.f32.mrf.mxu0
  %v2041 = vadd.f32 0.0, %v2040
  %2042 = vdwg.mxu0
  %v2043 = vld [vmem:[%s1 + $0x5] sm:$0x1]
  %2044 = vset.pattern.permute.xlu0 5
  %2045 = vperm.xlu0 %2044, %v85
  %v2046 = vpop.permute.xlu0 %2045
  %2048 = vset.pattern.permute.xlu0 5
  %2049 = vperm.xlu0 %2048, %v86
  %v2050 = vpop.permute.xlu0 %2049
  %2052 = vset.pattern.permute.xlu0 5
  %2053 = vperm.xlu0 %2052, %v87
  %v2054 = vpop.permute.xlu0 %2053
  %2056 = vset.pattern.permute.xlu0 5
  %2057 = vperm.xlu0 %2056, %v88
  %v2058 = vpop.permute.xlu0 %2057
  %2060 = vset.pattern.permute.xlu0 5
  %2061 = vperm.xlu0 %2060, %v89
  %v2062 = vpop.permute.xlu0 %2061
  %2064 = vset.pattern.permute.xlu0 5
  %2065 = vperm.xlu0 %2064, %v90
  %v2066 = vpop.permute.xlu0 %2065
  %2068 = vset.pattern.permute.xlu0 5
  %2069 = vperm.xlu0 %2068, %v91
  %v2070 = vpop.permute.xlu0 %2069
  %2072 = vset.pattern.permute.xlu0 5
  %2073 = vperm.xlu0 %2072, %v92
  %v2074 = vpop.permute.xlu0 %2073
  %2076 = vset.pattern.permute.xlu0 5
  %2077 = vperm.xlu0 %2076, %v93
  %v2078 = vpop.permute.xlu0 %2077
  %2080 = vset.pattern.permute.xlu0 5
  %2081 = vperm.xlu0 %2080, %v94
  %v2082 = vpop.permute.xlu0 %2081
  %2084 = vset.pattern.permute.xlu0 5
  %2085 = vperm.xlu0 %2084, %v95
  %v2086 = vpop.permute.xlu0 %2085
  %2088 = vset.pattern.permute.xlu0 5
  %2089 = vperm.xlu0 %2088, %v96
  %v2090 = vpop.permute.xlu0 %2089
  %2092 = vset.pattern.permute.xlu0 5
  %2093 = vperm.xlu0 %2092, %v97
  %v2094 = vpop.permute.xlu0 %2093
  %2096 = vset.pattern.permute.xlu0 5
  %2097 = vperm.xlu0 %2096, %v98
  %v2098 = vpop.permute.xlu0 %2097
  %2100 = vset.pattern.permute.xlu0 5
  %2101 = vperm.xlu0 %2100, %v99
  %v2102 = vpop.permute.xlu0 %2101
  %2104 = vset.pattern.permute.xlu0 5
  %2105 = vperm.xlu0 %2104, %v100
  %v2106 = vpop.permute.xlu0 %2105
  %v2108 = vperm.slane %v2043, 0
  %v2109 = vadd.f32 %v2046, %v2108
  %v2110 = vadd.f32 %v2050, %v2108
  %v2111 = vadd.f32 %v2054, %v2108
  %v2112 = vadd.f32 %v2058, %v2108
  %v2113 = vadd.f32 %v2062, %v2108
  %v2114 = vadd.f32 %v2066, %v2108
  %v2115 = vadd.f32 %v2070, %v2108
  %v2116 = vadd.f32 %v2074, %v2108
  %v2117 = vadd.f32 %v2078, %v2108
  %v2118 = vadd.f32 %v2082, %v2108
  %v2119 = vadd.f32 %v2086, %v2108
  %v2120 = vadd.f32 %v2090, %v2108
  %v2121 = vadd.f32 %v2094, %v2108
  %v2122 = vadd.f32 %v2098, %v2108
  %v2123 = vadd.f32 %v2102, %v2108
  %v2124 = vadd.f32 %v2106, %v2108
  %vm2125 = vcmp.gt.f32.partialorder %v2109, 0.0
  %vm2126 = vcmp.gt.f32.partialorder %v2110, 0.0
  %vm2127 = vcmp.gt.f32.partialorder %v2111, 0.0
  %vm2128 = vcmp.gt.f32.partialorder %v2112, 0.0
  %vm2129 = vcmp.gt.f32.partialorder %v2113, 0.0
  %vm2130 = vcmp.gt.f32.partialorder %v2114, 0.0
  %vm2131 = vcmp.gt.f32.partialorder %v2115, 0.0
  %vm2132 = vcmp.gt.f32.partialorder %v2116, 0.0
  %vm2133 = vcmp.gt.f32.partialorder %v2117, 0.0
  %vm2134 = vcmp.gt.f32.partialorder %v2118, 0.0
  %vm2135 = vcmp.gt.f32.partialorder %v2119, 0.0
  %vm2136 = vcmp.gt.f32.partialorder %v2120, 0.0
  %vm2137 = vcmp.gt.f32.partialorder %v2121, 0.0
  %vm2138 = vcmp.gt.f32.partialorder %v2122, 0.0
  %vm2139 = vcmp.gt.f32.partialorder %v2123, 0.0
  %vm2140 = vcmp.gt.f32.partialorder %v2124, 0.0
  %v2141 = vmul.f32 %v2109, 0.2
  %v2142 = vmul.f32 %v2110, 0.2
  %v2143 = vmul.f32 %v2111, 0.2
  %v2144 = vmul.f32 %v2112, 0.2
  %v2145 = vmul.f32 %v2113, 0.2
  %v2146 = vmul.f32 %v2114, 0.2
  %v2147 = vmul.f32 %v2115, 0.2
  %v2148 = vmul.f32 %v2116, 0.2
  %v2149 = vmul.f32 %v2117, 0.2
  %v2150 = vmul.f32 %v2118, 0.2
  %v2151 = vmul.f32 %v2119, 0.2
  %v2152 = vmul.f32 %v2120, 0.2
  %v2153 = vmul.f32 %v2121, 0.2
  %v2154 = vmul.f32 %v2122, 0.2
  %v2155 = vmul.f32 %v2123, 0.2
  %v2156 = vmul.f32 %v2124, 0.2
  %v2157 = vsel %vm2125, %v2109, %v2141
  %v2158 = vsel %vm2126, %v2110, %v2142
  %v2159 = vsel %vm2127, %v2111, %v2143
  %v2160 = vsel %vm2128, %v2112, %v2144
  %v2161 = vsel %vm2129, %v2113, %v2145
  %v2162 = vsel %vm2130, %v2114, %v2146
  %v2163 = vsel %vm2131, %v2115, %v2147
  %v2164 = vsel %vm2132, %v2116, %v2148
  %v2165 = vsel %vm2133, %v2117, %v2149
  %v2166 = vsel %vm2134, %v2118, %v2150
  %v2167 = vsel %vm2135, %v2119, %v2151
  %v2168 = vsel %vm2136, %v2120, %v2152
  %v2169 = vsel %vm2137, %v2121, %v2153
  %v2170 = vsel %vm2138, %v2122, %v2154
  %v2171 = vsel %vm2139, %v2123, %v2155
  %v2172 = vsel %vm2140, %v2124, %v2156
  %v2173 = vsel %vm52, %v2157, -1e+30
  %v2174 = vsel %vm53, %v2158, -1e+30
  %v2175 = vsel %vm54, %v2159, -1e+30
  %v2176 = vsel %vm55, %v2160, -1e+30
  %v2177 = vsel %vm56, %v2161, -1e+30
  %v2178 = vsel %vm57, %v2162, -1e+30
  %v2179 = vsel %vm58, %v2163, -1e+30
  %v2180 = vsel %vm59, %v2164, -1e+30
  %v2181 = vsel %vm60, %v2165, -1e+30
  %v2182 = vsel %vm61, %v2166, -1e+30
  %v2183 = vsel %vm62, %v2167, -1e+30
  %v2184 = vsel %vm63, %v2168, -1e+30
  %v2185 = vsel %vm64, %v2169, -1e+30
  %v2186 = vsel %vm65, %v2170, -1e+30
  %v2187 = vsel %vm66, %v2171, -1e+30
  %v2188 = vsel %vm67, %v2172, -1e+30
  %2189 = vmax.xlane.f32.xlu0 %v2173
  %v2190 = vpop.xlane.xlu0 %2189
  %2191 = vmax.xlane.f32.xlu0 %v2174
  %v2192 = vpop.xlane.xlu0 %2191
  %2193 = vmax.xlane.f32.xlu0 %v2175
  %v2194 = vpop.xlane.xlu0 %2193
  %2195 = vmax.xlane.f32.xlu0 %v2176
  %v2196 = vpop.xlane.xlu0 %2195
  %2197 = vmax.xlane.f32.xlu0 %v2177
  %v2198 = vpop.xlane.xlu0 %2197
  %2199 = vmax.xlane.f32.xlu0 %v2178
  %v2200 = vpop.xlane.xlu0 %2199
  %2201 = vmax.xlane.f32.xlu0 %v2179
  %v2202 = vpop.xlane.xlu0 %2201
  %2203 = vmax.xlane.f32.xlu0 %v2180
  %v2204 = vpop.xlane.xlu0 %2203
  %2205 = vmax.xlane.f32.xlu0 %v2181
  %v2206 = vpop.xlane.xlu0 %2205
  %2207 = vmax.xlane.f32.xlu0 %v2182
  %v2208 = vpop.xlane.xlu0 %2207
  %2209 = vmax.xlane.f32.xlu0 %v2183
  %v2210 = vpop.xlane.xlu0 %2209
  %2211 = vmax.xlane.f32.xlu0 %v2184
  %v2212 = vpop.xlane.xlu0 %2211
  %2213 = vmax.xlane.f32.xlu0 %v2185
  %v2214 = vpop.xlane.xlu0 %2213
  %2215 = vmax.xlane.f32.xlu0 %v2186
  %v2216 = vpop.xlane.xlu0 %2215
  %2217 = vmax.xlane.f32.xlu0 %v2187
  %v2218 = vpop.xlane.xlu0 %2217
  %2219 = vmax.xlane.f32.xlu0 %v2188
  %v2220 = vpop.xlane.xlu0 %2219
  %v2221 = vsub.f32 %v2173, %v2190
  %v2222 = vsub.f32 %v2174, %v2192
  %v2223 = vsub.f32 %v2175, %v2194
  %v2224 = vsub.f32 %v2176, %v2196
  %v2225 = vsub.f32 %v2177, %v2198
  %v2226 = vsub.f32 %v2178, %v2200
  %v2227 = vsub.f32 %v2179, %v2202
  %v2228 = vsub.f32 %v2180, %v2204
  %v2229 = vsub.f32 %v2181, %v2206
  %v2230 = vsub.f32 %v2182, %v2208
  %v2231 = vsub.f32 %v2183, %v2210
  %v2232 = vsub.f32 %v2184, %v2212
  %v2233 = vsub.f32 %v2185, %v2214
  %v2234 = vsub.f32 %v2186, %v2216
  %v2235 = vsub.f32 %v2187, %v2218
  %v2236 = vsub.f32 %v2188, %v2220
  %v2237 = vmul.f32 %v2221, 1.442695
  %v2238 = vpow.pop %v2237
  %v2239 = vmul.f32 %v2222, 1.442695
  %v2240 = vpow.pop %v2239
  %v2241 = vmul.f32 %v2223, 1.442695
  %v2242 = vpow.pop %v2241
  %v2243 = vmul.f32 %v2224, 1.442695
  %v2244 = vpow.pop %v2243
  %v2245 = vmul.f32 %v2225, 1.442695
  %v2246 = vpow.pop %v2245
  %v2247 = vmul.f32 %v2226, 1.442695
  %v2248 = vpow.pop %v2247
  %v2249 = vmul.f32 %v2227, 1.442695
  %v2250 = vpow.pop %v2249
  %v2251 = vmul.f32 %v2228, 1.442695
  %v2252 = vpow.pop %v2251
  %v2253 = vmul.f32 %v2229, 1.442695
  %v2254 = vpow.pop %v2253
  %v2255 = vmul.f32 %v2230, 1.442695
  %v2256 = vpow.pop %v2255
  %v2257 = vmul.f32 %v2231, 1.442695
  %v2258 = vpow.pop %v2257
  %v2259 = vmul.f32 %v2232, 1.442695
  %v2260 = vpow.pop %v2259
  %v2261 = vmul.f32 %v2233, 1.442695
  %v2262 = vpow.pop %v2261
  %v2263 = vmul.f32 %v2234, 1.442695
  %v2264 = vpow.pop %v2263
  %v2265 = vmul.f32 %v2235, 1.442695
  %v2266 = vpow.pop %v2265
  %v2267 = vmul.f32 %v2236, 1.442695
  %v2268 = vpow.pop %v2267
  %v2269 = vsel %vm52, %v2238, 0.0
  %v2270 = vsel %vm53, %v2240, 0.0
  %v2271 = vsel %vm54, %v2242, 0.0
  %v2272 = vsel %vm55, %v2244, 0.0
  %v2273 = vsel %vm56, %v2246, 0.0
  %v2274 = vsel %vm57, %v2248, 0.0
  %v2275 = vsel %vm58, %v2250, 0.0
  %v2276 = vsel %vm59, %v2252, 0.0
  %v2277 = vsel %vm60, %v2254, 0.0
  %v2278 = vsel %vm61, %v2256, 0.0
  %v2279 = vsel %vm62, %v2258, 0.0
  %v2280 = vsel %vm63, %v2260, 0.0
  %v2281 = vsel %vm64, %v2262, 0.0
  %v2282 = vsel %vm65, %v2264, 0.0
  %v2283 = vsel %vm66, %v2266, 0.0
  %v2284 = vsel %vm67, %v2268, 0.0
  %2285 = vadd.xlane.f32.xlu0 %v2269
  %v2286 = vpop.xlane.xlu0 %2285
  %2287 = vadd.xlane.f32.xlu0 %v2270
  %v2288 = vpop.xlane.xlu0 %2287
  %2289 = vadd.xlane.f32.xlu0 %v2271
  %v2290 = vpop.xlane.xlu0 %2289
  %2291 = vadd.xlane.f32.xlu0 %v2272
  %v2292 = vpop.xlane.xlu0 %2291
  %2293 = vadd.xlane.f32.xlu0 %v2273
  %v2294 = vpop.xlane.xlu0 %2293
  %2295 = vadd.xlane.f32.xlu0 %v2274
  %v2296 = vpop.xlane.xlu0 %2295
  %2297 = vadd.xlane.f32.xlu0 %v2275
  %v2298 = vpop.xlane.xlu0 %2297
  %2299 = vadd.xlane.f32.xlu0 %v2276
  %v2300 = vpop.xlane.xlu0 %2299
  %2301 = vadd.xlane.f32.xlu0 %v2277
  %v2302 = vpop.xlane.xlu0 %2301
  %2303 = vadd.xlane.f32.xlu0 %v2278
  %v2304 = vpop.xlane.xlu0 %2303
  %2305 = vadd.xlane.f32.xlu0 %v2279
  %v2306 = vpop.xlane.xlu0 %2305
  %2307 = vadd.xlane.f32.xlu0 %v2280
  %v2308 = vpop.xlane.xlu0 %2307
  %2309 = vadd.xlane.f32.xlu0 %v2281
  %v2310 = vpop.xlane.xlu0 %2309
  %2311 = vadd.xlane.f32.xlu0 %v2282
  %v2312 = vpop.xlane.xlu0 %2311
  %2313 = vadd.xlane.f32.xlu0 %v2283
  %v2314 = vpop.xlane.xlu0 %2313
  %2315 = vadd.xlane.f32.xlu0 %v2284
  %v2316 = vpop.xlane.xlu0 %2315
  %v2317 = vrcp.pop %v2286
  %v2318 = vrcp.pop %v2288
  %v2319 = vrcp.pop %v2290
  %v2320 = vrcp.pop %v2292
  %v2321 = vrcp.pop %v2294
  %v2322 = vrcp.pop %v2296
  %v2323 = vrcp.pop %v2298
  %v2324 = vrcp.pop %v2300
  %v2325 = vrcp.pop %v2302
  %v2326 = vrcp.pop %v2304
  %v2327 = vrcp.pop %v2306
  %v2328 = vrcp.pop %v2308
  %v2329 = vrcp.pop %v2310
  %v2330 = vrcp.pop %v2312
  %v2331 = vrcp.pop %v2314
  %v2332 = vrcp.pop %v2316
  %v2333 = vmul.f32 %v2269, %v2317
  %v2334 = vmul.f32 %v2270, %v2318
  %v2335 = vmul.f32 %v2271, %v2319
  %v2336 = vmul.f32 %v2272, %v2320
  %v2337 = vmul.f32 %v2273, %v2321
  %v2338 = vmul.f32 %v2274, %v2322
  %v2339 = vmul.f32 %v2275, %v2323
  %v2340 = vmul.f32 %v2276, %v2324
  %v2341 = vmul.f32 %v2277, %v2325
  %v2342 = vmul.f32 %v2278, %v2326
  %v2343 = vmul.f32 %v2279, %v2327
  %v2344 = vmul.f32 %v2280, %v2328
  %v2345 = vmul.f32 %v2281, %v2329
  %v2346 = vmul.f32 %v2282, %v2330
  %v2347 = vmul.f32 %v2283, %v2331
  %v2348 = vmul.f32 %v2284, %v2332
  %v2349 = vpack.c.bf16 %v2334, %v2333
  %v2350 = vpack.c.bf16 %v2336, %v2335
  %v2351 = vpack.c.bf16 %v2338, %v2337
  %v2352 = vpack.c.bf16 %v2340, %v2339
  %v2353 = vpack.c.bf16 %v2342, %v2341
  %v2354 = vpack.c.bf16 %v2344, %v2343
  %v2355 = vpack.c.bf16 %v2346, %v2345
  %v2356 = vpack.c.bf16 %v2348, %v2347
  %2357 = vrot.lane.b32.xlu0 %v430, 88
  %v2358 = vpop.permute.xlu0 %2357
  %2359 = vrot.lane.b32.xlu0 %v431, 88
  %v2360 = vpop.permute.xlu0 %2359
  %2361 = vrot.lane.b32.xlu0 %v432, 88
  %v2362 = vpop.permute.xlu0 %2361
  %2363 = vrot.lane.b32.xlu0 %v433, 88
  %v2364 = vpop.permute.xlu0 %2363
  %2365 = vrot.lane.b32.xlu0 %v434, 88
  %v2366 = vpop.permute.xlu0 %2365
  %2367 = vrot.lane.b32.xlu0 %v435, 88
  %v2368 = vpop.permute.xlu0 %2367
  %2369 = vrot.lane.b32.xlu0 %v436, 88
  %v2370 = vpop.permute.xlu0 %2369
  %2371 = vrot.lane.b32.xlu0 %v437, 88
  %v2372 = vpop.permute.xlu0 %2371
  %2381 = vmatpush.bf16.msra.mxu0 %v2372
  %2382 = vmatpush.bf16.msra.mxu0 %v2370
  %2383 = vmatpush.bf16.msra.mxu0 %v2368
  %2384 = vmatpush.bf16.msra.mxu0 %v2366
  %2385 = vmatpush.bf16.msra.mxu0 %v2364
  %2386 = vmatpush.bf16.msra.mxu0 %v2362
  %2387 = vmatpush.bf16.msra.mxu0 %v2360
  %2388 = vmatpush.bf16.msra.mxu0 %v2358
  %2389 = vmatmul.bf16.gmra.mxu0 %v2349
  %v2390 = vpop.f32.mrf.mxu0
  %v2391 = vadd.f32 0.0, %v2390
  %v2392 = vpop.f32.mrf.mxu0
  %v2393 = vadd.f32 0.0, %v2392
  %2394 = vmatmul.bf16.gmra.mxu0 %v2350
  %v2395 = vpop.f32.mrf.mxu0
  %v2396 = vadd.f32 0.0, %v2395
  %v2397 = vpop.f32.mrf.mxu0
  %v2398 = vadd.f32 0.0, %v2397
  %2399 = vmatmul.bf16.gmra.mxu0 %v2351
  %v2400 = vpop.f32.mrf.mxu0
  %v2401 = vadd.f32 0.0, %v2400
  %v2402 = vpop.f32.mrf.mxu0
  %v2403 = vadd.f32 0.0, %v2402
  %2404 = vmatmul.bf16.gmra.mxu0 %v2352
  %v2405 = vpop.f32.mrf.mxu0
  %v2406 = vadd.f32 0.0, %v2405
  %v2407 = vpop.f32.mrf.mxu0
  %v2408 = vadd.f32 0.0, %v2407
  %2409 = vmatmul.bf16.gmra.mxu0 %v2353
  %v2410 = vpop.f32.mrf.mxu0
  %v2411 = vadd.f32 0.0, %v2410
  %v2412 = vpop.f32.mrf.mxu0
  %v2413 = vadd.f32 0.0, %v2412
  %2414 = vmatmul.bf16.gmra.mxu0 %v2354
  %v2415 = vpop.f32.mrf.mxu0
  %v2416 = vadd.f32 0.0, %v2415
  %v2417 = vpop.f32.mrf.mxu0
  %v2418 = vadd.f32 0.0, %v2417
  %2419 = vmatmul.bf16.gmra.mxu0 %v2355
  %v2420 = vpop.f32.mrf.mxu0
  %v2421 = vadd.f32 0.0, %v2420
  %v2422 = vpop.f32.mrf.mxu0
  %v2423 = vadd.f32 0.0, %v2422
  %2424 = vmatmul.bf16.gmra.mxu0 %v2356
  %v2425 = vpop.f32.mrf.mxu0
  %v2426 = vadd.f32 0.0, %v2425
  %v2427 = vpop.f32.mrf.mxu0
  %v2428 = vadd.f32 0.0, %v2427
  %2429 = vdwg.mxu0
  %v2430 = vld [vmem:[%s1 + $0x6] sm:$0x1]
  %2431 = vset.pattern.permute.xlu0 6
  %2432 = vperm.xlu0 %2431, %v85
  %v2433 = vpop.permute.xlu0 %2432
  %2435 = vset.pattern.permute.xlu0 6
  %2436 = vperm.xlu0 %2435, %v86
  %v2437 = vpop.permute.xlu0 %2436
  %2439 = vset.pattern.permute.xlu0 6
  %2440 = vperm.xlu0 %2439, %v87
  %v2441 = vpop.permute.xlu0 %2440
  %2443 = vset.pattern.permute.xlu0 6
  %2444 = vperm.xlu0 %2443, %v88
  %v2445 = vpop.permute.xlu0 %2444
  %2447 = vset.pattern.permute.xlu0 6
  %2448 = vperm.xlu0 %2447, %v89
  %v2449 = vpop.permute.xlu0 %2448
  %2451 = vset.pattern.permute.xlu0 6
  %2452 = vperm.xlu0 %2451, %v90
  %v2453 = vpop.permute.xlu0 %2452
  %2455 = vset.pattern.permute.xlu0 6
  %2456 = vperm.xlu0 %2455, %v91
  %v2457 = vpop.permute.xlu0 %2456
  %2459 = vset.pattern.permute.xlu0 6
  %2460 = vperm.xlu0 %2459, %v92
  %v2461 = vpop.permute.xlu0 %2460
  %2463 = vset.pattern.permute.xlu0 6
  %2464 = vperm.xlu0 %2463, %v93
  %v2465 = vpop.permute.xlu0 %2464
  %2467 = vset.pattern.permute.xlu0 6
  %2468 = vperm.xlu0 %2467, %v94
  %v2469 = vpop.permute.xlu0 %2468
  %2471 = vset.pattern.permute.xlu0 6
  %2472 = vperm.xlu0 %2471, %v95
  %v2473 = vpop.permute.xlu0 %2472
  %2475 = vset.pattern.permute.xlu0 6
  %2476 = vperm.xlu0 %2475, %v96
  %v2477 = vpop.permute.xlu0 %2476
  %2479 = vset.pattern.permute.xlu0 6
  %2480 = vperm.xlu0 %2479, %v97
  %v2481 = vpop.permute.xlu0 %2480
  %2483 = vset.pattern.permute.xlu0 6
  %2484 = vperm.xlu0 %2483, %v98
  %v2485 = vpop.permute.xlu0 %2484
  %2487 = vset.pattern.permute.xlu0 6
  %2488 = vperm.xlu0 %2487, %v99
  %v2489 = vpop.permute.xlu0 %2488
  %2491 = vset.pattern.permute.xlu0 6
  %2492 = vperm.xlu0 %2491, %v100
  %v2493 = vpop.permute.xlu0 %2492
  %v2495 = vperm.slane %v2430, 0
  %v2496 = vadd.f32 %v2433, %v2495
  %v2497 = vadd.f32 %v2437, %v2495
  %v2498 = vadd.f32 %v2441, %v2495
  %v2499 = vadd.f32 %v2445, %v2495
  %v2500 = vadd.f32 %v2449, %v2495
  %v2501 = vadd.f32 %v2453, %v2495
  %v2502 = vadd.f32 %v2457, %v2495
  %v2503 = vadd.f32 %v2461, %v2495
  %v2504 = vadd.f32 %v2465, %v2495
  %v2505 = vadd.f32 %v2469, %v2495
  %v2506 = vadd.f32 %v2473, %v2495
  %v2507 = vadd.f32 %v2477, %v2495
  %v2508 = vadd.f32 %v2481, %v2495
  %v2509 = vadd.f32 %v2485, %v2495
  %v2510 = vadd.f32 %v2489, %v2495
  %v2511 = vadd.f32 %v2493, %v2495
  %vm2512 = vcmp.gt.f32.partialorder %v2496, 0.0
  %vm2513 = vcmp.gt.f32.partialorder %v2497, 0.0
  %vm2514 = vcmp.gt.f32.partialorder %v2498, 0.0
  %vm2515 = vcmp.gt.f32.partialorder %v2499, 0.0
  %vm2516 = vcmp.gt.f32.partialorder %v2500, 0.0
  %vm2517 = vcmp.gt.f32.partialorder %v2501, 0.0
  %vm2518 = vcmp.gt.f32.partialorder %v2502, 0.0
  %vm2519 = vcmp.gt.f32.partialorder %v2503, 0.0
  %vm2520 = vcmp.gt.f32.partialorder %v2504, 0.0
  %vm2521 = vcmp.gt.f32.partialorder %v2505, 0.0
  %vm2522 = vcmp.gt.f32.partialorder %v2506, 0.0
  %vm2523 = vcmp.gt.f32.partialorder %v2507, 0.0
  %vm2524 = vcmp.gt.f32.partialorder %v2508, 0.0
  %vm2525 = vcmp.gt.f32.partialorder %v2509, 0.0
  %vm2526 = vcmp.gt.f32.partialorder %v2510, 0.0
  %vm2527 = vcmp.gt.f32.partialorder %v2511, 0.0
  %v2528 = vmul.f32 %v2496, 0.2
  %v2529 = vmul.f32 %v2497, 0.2
  %v2530 = vmul.f32 %v2498, 0.2
  %v2531 = vmul.f32 %v2499, 0.2
  %v2532 = vmul.f32 %v2500, 0.2
  %v2533 = vmul.f32 %v2501, 0.2
  %v2534 = vmul.f32 %v2502, 0.2
  %v2535 = vmul.f32 %v2503, 0.2
  %v2536 = vmul.f32 %v2504, 0.2
  %v2537 = vmul.f32 %v2505, 0.2
  %v2538 = vmul.f32 %v2506, 0.2
  %v2539 = vmul.f32 %v2507, 0.2
  %v2540 = vmul.f32 %v2508, 0.2
  %v2541 = vmul.f32 %v2509, 0.2
  %v2542 = vmul.f32 %v2510, 0.2
  %v2543 = vmul.f32 %v2511, 0.2
  %v2544 = vsel %vm2512, %v2496, %v2528
  %v2545 = vsel %vm2513, %v2497, %v2529
  %v2546 = vsel %vm2514, %v2498, %v2530
  %v2547 = vsel %vm2515, %v2499, %v2531
  %v2548 = vsel %vm2516, %v2500, %v2532
  %v2549 = vsel %vm2517, %v2501, %v2533
  %v2550 = vsel %vm2518, %v2502, %v2534
  %v2551 = vsel %vm2519, %v2503, %v2535
  %v2552 = vsel %vm2520, %v2504, %v2536
  %v2553 = vsel %vm2521, %v2505, %v2537
  %v2554 = vsel %vm2522, %v2506, %v2538
  %v2555 = vsel %vm2523, %v2507, %v2539
  %v2556 = vsel %vm2524, %v2508, %v2540
  %v2557 = vsel %vm2525, %v2509, %v2541
  %v2558 = vsel %vm2526, %v2510, %v2542
  %v2559 = vsel %vm2527, %v2511, %v2543
  %v2560 = vsel %vm52, %v2544, -1e+30
  %v2561 = vsel %vm53, %v2545, -1e+30
  %v2562 = vsel %vm54, %v2546, -1e+30
  %v2563 = vsel %vm55, %v2547, -1e+30
  %v2564 = vsel %vm56, %v2548, -1e+30
  %v2565 = vsel %vm57, %v2549, -1e+30
  %v2566 = vsel %vm58, %v2550, -1e+30
  %v2567 = vsel %vm59, %v2551, -1e+30
  %v2568 = vsel %vm60, %v2552, -1e+30
  %v2569 = vsel %vm61, %v2553, -1e+30
  %v2570 = vsel %vm62, %v2554, -1e+30
  %v2571 = vsel %vm63, %v2555, -1e+30
  %v2572 = vsel %vm64, %v2556, -1e+30
  %v2573 = vsel %vm65, %v2557, -1e+30
  %v2574 = vsel %vm66, %v2558, -1e+30
  %v2575 = vsel %vm67, %v2559, -1e+30
  %2576 = vmax.xlane.f32.xlu0 %v2560
  %v2577 = vpop.xlane.xlu0 %2576
  %2578 = vmax.xlane.f32.xlu0 %v2561
  %v2579 = vpop.xlane.xlu0 %2578
  %2580 = vmax.xlane.f32.xlu0 %v2562
  %v2581 = vpop.xlane.xlu0 %2580
  %2582 = vmax.xlane.f32.xlu0 %v2563
  %v2583 = vpop.xlane.xlu0 %2582
  %2584 = vmax.xlane.f32.xlu0 %v2564
  %v2585 = vpop.xlane.xlu0 %2584
  %2586 = vmax.xlane.f32.xlu0 %v2565
  %v2587 = vpop.xlane.xlu0 %2586
  %2588 = vmax.xlane.f32.xlu0 %v2566
  %v2589 = vpop.xlane.xlu0 %2588
  %2590 = vmax.xlane.f32.xlu0 %v2567
  %v2591 = vpop.xlane.xlu0 %2590
  %2592 = vmax.xlane.f32.xlu0 %v2568
  %v2593 = vpop.xlane.xlu0 %2592
  %2594 = vmax.xlane.f32.xlu0 %v2569
  %v2595 = vpop.xlane.xlu0 %2594
  %2596 = vmax.xlane.f32.xlu0 %v2570
  %v2597 = vpop.xlane.xlu0 %2596
  %2598 = vmax.xlane.f32.xlu0 %v2571
  %v2599 = vpop.xlane.xlu0 %2598
  %2600 = vmax.xlane.f32.xlu0 %v2572
  %v2601 = vpop.xlane.xlu0 %2600
  %2602 = vmax.xlane.f32.xlu0 %v2573
  %v2603 = vpop.xlane.xlu0 %2602
  %2604 = vmax.xlane.f32.xlu0 %v2574
  %v2605 = vpop.xlane.xlu0 %2604
  %2606 = vmax.xlane.f32.xlu0 %v2575
  %v2607 = vpop.xlane.xlu0 %2606
  %v2608 = vsub.f32 %v2560, %v2577
  %v2609 = vsub.f32 %v2561, %v2579
  %v2610 = vsub.f32 %v2562, %v2581
  %v2611 = vsub.f32 %v2563, %v2583
  %v2612 = vsub.f32 %v2564, %v2585
  %v2613 = vsub.f32 %v2565, %v2587
  %v2614 = vsub.f32 %v2566, %v2589
  %v2615 = vsub.f32 %v2567, %v2591
  %v2616 = vsub.f32 %v2568, %v2593
  %v2617 = vsub.f32 %v2569, %v2595
  %v2618 = vsub.f32 %v2570, %v2597
  %v2619 = vsub.f32 %v2571, %v2599
  %v2620 = vsub.f32 %v2572, %v2601
  %v2621 = vsub.f32 %v2573, %v2603
  %v2622 = vsub.f32 %v2574, %v2605
  %v2623 = vsub.f32 %v2575, %v2607
  %v2624 = vmul.f32 %v2608, 1.442695
  %v2625 = vpow.pop %v2624
  %v2626 = vmul.f32 %v2609, 1.442695
  %v2627 = vpow.pop %v2626
  %v2628 = vmul.f32 %v2610, 1.442695
  %v2629 = vpow.pop %v2628
  %v2630 = vmul.f32 %v2611, 1.442695
  %v2631 = vpow.pop %v2630
  %v2632 = vmul.f32 %v2612, 1.442695
  %v2633 = vpow.pop %v2632
  %v2634 = vmul.f32 %v2613, 1.442695
  %v2635 = vpow.pop %v2634
  %v2636 = vmul.f32 %v2614, 1.442695
  %v2637 = vpow.pop %v2636
  %v2638 = vmul.f32 %v2615, 1.442695
  %v2639 = vpow.pop %v2638
  %v2640 = vmul.f32 %v2616, 1.442695
  %v2641 = vpow.pop %v2640
  %v2642 = vmul.f32 %v2617, 1.442695
  %v2643 = vpow.pop %v2642
  %v2644 = vmul.f32 %v2618, 1.442695
  %v2645 = vpow.pop %v2644
  %v2646 = vmul.f32 %v2619, 1.442695
  %v2647 = vpow.pop %v2646
  %v2648 = vmul.f32 %v2620, 1.442695
  %v2649 = vpow.pop %v2648
  %v2650 = vmul.f32 %v2621, 1.442695
  %v2651 = vpow.pop %v2650
  %v2652 = vmul.f32 %v2622, 1.442695
  %v2653 = vpow.pop %v2652
  %v2654 = vmul.f32 %v2623, 1.442695
  %v2655 = vpow.pop %v2654
  %v2656 = vsel %vm52, %v2625, 0.0
  %v2657 = vsel %vm53, %v2627, 0.0
  %v2658 = vsel %vm54, %v2629, 0.0
  %v2659 = vsel %vm55, %v2631, 0.0
  %v2660 = vsel %vm56, %v2633, 0.0
  %v2661 = vsel %vm57, %v2635, 0.0
  %v2662 = vsel %vm58, %v2637, 0.0
  %v2663 = vsel %vm59, %v2639, 0.0
  %v2664 = vsel %vm60, %v2641, 0.0
  %v2665 = vsel %vm61, %v2643, 0.0
  %v2666 = vsel %vm62, %v2645, 0.0
  %v2667 = vsel %vm63, %v2647, 0.0
  %v2668 = vsel %vm64, %v2649, 0.0
  %v2669 = vsel %vm65, %v2651, 0.0
  %v2670 = vsel %vm66, %v2653, 0.0
  %v2671 = vsel %vm67, %v2655, 0.0
  %2672 = vadd.xlane.f32.xlu0 %v2656
  %v2673 = vpop.xlane.xlu0 %2672
  %2674 = vadd.xlane.f32.xlu0 %v2657
  %v2675 = vpop.xlane.xlu0 %2674
  %2676 = vadd.xlane.f32.xlu0 %v2658
  %v2677 = vpop.xlane.xlu0 %2676
  %2678 = vadd.xlane.f32.xlu0 %v2659
  %v2679 = vpop.xlane.xlu0 %2678
  %2680 = vadd.xlane.f32.xlu0 %v2660
  %v2681 = vpop.xlane.xlu0 %2680
  %2682 = vadd.xlane.f32.xlu0 %v2661
  %v2683 = vpop.xlane.xlu0 %2682
  %2684 = vadd.xlane.f32.xlu0 %v2662
  %v2685 = vpop.xlane.xlu0 %2684
  %2686 = vadd.xlane.f32.xlu0 %v2663
  %v2687 = vpop.xlane.xlu0 %2686
  %2688 = vadd.xlane.f32.xlu0 %v2664
  %v2689 = vpop.xlane.xlu0 %2688
  %2690 = vadd.xlane.f32.xlu0 %v2665
  %v2691 = vpop.xlane.xlu0 %2690
  %2692 = vadd.xlane.f32.xlu0 %v2666
  %v2693 = vpop.xlane.xlu0 %2692
  %2694 = vadd.xlane.f32.xlu0 %v2667
  %v2695 = vpop.xlane.xlu0 %2694
  %2696 = vadd.xlane.f32.xlu0 %v2668
  %v2697 = vpop.xlane.xlu0 %2696
  %2698 = vadd.xlane.f32.xlu0 %v2669
  %v2699 = vpop.xlane.xlu0 %2698
  %2700 = vadd.xlane.f32.xlu0 %v2670
  %v2701 = vpop.xlane.xlu0 %2700
  %2702 = vadd.xlane.f32.xlu0 %v2671
  %v2703 = vpop.xlane.xlu0 %2702
  %v2704 = vrcp.pop %v2673
  %v2705 = vrcp.pop %v2675
  %v2706 = vrcp.pop %v2677
  %v2707 = vrcp.pop %v2679
  %v2708 = vrcp.pop %v2681
  %v2709 = vrcp.pop %v2683
  %v2710 = vrcp.pop %v2685
  %v2711 = vrcp.pop %v2687
  %v2712 = vrcp.pop %v2689
  %v2713 = vrcp.pop %v2691
  %v2714 = vrcp.pop %v2693
  %v2715 = vrcp.pop %v2695
  %v2716 = vrcp.pop %v2697
  %v2717 = vrcp.pop %v2699
  %v2718 = vrcp.pop %v2701
  %v2719 = vrcp.pop %v2703
  %v2720 = vmul.f32 %v2656, %v2704
  %v2721 = vmul.f32 %v2657, %v2705
  %v2722 = vmul.f32 %v2658, %v2706
  %v2723 = vmul.f32 %v2659, %v2707
  %v2724 = vmul.f32 %v2660, %v2708
  %v2725 = vmul.f32 %v2661, %v2709
  %v2726 = vmul.f32 %v2662, %v2710
  %v2727 = vmul.f32 %v2663, %v2711
  %v2728 = vmul.f32 %v2664, %v2712
  %v2729 = vmul.f32 %v2665, %v2713
  %v2730 = vmul.f32 %v2666, %v2714
  %v2731 = vmul.f32 %v2667, %v2715
  %v2732 = vmul.f32 %v2668, %v2716
  %v2733 = vmul.f32 %v2669, %v2717
  %v2734 = vmul.f32 %v2670, %v2718
  %v2735 = vmul.f32 %v2671, %v2719
  %v2736 = vpack.c.bf16 %v2721, %v2720
  %v2737 = vpack.c.bf16 %v2723, %v2722
  %v2738 = vpack.c.bf16 %v2725, %v2724
  %v2739 = vpack.c.bf16 %v2727, %v2726
  %v2740 = vpack.c.bf16 %v2729, %v2728
  %v2741 = vpack.c.bf16 %v2731, %v2730
  %v2742 = vpack.c.bf16 %v2733, %v2732
  %v2743 = vpack.c.bf16 %v2735, %v2734
  %2744 = vrot.lane.b32.xlu0 %v430, 80
  %v2745 = vpop.permute.xlu0 %2744
  %2746 = vrot.lane.b32.xlu0 %v431, 80
  %v2747 = vpop.permute.xlu0 %2746
  %2748 = vrot.lane.b32.xlu0 %v432, 80
  %v2749 = vpop.permute.xlu0 %2748
  %2750 = vrot.lane.b32.xlu0 %v433, 80
  %v2751 = vpop.permute.xlu0 %2750
  %2752 = vrot.lane.b32.xlu0 %v434, 80
  %v2753 = vpop.permute.xlu0 %2752
  %2754 = vrot.lane.b32.xlu0 %v435, 80
  %v2755 = vpop.permute.xlu0 %2754
  %2756 = vrot.lane.b32.xlu0 %v436, 80
  %v2757 = vpop.permute.xlu0 %2756
  %2758 = vrot.lane.b32.xlu0 %v437, 80
  %v2759 = vpop.permute.xlu0 %2758
  %2768 = vmatpush.bf16.msra.mxu0 %v2759
  %2769 = vmatpush.bf16.msra.mxu0 %v2757
  %2770 = vmatpush.bf16.msra.mxu0 %v2755
  %2771 = vmatpush.bf16.msra.mxu0 %v2753
  %2772 = vmatpush.bf16.msra.mxu0 %v2751
  %2773 = vmatpush.bf16.msra.mxu0 %v2749
  %2774 = vmatpush.bf16.msra.mxu0 %v2747
  %2775 = vmatpush.bf16.msra.mxu0 %v2745
  %2776 = vmatmul.bf16.gmra.mxu0 %v2736
  %v2777 = vpop.f32.mrf.mxu0
  %v2778 = vadd.f32 0.0, %v2777
  %v2779 = vpop.f32.mrf.mxu0
  %v2780 = vadd.f32 0.0, %v2779
  %2781 = vmatmul.bf16.gmra.mxu0 %v2737
  %v2782 = vpop.f32.mrf.mxu0
  %v2783 = vadd.f32 0.0, %v2782
  %v2784 = vpop.f32.mrf.mxu0
  %v2785 = vadd.f32 0.0, %v2784
  %2786 = vmatmul.bf16.gmra.mxu0 %v2738
  %v2787 = vpop.f32.mrf.mxu0
  %v2788 = vadd.f32 0.0, %v2787
  %v2789 = vpop.f32.mrf.mxu0
  %v2790 = vadd.f32 0.0, %v2789
  %2791 = vmatmul.bf16.gmra.mxu0 %v2739
  %v2792 = vpop.f32.mrf.mxu0
  %v2793 = vadd.f32 0.0, %v2792
  %v2794 = vpop.f32.mrf.mxu0
  %v2795 = vadd.f32 0.0, %v2794
  %2796 = vmatmul.bf16.gmra.mxu0 %v2740
  %v2797 = vpop.f32.mrf.mxu0
  %v2798 = vadd.f32 0.0, %v2797
  %v2799 = vpop.f32.mrf.mxu0
  %v2800 = vadd.f32 0.0, %v2799
  %2801 = vmatmul.bf16.gmra.mxu0 %v2741
  %v2802 = vpop.f32.mrf.mxu0
  %v2803 = vadd.f32 0.0, %v2802
  %v2804 = vpop.f32.mrf.mxu0
  %v2805 = vadd.f32 0.0, %v2804
  %2806 = vmatmul.bf16.gmra.mxu0 %v2742
  %v2807 = vpop.f32.mrf.mxu0
  %v2808 = vadd.f32 0.0, %v2807
  %v2809 = vpop.f32.mrf.mxu0
  %v2810 = vadd.f32 0.0, %v2809
  %2811 = vmatmul.bf16.gmra.mxu0 %v2743
  %v2812 = vpop.f32.mrf.mxu0
  %v2813 = vadd.f32 0.0, %v2812
  %v2814 = vpop.f32.mrf.mxu0
  %v2815 = vadd.f32 0.0, %v2814
  %2816 = vdwg.mxu0
  %v2817 = vld [vmem:[%s1 + $0x7] sm:$0x1]
  %2818 = vset.pattern.permute.xlu0 7
  %2819 = vperm.xlu0 %2818, %v85
  %v2820 = vpop.permute.xlu0 %2819
  %2822 = vset.pattern.permute.xlu0 7
  %2823 = vperm.xlu0 %2822, %v86
  %v2824 = vpop.permute.xlu0 %2823
  %2826 = vset.pattern.permute.xlu0 7
  %2827 = vperm.xlu0 %2826, %v87
  %v2828 = vpop.permute.xlu0 %2827
  %2830 = vset.pattern.permute.xlu0 7
  %2831 = vperm.xlu0 %2830, %v88
  %v2832 = vpop.permute.xlu0 %2831
  %2834 = vset.pattern.permute.xlu0 7
  %2835 = vperm.xlu0 %2834, %v89
  %v2836 = vpop.permute.xlu0 %2835
  %2838 = vset.pattern.permute.xlu0 7
  %2839 = vperm.xlu0 %2838, %v90
  %v2840 = vpop.permute.xlu0 %2839
  %2842 = vset.pattern.permute.xlu0 7
  %2843 = vperm.xlu0 %2842, %v91
  %v2844 = vpop.permute.xlu0 %2843
  %2846 = vset.pattern.permute.xlu0 7
  %2847 = vperm.xlu0 %2846, %v92
  %v2848 = vpop.permute.xlu0 %2847
  %2850 = vset.pattern.permute.xlu0 7
  %2851 = vperm.xlu0 %2850, %v93
  %v2852 = vpop.permute.xlu0 %2851
  %2854 = vset.pattern.permute.xlu0 7
  %2855 = vperm.xlu0 %2854, %v94
  %v2856 = vpop.permute.xlu0 %2855
  %2858 = vset.pattern.permute.xlu0 7
  %2859 = vperm.xlu0 %2858, %v95
  %v2860 = vpop.permute.xlu0 %2859
  %2862 = vset.pattern.permute.xlu0 7
  %2863 = vperm.xlu0 %2862, %v96
  %v2864 = vpop.permute.xlu0 %2863
  %2866 = vset.pattern.permute.xlu0 7
  %2867 = vperm.xlu0 %2866, %v97
  %v2868 = vpop.permute.xlu0 %2867
  %2870 = vset.pattern.permute.xlu0 7
  %2871 = vperm.xlu0 %2870, %v98
  %v2872 = vpop.permute.xlu0 %2871
  %2874 = vset.pattern.permute.xlu0 7
  %2875 = vperm.xlu0 %2874, %v99
  %v2876 = vpop.permute.xlu0 %2875
  %2878 = vset.pattern.permute.xlu0 7
  %2879 = vperm.xlu0 %2878, %v100
  %v2880 = vpop.permute.xlu0 %2879
  %v2882 = vperm.slane %v2817, 0
  %v2883 = vadd.f32 %v2820, %v2882
  %v2884 = vadd.f32 %v2824, %v2882
  %v2885 = vadd.f32 %v2828, %v2882
  %v2886 = vadd.f32 %v2832, %v2882
  %v2887 = vadd.f32 %v2836, %v2882
  %v2888 = vadd.f32 %v2840, %v2882
  %v2889 = vadd.f32 %v2844, %v2882
  %v2890 = vadd.f32 %v2848, %v2882
  %v2891 = vadd.f32 %v2852, %v2882
  %v2892 = vadd.f32 %v2856, %v2882
  %v2893 = vadd.f32 %v2860, %v2882
  %v2894 = vadd.f32 %v2864, %v2882
  %v2895 = vadd.f32 %v2868, %v2882
  %v2896 = vadd.f32 %v2872, %v2882
  %v2897 = vadd.f32 %v2876, %v2882
  %v2898 = vadd.f32 %v2880, %v2882
  %vm2899 = vcmp.gt.f32.partialorder %v2883, 0.0
  %vm2900 = vcmp.gt.f32.partialorder %v2884, 0.0
  %vm2901 = vcmp.gt.f32.partialorder %v2885, 0.0
  %vm2902 = vcmp.gt.f32.partialorder %v2886, 0.0
  %vm2903 = vcmp.gt.f32.partialorder %v2887, 0.0
  %vm2904 = vcmp.gt.f32.partialorder %v2888, 0.0
  %vm2905 = vcmp.gt.f32.partialorder %v2889, 0.0
  %vm2906 = vcmp.gt.f32.partialorder %v2890, 0.0
  %vm2907 = vcmp.gt.f32.partialorder %v2891, 0.0
  %vm2908 = vcmp.gt.f32.partialorder %v2892, 0.0
  %vm2909 = vcmp.gt.f32.partialorder %v2893, 0.0
  %vm2910 = vcmp.gt.f32.partialorder %v2894, 0.0
  %vm2911 = vcmp.gt.f32.partialorder %v2895, 0.0
  %vm2912 = vcmp.gt.f32.partialorder %v2896, 0.0
  %vm2913 = vcmp.gt.f32.partialorder %v2897, 0.0
  %vm2914 = vcmp.gt.f32.partialorder %v2898, 0.0
  %v2915 = vmul.f32 %v2883, 0.2
  %v2916 = vmul.f32 %v2884, 0.2
  %v2917 = vmul.f32 %v2885, 0.2
  %v2918 = vmul.f32 %v2886, 0.2
  %v2919 = vmul.f32 %v2887, 0.2
  %v2920 = vmul.f32 %v2888, 0.2
  %v2921 = vmul.f32 %v2889, 0.2
  %v2922 = vmul.f32 %v2890, 0.2
  %v2923 = vmul.f32 %v2891, 0.2
  %v2924 = vmul.f32 %v2892, 0.2
  %v2925 = vmul.f32 %v2893, 0.2
  %v2926 = vmul.f32 %v2894, 0.2
  %v2927 = vmul.f32 %v2895, 0.2
  %v2928 = vmul.f32 %v2896, 0.2
  %v2929 = vmul.f32 %v2897, 0.2
  %v2930 = vmul.f32 %v2898, 0.2
  %v2931 = vsel %vm2899, %v2883, %v2915
  %v2932 = vsel %vm2900, %v2884, %v2916
  %v2933 = vsel %vm2901, %v2885, %v2917
  %v2934 = vsel %vm2902, %v2886, %v2918
  %v2935 = vsel %vm2903, %v2887, %v2919
  %v2936 = vsel %vm2904, %v2888, %v2920
  %v2937 = vsel %vm2905, %v2889, %v2921
  %v2938 = vsel %vm2906, %v2890, %v2922
  %v2939 = vsel %vm2907, %v2891, %v2923
  %v2940 = vsel %vm2908, %v2892, %v2924
  %v2941 = vsel %vm2909, %v2893, %v2925
  %v2942 = vsel %vm2910, %v2894, %v2926
  %v2943 = vsel %vm2911, %v2895, %v2927
  %v2944 = vsel %vm2912, %v2896, %v2928
  %v2945 = vsel %vm2913, %v2897, %v2929
  %v2946 = vsel %vm2914, %v2898, %v2930
  %v2947 = vsel %vm52, %v2931, -1e+30
  %v2948 = vsel %vm53, %v2932, -1e+30
  %v2949 = vsel %vm54, %v2933, -1e+30
  %v2950 = vsel %vm55, %v2934, -1e+30
  %v2951 = vsel %vm56, %v2935, -1e+30
  %v2952 = vsel %vm57, %v2936, -1e+30
  %v2953 = vsel %vm58, %v2937, -1e+30
  %v2954 = vsel %vm59, %v2938, -1e+30
  %v2955 = vsel %vm60, %v2939, -1e+30
  %v2956 = vsel %vm61, %v2940, -1e+30
  %v2957 = vsel %vm62, %v2941, -1e+30
  %v2958 = vsel %vm63, %v2942, -1e+30
  %v2959 = vsel %vm64, %v2943, -1e+30
  %v2960 = vsel %vm65, %v2944, -1e+30
  %v2961 = vsel %vm66, %v2945, -1e+30
  %v2962 = vsel %vm67, %v2946, -1e+30
  %2963 = vmax.xlane.f32.xlu0 %v2947
  %v2964 = vpop.xlane.xlu0 %2963
  %2965 = vmax.xlane.f32.xlu0 %v2948
  %v2966 = vpop.xlane.xlu0 %2965
  %2967 = vmax.xlane.f32.xlu0 %v2949
  %v2968 = vpop.xlane.xlu0 %2967
  %2969 = vmax.xlane.f32.xlu0 %v2950
  %v2970 = vpop.xlane.xlu0 %2969
  %2971 = vmax.xlane.f32.xlu0 %v2951
  %v2972 = vpop.xlane.xlu0 %2971
  %2973 = vmax.xlane.f32.xlu0 %v2952
  %v2974 = vpop.xlane.xlu0 %2973
  %2975 = vmax.xlane.f32.xlu0 %v2953
  %v2976 = vpop.xlane.xlu0 %2975
  %2977 = vmax.xlane.f32.xlu0 %v2954
  %v2978 = vpop.xlane.xlu0 %2977
  %2979 = vmax.xlane.f32.xlu0 %v2955
  %v2980 = vpop.xlane.xlu0 %2979
  %2981 = vmax.xlane.f32.xlu0 %v2956
  %v2982 = vpop.xlane.xlu0 %2981
  %2983 = vmax.xlane.f32.xlu0 %v2957
  %v2984 = vpop.xlane.xlu0 %2983
  %2985 = vmax.xlane.f32.xlu0 %v2958
  %v2986 = vpop.xlane.xlu0 %2985
  %2987 = vmax.xlane.f32.xlu0 %v2959
  %v2988 = vpop.xlane.xlu0 %2987
  %2989 = vmax.xlane.f32.xlu0 %v2960
  %v2990 = vpop.xlane.xlu0 %2989
  %2991 = vmax.xlane.f32.xlu0 %v2961
  %v2992 = vpop.xlane.xlu0 %2991
  %2993 = vmax.xlane.f32.xlu0 %v2962
  %v2994 = vpop.xlane.xlu0 %2993
  %v2995 = vsub.f32 %v2947, %v2964
  %v2996 = vsub.f32 %v2948, %v2966
  %v2997 = vsub.f32 %v2949, %v2968
  %v2998 = vsub.f32 %v2950, %v2970
  %v2999 = vsub.f32 %v2951, %v2972
  %v3000 = vsub.f32 %v2952, %v2974
  %v3001 = vsub.f32 %v2953, %v2976
  %v3002 = vsub.f32 %v2954, %v2978
  %v3003 = vsub.f32 %v2955, %v2980
  %v3004 = vsub.f32 %v2956, %v2982
  %v3005 = vsub.f32 %v2957, %v2984
  %v3006 = vsub.f32 %v2958, %v2986
  %v3007 = vsub.f32 %v2959, %v2988
  %v3008 = vsub.f32 %v2960, %v2990
  %v3009 = vsub.f32 %v2961, %v2992
  %v3010 = vsub.f32 %v2962, %v2994
  %v3011 = vmul.f32 %v2995, 1.442695
  %v3012 = vpow.pop %v3011
  %v3013 = vmul.f32 %v2996, 1.442695
  %v3014 = vpow.pop %v3013
  %v3015 = vmul.f32 %v2997, 1.442695
  %v3016 = vpow.pop %v3015
  %v3017 = vmul.f32 %v2998, 1.442695
  %v3018 = vpow.pop %v3017
  %v3019 = vmul.f32 %v2999, 1.442695
  %v3020 = vpow.pop %v3019
  %v3021 = vmul.f32 %v3000, 1.442695
  %v3022 = vpow.pop %v3021
  %v3023 = vmul.f32 %v3001, 1.442695
  %v3024 = vpow.pop %v3023
  %v3025 = vmul.f32 %v3002, 1.442695
  %v3026 = vpow.pop %v3025
  %v3027 = vmul.f32 %v3003, 1.442695
  %v3028 = vpow.pop %v3027
  %v3029 = vmul.f32 %v3004, 1.442695
  %v3030 = vpow.pop %v3029
  %v3031 = vmul.f32 %v3005, 1.442695
  %v3032 = vpow.pop %v3031
  %v3033 = vmul.f32 %v3006, 1.442695
  %v3034 = vpow.pop %v3033
  %v3035 = vmul.f32 %v3007, 1.442695
  %v3036 = vpow.pop %v3035
  %v3037 = vmul.f32 %v3008, 1.442695
  %v3038 = vpow.pop %v3037
  %v3039 = vmul.f32 %v3009, 1.442695
  %v3040 = vpow.pop %v3039
  %v3041 = vmul.f32 %v3010, 1.442695
  %v3042 = vpow.pop %v3041
  %v3043 = vsel %vm52, %v3012, 0.0
  %v3044 = vsel %vm53, %v3014, 0.0
  %v3045 = vsel %vm54, %v3016, 0.0
  %v3046 = vsel %vm55, %v3018, 0.0
  %v3047 = vsel %vm56, %v3020, 0.0
  %v3048 = vsel %vm57, %v3022, 0.0
  %v3049 = vsel %vm58, %v3024, 0.0
  %v3050 = vsel %vm59, %v3026, 0.0
  %v3051 = vsel %vm60, %v3028, 0.0
  %v3052 = vsel %vm61, %v3030, 0.0
  %v3053 = vsel %vm62, %v3032, 0.0
  %v3054 = vsel %vm63, %v3034, 0.0
  %v3055 = vsel %vm64, %v3036, 0.0
  %v3056 = vsel %vm65, %v3038, 0.0
  %v3057 = vsel %vm66, %v3040, 0.0
  %v3058 = vsel %vm67, %v3042, 0.0
  %3059 = vadd.xlane.f32.xlu0 %v3043
  %v3060 = vpop.xlane.xlu0 %3059
  %3061 = vadd.xlane.f32.xlu0 %v3044
  %v3062 = vpop.xlane.xlu0 %3061
  %3063 = vadd.xlane.f32.xlu0 %v3045
  %v3064 = vpop.xlane.xlu0 %3063
  %3065 = vadd.xlane.f32.xlu0 %v3046
  %v3066 = vpop.xlane.xlu0 %3065
  %3067 = vadd.xlane.f32.xlu0 %v3047
  %v3068 = vpop.xlane.xlu0 %3067
  %3069 = vadd.xlane.f32.xlu0 %v3048
  %v3070 = vpop.xlane.xlu0 %3069
  %3071 = vadd.xlane.f32.xlu0 %v3049
  %v3072 = vpop.xlane.xlu0 %3071
  %3073 = vadd.xlane.f32.xlu0 %v3050
  %v3074 = vpop.xlane.xlu0 %3073
  %3075 = vadd.xlane.f32.xlu0 %v3051
  %v3076 = vpop.xlane.xlu0 %3075
  %3077 = vadd.xlane.f32.xlu0 %v3052
  %v3078 = vpop.xlane.xlu0 %3077
  %3079 = vadd.xlane.f32.xlu0 %v3053
  %v3080 = vpop.xlane.xlu0 %3079
  %3081 = vadd.xlane.f32.xlu0 %v3054
  %v3082 = vpop.xlane.xlu0 %3081
  %3083 = vadd.xlane.f32.xlu0 %v3055
  %v3084 = vpop.xlane.xlu0 %3083
  %3085 = vadd.xlane.f32.xlu0 %v3056
  %v3086 = vpop.xlane.xlu0 %3085
  %3087 = vadd.xlane.f32.xlu0 %v3057
  %v3088 = vpop.xlane.xlu0 %3087
  %3089 = vadd.xlane.f32.xlu0 %v3058
  %v3090 = vpop.xlane.xlu0 %3089
  %v3091 = vrcp.pop %v3060
  %v3092 = vrcp.pop %v3062
  %v3093 = vrcp.pop %v3064
  %v3094 = vrcp.pop %v3066
  %v3095 = vrcp.pop %v3068
  %v3096 = vrcp.pop %v3070
  %v3097 = vrcp.pop %v3072
  %v3098 = vrcp.pop %v3074
  %v3099 = vrcp.pop %v3076
  %v3100 = vrcp.pop %v3078
  %v3101 = vrcp.pop %v3080
  %v3102 = vrcp.pop %v3082
  %v3103 = vrcp.pop %v3084
  %v3104 = vrcp.pop %v3086
  %v3105 = vrcp.pop %v3088
  %v3106 = vrcp.pop %v3090
  %v3107 = vmul.f32 %v3043, %v3091
  %v3108 = vmul.f32 %v3044, %v3092
  %v3109 = vmul.f32 %v3045, %v3093
  %v3110 = vmul.f32 %v3046, %v3094
  %v3111 = vmul.f32 %v3047, %v3095
  %v3112 = vmul.f32 %v3048, %v3096
  %v3113 = vmul.f32 %v3049, %v3097
  %v3114 = vmul.f32 %v3050, %v3098
  %v3115 = vmul.f32 %v3051, %v3099
  %v3116 = vmul.f32 %v3052, %v3100
  %v3117 = vmul.f32 %v3053, %v3101
  %v3118 = vmul.f32 %v3054, %v3102
  %v3119 = vmul.f32 %v3055, %v3103
  %v3120 = vmul.f32 %v3056, %v3104
  %v3121 = vmul.f32 %v3057, %v3105
  %v3122 = vmul.f32 %v3058, %v3106
  %v3123 = vpack.c.bf16 %v3108, %v3107
  %v3124 = vpack.c.bf16 %v3110, %v3109
  %v3125 = vpack.c.bf16 %v3112, %v3111
  %v3126 = vpack.c.bf16 %v3114, %v3113
  %v3127 = vpack.c.bf16 %v3116, %v3115
  %v3128 = vpack.c.bf16 %v3118, %v3117
  %v3129 = vpack.c.bf16 %v3120, %v3119
  %v3130 = vpack.c.bf16 %v3122, %v3121
  %3131 = vrot.lane.b32.xlu0 %v430, 72
  %v3132 = vpop.permute.xlu0 %3131
  %3133 = vrot.lane.b32.xlu0 %v431, 72
  %v3134 = vpop.permute.xlu0 %3133
  %3135 = vrot.lane.b32.xlu0 %v432, 72
  %v3136 = vpop.permute.xlu0 %3135
  %3137 = vrot.lane.b32.xlu0 %v433, 72
  %v3138 = vpop.permute.xlu0 %3137
  %3139 = vrot.lane.b32.xlu0 %v434, 72
  %v3140 = vpop.permute.xlu0 %3139
  %3141 = vrot.lane.b32.xlu0 %v435, 72
  %v3142 = vpop.permute.xlu0 %3141
  %3143 = vrot.lane.b32.xlu0 %v436, 72
  %v3144 = vpop.permute.xlu0 %3143
  %3145 = vrot.lane.b32.xlu0 %v437, 72
  %v3146 = vpop.permute.xlu0 %3145
  %3155 = vmatpush.bf16.msra.mxu0 %v3146
  %3156 = vmatpush.bf16.msra.mxu0 %v3144
  %3157 = vmatpush.bf16.msra.mxu0 %v3142
  %3158 = vmatpush.bf16.msra.mxu0 %v3140
  %3159 = vmatpush.bf16.msra.mxu0 %v3138
  %3160 = vmatpush.bf16.msra.mxu0 %v3136
  %3161 = vmatpush.bf16.msra.mxu0 %v3134
  %3162 = vmatpush.bf16.msra.mxu0 %v3132
  %3163 = vmatmul.bf16.gmra.mxu0 %v3123
  %v3164 = vpop.f32.mrf.mxu0
  %v3165 = vadd.f32 0.0, %v3164
  %v3166 = vpop.f32.mrf.mxu0
  %v3167 = vadd.f32 0.0, %v3166
  %3168 = vmatmul.bf16.gmra.mxu0 %v3124
  %v3169 = vpop.f32.mrf.mxu0
  %v3170 = vadd.f32 0.0, %v3169
  %v3171 = vpop.f32.mrf.mxu0
  %v3172 = vadd.f32 0.0, %v3171
  %3173 = vmatmul.bf16.gmra.mxu0 %v3125
  %v3174 = vpop.f32.mrf.mxu0
  %v3175 = vadd.f32 0.0, %v3174
  %v3176 = vpop.f32.mrf.mxu0
  %v3177 = vadd.f32 0.0, %v3176
  %3178 = vmatmul.bf16.gmra.mxu0 %v3126
  %v3179 = vpop.f32.mrf.mxu0
  %v3180 = vadd.f32 0.0, %v3179
  %v3181 = vpop.f32.mrf.mxu0
  %v3182 = vadd.f32 0.0, %v3181
  %3183 = vmatmul.bf16.gmra.mxu0 %v3127
  %v3184 = vpop.f32.mrf.mxu0
  %v3185 = vadd.f32 0.0, %v3184
  %v3186 = vpop.f32.mrf.mxu0
  %v3187 = vadd.f32 0.0, %v3186
  %3188 = vmatmul.bf16.gmra.mxu0 %v3128
  %v3189 = vpop.f32.mrf.mxu0
  %v3190 = vadd.f32 0.0, %v3189
  %v3191 = vpop.f32.mrf.mxu0
  %v3192 = vadd.f32 0.0, %v3191
  %3193 = vmatmul.bf16.gmra.mxu0 %v3129
  %v3194 = vpop.f32.mrf.mxu0
  %v3195 = vadd.f32 0.0, %v3194
  %v3196 = vpop.f32.mrf.mxu0
  %v3197 = vadd.f32 0.0, %v3196
  %3198 = vmatmul.bf16.gmra.mxu0 %v3130
  %v3199 = vpop.f32.mrf.mxu0
  %v3200 = vadd.f32 0.0, %v3199
  %v3201 = vpop.f32.mrf.mxu0
  %v3202 = vadd.f32 0.0, %v3201
  %3203 = vdwg.mxu0
  %3220 = vrot.lane.b32.xlu0 %v843, 8
  %v3221 = vpop.permute.xlu0 %3220
  %3222 = vrot.lane.b32.xlu0 %v845, 8
  %v3223 = vpop.permute.xlu0 %3222
  %3224 = vrot.lane.b32.xlu0 %v848, 8
  %v3225 = vpop.permute.xlu0 %3224
  %3226 = vrot.lane.b32.xlu0 %v850, 8
  %v3227 = vpop.permute.xlu0 %3226
  %3228 = vrot.lane.b32.xlu0 %v853, 8
  %v3229 = vpop.permute.xlu0 %3228
  %3230 = vrot.lane.b32.xlu0 %v855, 8
  %v3231 = vpop.permute.xlu0 %3230
  %3232 = vrot.lane.b32.xlu0 %v858, 8
  %v3233 = vpop.permute.xlu0 %3232
  %3234 = vrot.lane.b32.xlu0 %v860, 8
  %v3235 = vpop.permute.xlu0 %3234
  %3236 = vrot.lane.b32.xlu0 %v863, 8
  %v3237 = vpop.permute.xlu0 %3236
  %3238 = vrot.lane.b32.xlu0 %v865, 8
  %v3239 = vpop.permute.xlu0 %3238
  %3240 = vrot.lane.b32.xlu0 %v868, 8
  %v3241 = vpop.permute.xlu0 %3240
  %3242 = vrot.lane.b32.xlu0 %v870, 8
  %v3243 = vpop.permute.xlu0 %3242
  %3244 = vrot.lane.b32.xlu0 %v873, 8
  %v3245 = vpop.permute.xlu0 %3244
  %3246 = vrot.lane.b32.xlu0 %v875, 8
  %v3247 = vpop.permute.xlu0 %3246
  %3248 = vrot.lane.b32.xlu0 %v878, 8
  %v3249 = vpop.permute.xlu0 %3248
  %3250 = vrot.lane.b32.xlu0 %v880, 8
  %v3251 = vpop.permute.xlu0 %3250
  %3284 = vrot.lane.b32.xlu0 %v1230, 16
  %v3285 = vpop.permute.xlu0 %3284
  %3286 = vrot.lane.b32.xlu0 %v1232, 16
  %v3287 = vpop.permute.xlu0 %3286
  %3288 = vrot.lane.b32.xlu0 %v1235, 16
  %v3289 = vpop.permute.xlu0 %3288
  %3290 = vrot.lane.b32.xlu0 %v1237, 16
  %v3291 = vpop.permute.xlu0 %3290
  %3292 = vrot.lane.b32.xlu0 %v1240, 16
  %v3293 = vpop.permute.xlu0 %3292
  %3294 = vrot.lane.b32.xlu0 %v1242, 16
  %v3295 = vpop.permute.xlu0 %3294
  %3296 = vrot.lane.b32.xlu0 %v1245, 16
  %v3297 = vpop.permute.xlu0 %3296
  %3298 = vrot.lane.b32.xlu0 %v1247, 16
  %v3299 = vpop.permute.xlu0 %3298
  %3300 = vrot.lane.b32.xlu0 %v1250, 16
  %v3301 = vpop.permute.xlu0 %3300
  %3302 = vrot.lane.b32.xlu0 %v1252, 16
  %v3303 = vpop.permute.xlu0 %3302
  %3304 = vrot.lane.b32.xlu0 %v1255, 16
  %v3305 = vpop.permute.xlu0 %3304
  %3306 = vrot.lane.b32.xlu0 %v1257, 16
  %v3307 = vpop.permute.xlu0 %3306
  %3308 = vrot.lane.b32.xlu0 %v1260, 16
  %v3309 = vpop.permute.xlu0 %3308
  %3310 = vrot.lane.b32.xlu0 %v1262, 16
  %v3311 = vpop.permute.xlu0 %3310
  %3312 = vrot.lane.b32.xlu0 %v1265, 16
  %v3313 = vpop.permute.xlu0 %3312
  %3314 = vrot.lane.b32.xlu0 %v1267, 16
  %v3315 = vpop.permute.xlu0 %3314
  %3348 = vrot.lane.b32.xlu0 %v1617, 24
  %v3349 = vpop.permute.xlu0 %3348
  %3350 = vrot.lane.b32.xlu0 %v1619, 24
  %v3351 = vpop.permute.xlu0 %3350
  %3352 = vrot.lane.b32.xlu0 %v1622, 24
  %v3353 = vpop.permute.xlu0 %3352
  %3354 = vrot.lane.b32.xlu0 %v1624, 24
  %v3355 = vpop.permute.xlu0 %3354
  %3356 = vrot.lane.b32.xlu0 %v1627, 24
  %v3357 = vpop.permute.xlu0 %3356
  %3358 = vrot.lane.b32.xlu0 %v1629, 24
  %v3359 = vpop.permute.xlu0 %3358
  %3360 = vrot.lane.b32.xlu0 %v1632, 24
  %v3361 = vpop.permute.xlu0 %3360
  %3362 = vrot.lane.b32.xlu0 %v1634, 24
  %v3363 = vpop.permute.xlu0 %3362
  %3364 = vrot.lane.b32.xlu0 %v1637, 24
  %v3365 = vpop.permute.xlu0 %3364
  %3366 = vrot.lane.b32.xlu0 %v1639, 24
  %v3367 = vpop.permute.xlu0 %3366
  %3368 = vrot.lane.b32.xlu0 %v1642, 24
  %v3369 = vpop.permute.xlu0 %3368
  %3370 = vrot.lane.b32.xlu0 %v1644, 24
  %v3371 = vpop.permute.xlu0 %3370
  %3372 = vrot.lane.b32.xlu0 %v1647, 24
  %v3373 = vpop.permute.xlu0 %3372
  %3374 = vrot.lane.b32.xlu0 %v1649, 24
  %v3375 = vpop.permute.xlu0 %3374
  %3376 = vrot.lane.b32.xlu0 %v1652, 24
  %v3377 = vpop.permute.xlu0 %3376
  %3378 = vrot.lane.b32.xlu0 %v1654, 24
  %v3379 = vpop.permute.xlu0 %3378
  %3412 = vrot.lane.b32.xlu0 %v2004, 32
  %v3413 = vpop.permute.xlu0 %3412
  %3414 = vrot.lane.b32.xlu0 %v2006, 32
  %v3415 = vpop.permute.xlu0 %3414
  %3416 = vrot.lane.b32.xlu0 %v2009, 32
  %v3417 = vpop.permute.xlu0 %3416
  %3418 = vrot.lane.b32.xlu0 %v2011, 32
  %v3419 = vpop.permute.xlu0 %3418
  %3420 = vrot.lane.b32.xlu0 %v2014, 32
  %v3421 = vpop.permute.xlu0 %3420
  %3422 = vrot.lane.b32.xlu0 %v2016, 32
  %v3423 = vpop.permute.xlu0 %3422
  %3424 = vrot.lane.b32.xlu0 %v2019, 32
  %v3425 = vpop.permute.xlu0 %3424
  %3426 = vrot.lane.b32.xlu0 %v2021, 32
  %v3427 = vpop.permute.xlu0 %3426
  %3428 = vrot.lane.b32.xlu0 %v2024, 32
  %v3429 = vpop.permute.xlu0 %3428
  %3430 = vrot.lane.b32.xlu0 %v2026, 32
  %v3431 = vpop.permute.xlu0 %3430
  %3432 = vrot.lane.b32.xlu0 %v2029, 32
  %v3433 = vpop.permute.xlu0 %3432
  %3434 = vrot.lane.b32.xlu0 %v2031, 32
  %v3435 = vpop.permute.xlu0 %3434
  %3436 = vrot.lane.b32.xlu0 %v2034, 32
  %v3437 = vpop.permute.xlu0 %3436
  %3438 = vrot.lane.b32.xlu0 %v2036, 32
  %v3439 = vpop.permute.xlu0 %3438
  %3440 = vrot.lane.b32.xlu0 %v2039, 32
  %v3441 = vpop.permute.xlu0 %3440
  %3442 = vrot.lane.b32.xlu0 %v2041, 32
  %v3443 = vpop.permute.xlu0 %3442
  %3476 = vrot.lane.b32.xlu0 %v2391, 40
  %v3477 = vpop.permute.xlu0 %3476
  %3478 = vrot.lane.b32.xlu0 %v2393, 40
  %v3479 = vpop.permute.xlu0 %3478
  %3480 = vrot.lane.b32.xlu0 %v2396, 40
  %v3481 = vpop.permute.xlu0 %3480
  %3482 = vrot.lane.b32.xlu0 %v2398, 40
  %v3483 = vpop.permute.xlu0 %3482
  %3484 = vrot.lane.b32.xlu0 %v2401, 40
  %v3485 = vpop.permute.xlu0 %3484
  %3486 = vrot.lane.b32.xlu0 %v2403, 40
  %v3487 = vpop.permute.xlu0 %3486
  %3488 = vrot.lane.b32.xlu0 %v2406, 40
  %v3489 = vpop.permute.xlu0 %3488
  %3490 = vrot.lane.b32.xlu0 %v2408, 40
  %v3491 = vpop.permute.xlu0 %3490
  %3492 = vrot.lane.b32.xlu0 %v2411, 40
  %v3493 = vpop.permute.xlu0 %3492
  %3494 = vrot.lane.b32.xlu0 %v2413, 40
  %v3495 = vpop.permute.xlu0 %3494
  %3496 = vrot.lane.b32.xlu0 %v2416, 40
  %v3497 = vpop.permute.xlu0 %3496
  %3498 = vrot.lane.b32.xlu0 %v2418, 40
  %v3499 = vpop.permute.xlu0 %3498
  %3500 = vrot.lane.b32.xlu0 %v2421, 40
  %v3501 = vpop.permute.xlu0 %3500
  %3502 = vrot.lane.b32.xlu0 %v2423, 40
  %v3503 = vpop.permute.xlu0 %3502
  %3504 = vrot.lane.b32.xlu0 %v2426, 40
  %v3505 = vpop.permute.xlu0 %3504
  %3506 = vrot.lane.b32.xlu0 %v2428, 40
  %v3507 = vpop.permute.xlu0 %3506
  %3540 = vrot.lane.b32.xlu0 %v2778, 48
  %v3541 = vpop.permute.xlu0 %3540
  %3542 = vrot.lane.b32.xlu0 %v2780, 48
  %v3543 = vpop.permute.xlu0 %3542
  %3544 = vrot.lane.b32.xlu0 %v2783, 48
  %v3545 = vpop.permute.xlu0 %3544
  %3546 = vrot.lane.b32.xlu0 %v2785, 48
  %v3547 = vpop.permute.xlu0 %3546
  %3548 = vrot.lane.b32.xlu0 %v2788, 48
  %v3549 = vpop.permute.xlu0 %3548
  %3550 = vrot.lane.b32.xlu0 %v2790, 48
  %v3551 = vpop.permute.xlu0 %3550
  %3552 = vrot.lane.b32.xlu0 %v2793, 48
  %v3553 = vpop.permute.xlu0 %3552
  %3554 = vrot.lane.b32.xlu0 %v2795, 48
  %v3555 = vpop.permute.xlu0 %3554
  %3556 = vrot.lane.b32.xlu0 %v2798, 48
  %v3557 = vpop.permute.xlu0 %3556
  %3558 = vrot.lane.b32.xlu0 %v2800, 48
  %v3559 = vpop.permute.xlu0 %3558
  %3560 = vrot.lane.b32.xlu0 %v2803, 48
  %v3561 = vpop.permute.xlu0 %3560
  %3562 = vrot.lane.b32.xlu0 %v2805, 48
  %v3563 = vpop.permute.xlu0 %3562
  %3564 = vrot.lane.b32.xlu0 %v2808, 48
  %v3565 = vpop.permute.xlu0 %3564
  %3566 = vrot.lane.b32.xlu0 %v2810, 48
  %v3567 = vpop.permute.xlu0 %3566
  %3568 = vrot.lane.b32.xlu0 %v2813, 48
  %v3569 = vpop.permute.xlu0 %3568
  %3570 = vrot.lane.b32.xlu0 %v2815, 48
  %v3571 = vpop.permute.xlu0 %3570
  %3604 = vrot.lane.b32.xlu0 %v3165, 56
  %v3605 = vpop.permute.xlu0 %3604
  %3606 = vrot.lane.b32.xlu0 %v3167, 56
  %v3607 = vpop.permute.xlu0 %3606
  %3608 = vrot.lane.b32.xlu0 %v3170, 56
  %v3609 = vpop.permute.xlu0 %3608
  %3610 = vrot.lane.b32.xlu0 %v3172, 56
  %v3611 = vpop.permute.xlu0 %3610
  %3612 = vrot.lane.b32.xlu0 %v3175, 56
  %v3613 = vpop.permute.xlu0 %3612
  %3614 = vrot.lane.b32.xlu0 %v3177, 56
  %v3615 = vpop.permute.xlu0 %3614
  %3616 = vrot.lane.b32.xlu0 %v3180, 56
  %v3617 = vpop.permute.xlu0 %3616
  %3618 = vrot.lane.b32.xlu0 %v3182, 56
  %v3619 = vpop.permute.xlu0 %3618
  %3620 = vrot.lane.b32.xlu0 %v3185, 56
  %v3621 = vpop.permute.xlu0 %3620
  %3622 = vrot.lane.b32.xlu0 %v3187, 56
  %v3623 = vpop.permute.xlu0 %3622
  %3624 = vrot.lane.b32.xlu0 %v3190, 56
  %v3625 = vpop.permute.xlu0 %3624
  %3626 = vrot.lane.b32.xlu0 %v3192, 56
  %v3627 = vpop.permute.xlu0 %3626
  %3628 = vrot.lane.b32.xlu0 %v3195, 56
  %v3629 = vpop.permute.xlu0 %3628
  %3630 = vrot.lane.b32.xlu0 %v3197, 56
  %v3631 = vpop.permute.xlu0 %3630
  %3632 = vrot.lane.b32.xlu0 %v3200, 56
  %v3633 = vpop.permute.xlu0 %3632
  %3634 = vrot.lane.b32.xlu0 %v3202, 56
  %v3635 = vpop.permute.xlu0 %3634
  %vm3652 = vcmask 64512
  %v3653 = vsel %vm3652, %v448, %v3221
  %v3654 = vsel %vm3652, %v450, %v3223
  %v3655 = vsel %vm3652, %v453, %v3225
  %v3656 = vsel %vm3652, %v455, %v3227
  %v3657 = vsel %vm3652, %v458, %v3229
  %v3658 = vsel %vm3652, %v460, %v3231
  %v3659 = vsel %vm3652, %v463, %v3233
  %v3660 = vsel %vm3652, %v465, %v3235
  %v3661 = vsel %vm3652, %v468, %v3237
  %v3662 = vsel %vm3652, %v470, %v3239
  %v3663 = vsel %vm3652, %v473, %v3241
  %v3664 = vsel %vm3652, %v475, %v3243
  %v3665 = vsel %vm3652, %v478, %v3245
  %v3666 = vsel %vm3652, %v480, %v3247
  %v3667 = vsel %vm3652, %v483, %v3249
  %v3668 = vsel %vm3652, %v485, %v3251
  %vm3669 = vcmask 130048
  %v3670 = vsel %vm3669, %v3653, %v3285
  %v3671 = vsel %vm3669, %v3654, %v3287
  %v3672 = vsel %vm3669, %v3655, %v3289
  %v3673 = vsel %vm3669, %v3656, %v3291
  %v3674 = vsel %vm3669, %v3657, %v3293
  %v3675 = vsel %vm3669, %v3658, %v3295
  %v3676 = vsel %vm3669, %v3659, %v3297
  %v3677 = vsel %vm3669, %v3660, %v3299
  %v3678 = vsel %vm3669, %v3661, %v3301
  %v3679 = vsel %vm3669, %v3662, %v3303
  %v3680 = vsel %vm3669, %v3663, %v3305
  %v3681 = vsel %vm3669, %v3664, %v3307
  %v3682 = vsel %vm3669, %v3665, %v3309
  %v3683 = vsel %vm3669, %v3666, %v3311
  %v3684 = vsel %vm3669, %v3667, %v3313
  %v3685 = vsel %vm3669, %v3668, %v3315
  %vm3686 = vcmask 195584
  %v3687 = vsel %vm3686, %v3670, %v3349
  %v3688 = vsel %vm3686, %v3671, %v3351
  %v3689 = vsel %vm3686, %v3672, %v3353
  %v3690 = vsel %vm3686, %v3673, %v3355
  %v3691 = vsel %vm3686, %v3674, %v3357
  %v3692 = vsel %vm3686, %v3675, %v3359
  %v3693 = vsel %vm3686, %v3676, %v3361
  %v3694 = vsel %vm3686, %v3677, %v3363
  %v3695 = vsel %vm3686, %v3678, %v3365
  %v3696 = vsel %vm3686, %v3679, %v3367
  %v3697 = vsel %vm3686, %v3680, %v3369
  %v3698 = vsel %vm3686, %v3681, %v3371
  %v3699 = vsel %vm3686, %v3682, %v3373
  %v3700 = vsel %vm3686, %v3683, %v3375
  %v3701 = vsel %vm3686, %v3684, %v3377
  %v3702 = vsel %vm3686, %v3685, %v3379
  %vm3703 = vcmask 261120
  %v3704 = vsel %vm3703, %v3687, %v3413
  %v3705 = vsel %vm3703, %v3688, %v3415
  %v3706 = vsel %vm3703, %v3689, %v3417
  %v3707 = vsel %vm3703, %v3690, %v3419
  %v3708 = vsel %vm3703, %v3691, %v3421
  %v3709 = vsel %vm3703, %v3692, %v3423
  %v3710 = vsel %vm3703, %v3693, %v3425
  %v3711 = vsel %vm3703, %v3694, %v3427
  %v3712 = vsel %vm3703, %v3695, %v3429
  %v3713 = vsel %vm3703, %v3696, %v3431
  %v3714 = vsel %vm3703, %v3697, %v3433
  %v3715 = vsel %vm3703, %v3698, %v3435
  %v3716 = vsel %vm3703, %v3699, %v3437
  %v3717 = vsel %vm3703, %v3700, %v3439
  %v3718 = vsel %vm3703, %v3701, %v3441
  %v3719 = vsel %vm3703, %v3702, %v3443
  %vm3720 = vcmask 326656
  %v3721 = vsel %vm3720, %v3704, %v3477
  %v3722 = vsel %vm3720, %v3705, %v3479
  %v3723 = vsel %vm3720, %v3706, %v3481
  %v3724 = vsel %vm3720, %v3707, %v3483
  %v3725 = vsel %vm3720, %v3708, %v3485
  %v3726 = vsel %vm3720, %v3709, %v3487
  %v3727 = vsel %vm3720, %v3710, %v3489
  %v3728 = vsel %vm3720, %v3711, %v3491
  %v3729 = vsel %vm3720, %v3712, %v3493
  %v3730 = vsel %vm3720, %v3713, %v3495
  %v3731 = vsel %vm3720, %v3714, %v3497
  %v3732 = vsel %vm3720, %v3715, %v3499
  %v3733 = vsel %vm3720, %v3716, %v3501
  %v3734 = vsel %vm3720, %v3717, %v3503
  %v3735 = vsel %vm3720, %v3718, %v3505
  %v3736 = vsel %vm3720, %v3719, %v3507
  %vm3737 = vcmask 392192
  %v3738 = vsel %vm3737, %v3721, %v3541
  %v3739 = vsel %vm3737, %v3722, %v3543
  %v3740 = vsel %vm3737, %v3723, %v3545
  %v3741 = vsel %vm3737, %v3724, %v3547
  %v3742 = vsel %vm3737, %v3725, %v3549
  %v3743 = vsel %vm3737, %v3726, %v3551
  %v3744 = vsel %vm3737, %v3727, %v3553
  %v3745 = vsel %vm3737, %v3728, %v3555
  %v3746 = vsel %vm3737, %v3729, %v3557
  %v3747 = vsel %vm3737, %v3730, %v3559
  %v3748 = vsel %vm3737, %v3731, %v3561
  %v3749 = vsel %vm3737, %v3732, %v3563
  %v3750 = vsel %vm3737, %v3733, %v3565
  %v3751 = vsel %vm3737, %v3734, %v3567
  %v3752 = vsel %vm3737, %v3735, %v3569
  %v3753 = vsel %vm3737, %v3736, %v3571
  %vm3754 = vcmask 457728
  %v3755 = vsel %vm3754, %v3738, %v3605
  %v3756 = vsel %vm3754, %v3739, %v3607
  %v3757 = vsel %vm3754, %v3740, %v3609
  %v3758 = vsel %vm3754, %v3741, %v3611
  %v3759 = vsel %vm3754, %v3742, %v3613
  %v3760 = vsel %vm3754, %v3743, %v3615
  %v3761 = vsel %vm3754, %v3744, %v3617
  %v3762 = vsel %vm3754, %v3745, %v3619
  %v3763 = vsel %vm3754, %v3746, %v3621
  %v3764 = vsel %vm3754, %v3747, %v3623
  %v3765 = vsel %vm3754, %v3748, %v3625
  %v3766 = vsel %vm3754, %v3749, %v3627
  %v3767 = vsel %vm3754, %v3750, %v3629
  %v3768 = vsel %vm3754, %v3751, %v3631
  %v3769 = vsel %vm3754, %v3752, %v3633
  %v3770 = vsel %vm3754, %v3753, %v3635
  %v3771 = vld [vmem:[%s4] sm:$0x1]
  %v3773 = vperm.slane %v3771, 0
  %v3775 = vadd.f32 %v3755, %v3773
  %v3776 = vadd.f32 %v3756, %v3773
  %v3777 = vadd.f32 %v3757, %v3773
  %v3778 = vadd.f32 %v3758, %v3773
  %v3779 = vadd.f32 %v3759, %v3773
  %v3780 = vadd.f32 %v3760, %v3773
  %v3781 = vadd.f32 %v3761, %v3773
  %v3782 = vadd.f32 %v3762, %v3773
  %v3783 = vadd.f32 %v3763, %v3773
  %v3784 = vadd.f32 %v3764, %v3773
  %v3785 = vadd.f32 %v3765, %v3773
  %v3786 = vadd.f32 %v3766, %v3773
  %v3787 = vadd.f32 %v3767, %v3773
  %v3788 = vadd.f32 %v3768, %v3773
  %v3789 = vadd.f32 %v3769, %v3773
  %v3790 = vadd.f32 %v3770, %v3773
  %v3791 = vmax.f32 %v3775, 0.0
  %v3792 = vmax.f32 %v3776, 0.0
  %v3793 = vmax.f32 %v3777, 0.0
  %v3794 = vmax.f32 %v3778, 0.0
  %v3795 = vmax.f32 %v3779, 0.0
  %v3796 = vmax.f32 %v3780, 0.0
  %v3797 = vmax.f32 %v3781, 0.0
  %v3798 = vmax.f32 %v3782, 0.0
  %v3799 = vmax.f32 %v3783, 0.0
  %v3800 = vmax.f32 %v3784, 0.0
  %v3801 = vmax.f32 %v3785, 0.0
  %v3802 = vmax.f32 %v3786, 0.0
  %v3803 = vmax.f32 %v3787, 0.0
  %v3804 = vmax.f32 %v3788, 0.0
  %v3805 = vmax.f32 %v3789, 0.0
  %v3806 = vmax.f32 %v3790, 0.0
  %vm3807 = vcmask 523264
  %3808 = vst.msk [vmem:[%s5] sm:$0xff] %vm3807, %v3791
  %3809 = vst.msk [vmem:[%s5 + $0x8] sm:$0xff] %vm3807, %v3792
  %3810 = vst.msk [vmem:[%s5 + $0x10] sm:$0xff] %vm3807, %v3793
  %3811 = vst.msk [vmem:[%s5 + $0x18] sm:$0xff] %vm3807, %v3794
  %3812 = vst.msk [vmem:[%s5 + $0x20] sm:$0xff] %vm3807, %v3795
  %3813 = vst.msk [vmem:[%s5 + $0x28] sm:$0xff] %vm3807, %v3796
  %3814 = vst.msk [vmem:[%s5 + $0x30] sm:$0xff] %vm3807, %v3797
  %3815 = vst.msk [vmem:[%s5 + $0x38] sm:$0xff] %vm3807, %v3798
  %3816 = vst.msk [vmem:[%s5 + $0x40] sm:$0xff] %vm3807, %v3799
  %3817 = vst.msk [vmem:[%s5 + $0x48] sm:$0xff] %vm3807, %v3800
  %3818 = vst.msk [vmem:[%s5 + $0x50] sm:$0xff] %vm3807, %v3801
  %3819 = vst.msk [vmem:[%s5 + $0x58] sm:$0xff] %vm3807, %v3802
  %3820 = vst.msk [vmem:[%s5 + $0x60] sm:$0xff] %vm3807, %v3803
  %3821 = vst.msk [vmem:[%s5 + $0x68] sm:$0xff] %vm3807, %v3804
  %3822 = vst.msk [vmem:[%s5 + $0x70] sm:$0xff] %vm3807, %v3805
  %3823 = vst.msk [vmem:[%s5 + $0x78] sm:$0xff] %vm3807, %v3806
  // Predicated region
  $region22: #{_forward_impl.5} parent=0 // pred_check
    _
  $region23: #{_forward_impl.5} parent=0 // pred_check_branch
    %3825 = sbr.rel (0) target = $region25
  $region24: #{_forward_impl.5} parent=0 // pred_region
    _
  $region25: #{_forward_impl.5} parent=0 // pred_fallthru
    _
  // Predicated region
  $region26: #{_forward_impl.5} parent=0 // pred_check
    _
  $region27: #{_forward_impl.5} parent=0 // pred_check_branch
    %3827 = sbr.rel (0) target = $region29
  $region28: #{_forward_impl.5} parent=0 // pred_region
    _
  $region29: #{_forward_impl.5} parent=0 // pred_fallthru
    _

</llo_original>
